<compile_context>
chip_gen: v5e
topology: v5e:2x2
jax: 0.10.0
libtpu: 0.0.40
codegen_flags: <defaults>
</compile_context>

<pallas_src>
import functools
import math

import jax
import jax.numpy as jnp
from jax import lax
from jax.experimental import pallas as pl
from jax.experimental.pallas import tpu as pltpu

_MASK_VALUE = -1e30   # finite "minus infinity": safe under casts / running max


def _layernorm(x, gamma, beta, eps=1e-5):
    mu = jnp.mean(x, axis=-1, keepdims=True)
    var = jnp.mean((x - mu) ** 2, axis=-1, keepdims=True)   # biased var, like PyTorch LN
    return (x - mu) * lax.rsqrt(var + eps) * gamma + beta


def _gelu_tanh(x):
    # tanh-approximate GELU (tanh -> EUP); max |err| vs exact erf-GELU ~1e-3.
    # TODO(synk): swap back to an erf-based GELU if bit-level parity with nn.GELU() is needed.
    c = math.sqrt(2.0 / math.pi)
    return 0.5 * x * (1.0 + jnp.tanh(c * (x + 0.044715 * (x * x * x))))


# --------------------------------------------------------------------------------------
# Pass 1: LayerNorm1 + QKV projection, done once per token (head-major bf16 outputs).
# --------------------------------------------------------------------------------------
def qkv_project_kernel(x_ref, g1_ref, b1_ref, wq_ref, wk_ref, wv_ref,
                       q_ref, k_ref, v_ref, *, n_heads, scale):
    x = x_ref[0]                                  # (TR, D) f32
    tr, d = x.shape
    hd = d // n_heads
    bf16 = jnp.bfloat16
    h = _layernorm(x, g1_ref[...], b1_ref[...]).astype(bf16)

    def project(w_ref, s):
        p = jnp.dot(h, w_ref[...], preferred_element_type=jnp.float32)
        if s != 1.0:
            p = p * s
        # (TR, D) -> head-major (H, TR, hd).  One relayout per row tile, outside the
        # attention hot loop, so pass 2 never lane-slices heads.
        return p.reshape(tr, n_heads, hd).transpose(1, 0, 2).astype(bf16)

    q_ref[0] = project(wq_ref, scale)             # queries pre-scaled by 1/sqrt(hd)
    k_ref[0] = project(wk_ref, 1.0)
    v_ref[0] = project(wv_ref, 1.0)


# --------------------------------------------------------------------------------------
# Pass 2: flash attention over streamed K/V blocks + output projection + residuals + MLP.
# --------------------------------------------------------------------------------------
def attn_mlp_kernel(x_ref, q_ref, k_hbm, v_hbm,
                    wo_ref, bo_ref, g2_ref, b2_ref, w1_ref, w2_ref,
                    o_ref,
                    m_sc, l_sc, acc_sc, kbuf, vbuf, sem,
                    *, n_heads):
    b = pl.program_id(0)
    qi = pl.program_id(1)
    x_q = x_ref[0]                                # (TQ, D) f32
    tq, d = x_q.shape
    bf16 = jnp.bfloat16
    q = q_ref[0]                                  # (H, TQ, hd) bf16, pre-scaled

    # ---- manual double-buffered streaming of precomputed K/V blocks from HBM ----
    def kv_copies(j, slot):
        start = pl.multiple_of(j * tq, tq)
        ck = pltpu.make_async_copy(k_hbm.at[b, :, pl.ds(start, tq), :],
                                   kbuf.at[slot], sem.at[0, slot])
        cv = pltpu.make_async_copy(v_hbm.at[b, :, pl.ds(start, tq), :],
                                   vbuf.at[slot], sem.at[1, slot])
        return ck, cv

    def fetch(j, slot):
        ck, cv = kv_copies(j, slot)
        ck.start()
        cv.start()

    def wait_kv(slot):
        ck, cv = kv_copies(0, slot)               # wait only needs a matching transfer size
        ck.wait()
        cv.wait()

    fetch(0, 0)

    m_sc[...] = jnp.full(m_sc.shape, _MASK_VALUE, m_sc.dtype)
    l_sc[...] = jnp.zeros(l_sc.shape, l_sc.dtype)
    acc_sc[...] = jnp.zeros(acc_sc.shape, acc_sc.dtype)

    def flash_update(k_blk, v_blk, mask):
        # All heads at once: batched over the leading head axis (no lane slicing).
        s = jnp.einsum("hqd,hkd->hqk", q, k_blk,
                       preferred_element_type=jnp.float32)        # (H, TQ, TK) f32
        if mask is not None:
            s = jnp.where(mask, s, _MASK_VALUE)
        m_prev = m_sc[...]
        m_new = jnp.maximum(m_prev, jnp.max(s, axis=-1, keepdims=True))
        alpha = jnp.exp(m_prev - m_new)
        p = jnp.exp(s - m_new)
        l_sc[...] = alpha * l_sc[...] + jnp.sum(p, axis=-1, keepdims=True)
        acc_sc[...] = alpha * acc_sc[...] + jnp.einsum(
            "hqk,hkd->hqd", p.astype(bf16), v_blk,
            preferred_element_type=jnp.float32)
        m_sc[...] = m_new

    # Off-diagonal KV blocks (fully causal-visible): no mask compute / select.
    @pl.loop(0, qi)
    def _kv_block(j):
        slot = j & 1
        wait_kv(slot)
        fetch(j + 1, 1 - slot)                    # j + 1 <= qi always, so no guard needed
        flash_update(kbuf[slot], vbuf[slot], mask=None)

    # Diagonal block: the only one that needs the causal mask.
    diag_slot = qi & 1
    wait_kv(diag_slot)
    causal = (lax.broadcasted_iota(jnp.int32, (tq, tq), 0)
              >= lax.broadcasted_iota(jnp.int32, (tq, tq), 1))[None, :, :]
    flash_update(kbuf[diag_slot], vbuf[diag_slot], mask=causal)

    # ---- finalize attention: merge heads once, single K=D output projection ----
    ctx = acc_sc[...] * pl.reciprocal(l_sc[...], approx=True)     # (H, TQ, hd) f32
    ctx = jnp.transpose(ctx, (1, 0, 2)).reshape(tq, d)            # merge_heads -> (TQ, D)
    y = jnp.dot(ctx.astype(bf16), wo_ref[...],
                preferred_element_type=jnp.float32) + bo_ref[...]
    x1 = x_q + y                                  # residual 1 (dropout p=0 -> identity)

    # ---- row-tiled MLP: x1 + W2(gelu(W1(norm2(x1)))) ----
    # TODO(synk): for D >= 2048 on v7x, tile the MLP hidden axis (stream w1/w2 blocks via
    # an inner pipeline) instead of keeping w1/w2 fully resident in VMEM.
    h2 = _layernorm(x1, g2_ref[...], b2_ref[...]).astype(bf16)
    mid = jnp.dot(h2, w1_ref[...], preferred_element_type=jnp.float32)   # (TQ, 4D)
    mid = _gelu_tanh(mid).astype(bf16)
    out = jnp.dot(mid, w2_ref[...], preferred_element_type=jnp.float32)  # (TQ, D)
    o_ref[0] = x1 + out


# --------------------------------------------------------------------------------------
# Wrapper
# --------------------------------------------------------------------------------------
def _vmem_limit_bytes(required):
    """Generation-aware VMEM limit: enough for our buffers + margin, with headroom left
    for Mosaic-internal scratch (never request the whole physical VMEM)."""
    cap = 128 * 1024 * 1024
    try:
        info = pltpu.get_tpu_info()
        cap = int(getattr(info, "vmem_capacity_bytes", cap))
    except Exception:
        pass
    return int(max(min(required + (8 << 20), int(cap * 0.875)), 32 << 20))


def _transformer_block_impl(x, params, n_heads, block_q, block_r,
                            single_buffer_constants):
    B, S, D = x.shape
    assert D % n_heads == 0, "dim_emb must be divisible by n_heads"
    hd = D // n_heads
    block_q = min(block_q, S)
    block_r = min(block_r, S)
    assert S % block_q == 0 and block_q % 8 == 0
    assert S % block_r == 0 and block_r % 8 == 0
    n_q = S // block_q
    n_r = S // block_r

    f32, bf16 = jnp.float32, jnp.bfloat16
    x = x.astype(f32)

    wqkv = params["wqkv"]
    assert wqkv.shape == (D, 3 * D), "wqkv must be [in_dim, 3*dim_emb] (pre-transposed)"
    wq = wqkv[:, 0 * D:1 * D].astype(bf16)
    wk = wqkv[:, 1 * D:2 * D].astype(bf16)
    wv = wqkv[:, 2 * D:3 * D].astype(bf16)
    wo = params["wo"].astype(bf16)                       # (D, D)
    w1 = params["w1"].astype(bf16)                       # (D, 4D)
    w2 = params["w2"].astype(bf16)                       # (4D, D)
    bo = params["bo"].reshape(1, D).astype(f32)
    g1 = params["g1"].reshape(1, D).astype(f32)
    b1 = params["b1"].reshape(1, D).astype(f32)
    g2 = params["g2"].reshape(1, D).astype(f32)
    b2 = params["b2"].reshape(1, D).astype(f32)

    wbuf = 1 if single_buffer_constants else 2          # weight buffer count

    def const_spec(arr):
        nd = arr.ndim
        idx = lambda b_, t_, _nd=nd: (0,) * _nd          # block index constant across grid
        if single_buffer_constants:
            return pl.BlockSpec(arr.shape, idx, pipeline_mode=pl.Buffered(buffer_count=1))
        return pl.BlockSpec(arr.shape, idx)

    # ---------------- pass 1: LN1 + QKV projection (once per token) ----------------
    scale = 1.0 / math.sqrt(hd)
    p1_vmem = (2 * block_r * D * 4                       # x tile (double-buffered)
               + 2 * 3 * block_r * D * 2                 # q/k/v output tiles
               + wbuf * 3 * D * D * 2                    # wq/wk/wv (bf16)
               + wbuf * 2 * D * 4)                       # g1/b1
    qkv_shape = jax.ShapeDtypeStruct((B, n_heads, S, hd), bf16)
    qkv_out_spec = pl.BlockSpec((1, n_heads, block_r, hd), lambda b, r: (b, 0, r, 0))
    q, k, v = pl.pallas_call(
        functools.partial(qkv_project_kernel, n_heads=n_heads, scale=scale),
        out_shape=(qkv_shape, qkv_shape, qkv_shape),
        grid=(B, n_r),
        in_specs=[
            pl.BlockSpec((1, block_r, D), lambda b, r: (b, r, 0)),
            const_spec(g1), const_spec(b1),
            const_spec(wq), const_spec(wk), const_spec(wv),
        ],
        out_specs=(qkv_out_spec, qkv_out_spec, qkv_out_spec),
        compiler_params=pltpu.CompilerParams(
            dimension_semantics=("parallel", "parallel"),
            vmem_limit_bytes=_vmem_limit_bytes(p1_vmem)),
    )(x, g1, b1, wq, wk, wv)

    # ------------- pass 2: flash attention + output proj + residuals + MLP -------------
    p2_vmem = (2 * block_q * D * 4                       # x tile
               + 2 * block_q * D * 2                     # q tile
               + 2 * block_q * D * 4                     # output tile
               + wbuf * (2 + 8 + 8) * D * D              # wo + w1 + w2 (bf16)
               + wbuf * 4 * D * 4                        # bo/g2/b2
               + 2 * n_heads * block_q * 4               # m, l scratch
               + block_q * D * 4                         # attention accumulator
               + 2 * 2 * block_q * D * 2)                # K/V double buffers
    kernel = functools.partial(attn_mlp_kernel, n_heads=n_heads)
    out = pl.pallas_call(
        kernel,
        out_shape=jax.ShapeDtypeStruct((B, S, D), f32),
        grid=(B, n_q),
        in_specs=[
            pl.BlockSpec((1, block_q, D), lambda b, qi: (b, qi, 0)),               # x tile
            pl.BlockSpec((1, n_heads, block_q, hd), lambda b, qi: (b, 0, qi, 0)),  # q tile
            pl.BlockSpec(memory_space=pl.ANY),                                     # K (HBM)
            pl.BlockSpec(memory_space=pl.ANY),                                     # V (HBM)
            const_spec(wo), const_spec(bo), const_spec(g2), const_spec(b2),
            const_spec(w1), const_spec(w2),
        ],
        out_specs=pl.BlockSpec((1, block_q, D), lambda b, qi: (b, qi, 0)),
        scratch_shapes=[
            pltpu.VMEM((n_heads, block_q, 1), f32),      # running max
            pltpu.VMEM((n_heads, block_q, 1), f32),      # running sum
            pltpu.VMEM((n_heads, block_q, hd), f32),     # attention accumulator
            pltpu.VMEM((2, n_heads, block_q, hd), bf16), # K double buffer
            pltpu.VMEM((2, n_heads, block_q, hd), bf16), # V double buffer
            pltpu.SemaphoreType.DMA((2, 2)),
        ],
        compiler_params=pltpu.CompilerParams(
            dimension_semantics=("parallel", "parallel"),
            vmem_limit_bytes=_vmem_limit_bytes(p2_vmem)),
    )(x, q, k, v, wo, bo, g2, b2, w1, w2)
    return out


def transformer_block(x, params, n_heads, block_q=256, block_r=256):
    """Fused TransformerBlock forward (eval mode).  Weights in `params` use
    [in_dim, out_dim] layout (transpose of PyTorch nn.Linear.weight)."""
    try:
        out = _transformer_block_impl(x, params, n_heads, block_q, block_r,
                                      single_buffer_constants=True)
        return jax.block_until_ready(out)
    except Exception:
        # TODO(synk): pl.Buffered(1) single-buffering of constant operands is not
        # available on this JAX build; fall back to default double buffering.
        out = _transformer_block_impl(x, params, n_heads, block_q, block_r,
                                      single_buffer_constants=False)
        return jax.block_until_ready(out)


# --------------------------------------------------------------------------------------
# Pure-JAX f32 reference mirroring the PyTorch forward (eval mode, dropout=0).
# --------------------------------------------------------------------------------------
def transformer_block_reference(x, params, n_heads):
    B, S, D = x.shape
    hd = D // n_heads

    def ln(t, g, b):
        mu = t.mean(-1, keepdims=True)
        var = ((t - mu) ** 2).mean(-1, keepdims=True)
        return (t - mu) / jnp.sqrt(var + 1e-5) * g + b

    h = ln(x, params["g1"], params["b1"])
    qkv = h @ params["wqkv"]
    q, k, v = jnp.split(qkv, 3, axis=-1)

    def sep(t):
        return t.reshape(B, S, n_heads, hd).transpose(0, 2, 1, 3)

    q, k, v = sep(q), sep(k), sep(v)
    s = jnp.einsum("bhqd,bhkd->bhqk", q, k) / math.sqrt(hd)
    mask = jnp.tril(jnp.ones((S, S), dtype=bool))
    s = jnp.where(mask[None, None], s, -jnp.inf)
    p = jax.nn.softmax(s, axis=-1)
    y = jnp.einsum("bhqk,bhkd->bhqd", p, v)
    y = y.transpose(0, 2, 1, 3).reshape(B, S, D)
    y = y @ params["wo"] + params["bo"]
    x1 = x + y

    h2 = ln(x1, params["g2"], params["b2"])
    m = h2 @ params["w1"]
    m = jax.nn.gelu(m, approximate=False)
    m = m @ params["w2"]
    return x1 + m


if __name__ == "__main__":
    # Small config that still exercises the tiling: batch=2, seq=64, dim_emb=32, heads=4
    # (head_dim=8), mlp hidden=128, query tile = 16 -> 4 query tiles / up-to-4 KV blocks,
    # pass-1 row tile = 32 -> 2 projection tiles.
    B, S, D, H = 2, 64, 32, 4
    key = jax.random.PRNGKey(0)
    ks = jax.random.split(key, 10)

    params = {
        "wqkv": 0.02 * jax.random.normal(ks[0], (D, 3 * D), jnp.float32),
        "wo":   0.02 * jax.random.normal(ks[1], (D, D), jnp.float32),
        "bo":   0.02 * jax.random.normal(ks[2], (D,), jnp.float32),
        "g1":   1.0 + 0.1 * jax.random.normal(ks[3], (D,), jnp.float32),
        "b1":   0.1 * jax.random.normal(ks[4], (D,), jnp.float32),
        "g2":   1.0 + 0.1 * jax.random.normal(ks[5], (D,), jnp.float32),
        "b2":   0.1 * jax.random.normal(ks[6], (D,), jnp.float32),
        "w1":   0.02 * jax.random.normal(ks[7], (D, 4 * D), jnp.float32),
        "w2":   0.02 * jax.random.normal(ks[8], (4 * D, D), jnp.float32),
    }
    x = jax.random.normal(ks[9], (B, S, D), jnp.float32)

    out = transformer_block(x, params, H, block_q=16, block_r=32)
    out = jax.block_until_ready(out)
    ref = jax.block_until_ready(transformer_block_reference(x, params, H))

    assert out.shape == (B, S, D)
    assert bool(jnp.all(jnp.isfinite(out)))
    max_err = float(jnp.max(jnp.abs(out - ref)))
    assert jnp.allclose(out, ref, atol=1e-2, rtol=1e-2), max_err

    print("KERNEL_OK")
</pallas_src>

<mosaic_0001>
module attributes {stable_mosaic.version = 11 : i64} {
  func.func @qkv_project_kernel(%arg0: i32, %arg1: i32, %arg2: memref<1x32x32xf32, #tpu.memory_space<vmem>>, %arg3: memref<1x32xf32, #tpu.memory_space<vmem>>, %arg4: memref<1x32xf32, #tpu.memory_space<vmem>>, %arg5: memref<32x32xbf16, #tpu.memory_space<vmem>>, %arg6: memref<32x32xbf16, #tpu.memory_space<vmem>>, %arg7: memref<32x32xbf16, #tpu.memory_space<vmem>>, %arg8: memref<1x4x32x8xbf16, #tpu.memory_space<vmem>>, %arg9: memref<1x4x32x8xbf16, #tpu.memory_space<vmem>>, %arg10: memref<1x4x32x8xbf16, #tpu.memory_space<vmem>>) attributes {dimension_semantics = [#tpu.dimension_semantics<parallel>, #tpu.dimension_semantics<parallel>], iteration_bounds = array<i64: 2, 2>, scalar_prefetch = 0 : i64, scratch_operands = 0 : i64, tpu.core_type = #tpu.core_type<tc>, window_params = [{transform_indices = @transform_0, window_bounds = array<i64: 1, 32, 32>}, {pipeline_mode = #tpu.pipeline_mode<synchronous>, transform_indices = @transform_1, window_bounds = array<i64: 1, 32>}, {pipeline_mode = #tpu.pipeline_mode<synchronous>, transform_indices = @transform_2, window_bounds = array<i64: 1, 32>}, {pipeline_mode = #tpu.pipeline_mode<synchronous>, transform_indices = @transform_3, window_bounds = array<i64: 32, 32>}, {pipeline_mode = #tpu.pipeline_mode<synchronous>, transform_indices = @transform_4, window_bounds = array<i64: 32, 32>}, {pipeline_mode = #tpu.pipeline_mode<synchronous>, transform_indices = @transform_5, window_bounds = array<i64: 32, 32>}, {transform_indices = @transform_6, window_bounds = array<i64: 1, 4, 32, 8>}, {transform_indices = @transform_7, window_bounds = array<i64: 1, 4, 32, 8>}, {transform_indices = @transform_8, window_bounds = array<i64: 1, 4, 32, 8>}]} {
    %c0 = arith.constant 0 : index
    %c0_0 = arith.constant 0 : index
    %c0_1 = arith.constant 0 : index
    %0 = vector.load %arg2[%c0, %c0_0, %c0_1] : memref<1x32x32xf32, #tpu.memory_space<vmem>>, vector<1x32x32xf32>
    %1 = vector.shape_cast %0 : vector<1x32x32xf32> to vector<32x32xf32>
    %c0_2 = arith.constant 0 : index
    %c0_3 = arith.constant 0 : index
    %2 = vector.load %arg3[%c0_2, %c0_3] : memref<1x32xf32, #tpu.memory_space<vmem>>, vector<1x32xf32>
    %c0_4 = arith.constant 0 : index
    %c0_5 = arith.constant 0 : index
    %3 = vector.load %arg4[%c0_4, %c0_5] : memref<1x32xf32, #tpu.memory_space<vmem>>, vector<1x32xf32>
    %cst = arith.constant dense<0.000000e+00> : vector<32xf32>
    %4 = vector.multi_reduction <add>, %1, %cst [1] : vector<32x32xf32> to vector<32xf32>
    %5 = vector.shape_cast %4 : vector<32xf32> to vector<32x1xf32>
    %cst_6 = arith.constant 3.200000e+01 : f32
    %6 = vector.broadcast %cst_6 : f32 to vector<32x1xf32>
    %7 = arith.divf %5, %6 : vector<32x1xf32>
    %8 = vector.broadcast %7 : vector<32x1xf32> to vector<32x32xf32>
    %9 = arith.subf %1, %8 : vector<32x32xf32>
    %10 = arith.mulf %9, %9 : vector<32x32xf32>
    %cst_7 = arith.constant dense<0.000000e+00> : vector<32xf32>
    %11 = vector.multi_reduction <add>, %10, %cst_7 [1] : vector<32x32xf32> to vector<32xf32>
    %12 = vector.shape_cast %11 : vector<32xf32> to vector<32x1xf32>
    %cst_8 = arith.constant 3.200000e+01 : f32
    %13 = vector.broadcast %cst_8 : f32 to vector<32x1xf32>
    %14 = arith.divf %12, %13 : vector<32x1xf32>
    %15 = vector.broadcast %7 : vector<32x1xf32> to vector<32x32xf32>
    %16 = arith.subf %1, %15 : vector<32x32xf32>
    %cst_9 = arith.constant 9.99999974E-6 : f32
    %17 = vector.broadcast %cst_9 : f32 to vector<32x1xf32>
    %18 = arith.addf %14, %17 : vector<32x1xf32>
    %19 = math.rsqrt %18 : vector<32x1xf32>
    %20 = vector.broadcast %19 : vector<32x1xf32> to vector<32x32xf32>
    %21 = arith.mulf %16, %20 : vector<32x32xf32>
    %22 = vector.broadcast %2 : vector<1x32xf32> to vector<32x32xf32>
    %23 = arith.mulf %21, %22 : vector<32x32xf32>
    %24 = vector.broadcast %3 : vector<1x32xf32> to vector<32x32xf32>
    %25 = arith.addf %23, %24 : vector<32x32xf32>
    %26 = arith.truncf %25 : vector<32x32xf32> to vector<32x32xbf16>
    %c0_10 = arith.constant 0 : index
    %c0_11 = arith.constant 0 : index
    %27 = vector.load %arg5[%c0_10, %c0_11] : memref<32x32xbf16, #tpu.memory_space<vmem>>, vector<32x32xbf16>
    %cst_12 = arith.constant dense<0.000000e+00> : vector<32x32xf32>
    %28 = tpu.matmul %26, %27, %cst_12 {dimension_numbers = #tpu.dot_dimension_numbers<[1], [0], [0], [1], [0, 0, 1, 1], [], []>} : vector<32x32xbf16>, vector<32x32xbf16>, vector<32x32xf32> -> vector<32x32xf32>
    %cst_13 = arith.constant 0.353553385 : f32
    %29 = vector.broadcast %cst_13 : f32 to vector<32x32xf32>
    %30 = arith.mulf %28, %29 : vector<32x32xf32>
    %31 = vector.shape_cast %30 : vector<32x32xf32> to vector<32x4x8xf32>
    %32 = tpu.transpose %31, [1, 0, 2] : vector<32x4x8xf32> -> vector<4x32x8xf32>
    %33 = arith.truncf %32 : vector<4x32x8xf32> to vector<4x32x8xbf16>
    %c0_14 = arith.constant 0 : index
    %c0_15 = arith.constant 0 : index
    %c0_16 = arith.constant 0 : index
    %c0_17 = arith.constant 0 : index
    %34 = vector.load %arg8[%c0_14, %c0_15, %c0_16, %c0_17] : memref<1x4x32x8xbf16, #tpu.memory_space<vmem>>, vector<1x4x32x8xbf16>
    %35 = vector.shape_cast %34 : vector<1x4x32x8xbf16> to vector<4x32x8xbf16>
    %36 = vector.shape_cast %33 : vector<4x32x8xbf16> to vector<1x4x32x8xbf16>
    tpu.vector_store %arg8[%c0_14, %c0_15, %c0_16, %c0_17], %36 {strides = array<i32>} : memref<1x4x32x8xbf16, #tpu.memory_space<vmem>>, vector<1x4x32x8xbf16>,
    %c0_18 = arith.constant 0 : index
    %c0_19 = arith.constant 0 : index
    %37 = vector.load %arg6[%c0_18, %c0_19] : memref<32x32xbf16, #tpu.memory_space<vmem>>, vector<32x32xbf16>
    %cst_20 = arith.constant dense<0.000000e+00> : vector<32x32xf32>
    %38 = tpu.matmul %26, %37, %cst_20 {dimension_numbers = #tpu.dot_dimension_numbers<[1], [0], [0], [1], [0, 0, 1, 1], [], []>} : vector<32x32xbf16>, vector<32x32xbf16>, vector<32x32xf32> -> vector<32x32xf32>
    %39 = vector.shape_cast %38 : vector<32x32xf32> to vector<32x4x8xf32>
    %40 = tpu.transpose %39, [1, 0, 2] : vector<32x4x8xf32> -> vector<4x32x8xf32>
    %41 = arith.truncf %40 : vector<4x32x8xf32> to vector<4x32x8xbf16>
    %c0_21 = arith.constant 0 : index
    %c0_22 = arith.constant 0 : index
    %c0_23 = arith.constant 0 : index
    %c0_24 = arith.constant 0 : index
    %42 = vector.load %arg9[%c0_21, %c0_22, %c0_23, %c0_24] : memref<1x4x32x8xbf16, #tpu.memory_space<vmem>>, vector<1x4x32x8xbf16>
    %43 = vector.shape_cast %42 : vector<1x4x32x8xbf16> to vector<4x32x8xbf16>
    %44 = vector.shape_cast %41 : vector<4x32x8xbf16> to vector<1x4x32x8xbf16>
    tpu.vector_store %arg9[%c0_21, %c0_22, %c0_23, %c0_24], %44 {strides = array<i32>} : memref<1x4x32x8xbf16, #tpu.memory_space<vmem>>, vector<1x4x32x8xbf16>,
    %c0_25 = arith.constant 0 : index
    %c0_26 = arith.constant 0 : index
    %45 = vector.load %arg7[%c0_25, %c0_26] : memref<32x32xbf16, #tpu.memory_space<vmem>>, vector<32x32xbf16>
    %cst_27 = arith.constant dense<0.000000e+00> : vector<32x32xf32>
    %46 = tpu.matmul %26, %45, %cst_27 {dimension_numbers = #tpu.dot_dimension_numbers<[1], [0], [0], [1], [0, 0, 1, 1], [], []>} : vector<32x32xbf16>, vector<32x32xbf16>, vector<32x32xf32> -> vector<32x32xf32>
    %47 = vector.shape_cast %46 : vector<32x32xf32> to vector<32x4x8xf32>
    %48 = tpu.transpose %47, [1, 0, 2] : vector<32x4x8xf32> -> vector<4x32x8xf32>
    %49 = arith.truncf %48 : vector<4x32x8xf32> to vector<4x32x8xbf16>
    %c0_28 = arith.constant 0 : index
    %c0_29 = arith.constant 0 : index
    %c0_30 = arith.constant 0 : index
    %c0_31 = arith.constant 0 : index
    %50 = vector.load %arg10[%c0_28, %c0_29, %c0_30, %c0_31] : memref<1x4x32x8xbf16, #tpu.memory_space<vmem>>, vector<1x4x32x8xbf16>
    %51 = vector.shape_cast %50 : vector<1x4x32x8xbf16> to vector<4x32x8xbf16>
    %52 = vector.shape_cast %49 : vector<4x32x8xbf16> to vector<1x4x32x8xbf16>
    tpu.vector_store %arg10[%c0_28, %c0_29, %c0_30, %c0_31], %52 {strides = array<i32>} : memref<1x4x32x8xbf16, #tpu.memory_space<vmem>>, vector<1x4x32x8xbf16>,
    return
  }
  func.func @transform_0(%arg0: i32, %arg1: i32) -> (i32, i32, i32) {
    %c0_i32 = arith.constant 0 : i32
    %c0_i32_0 = arith.constant 0 : i32
    return %arg0, %arg1, %c0_i32 : i32, i32, i32
  }
  func.func @transform_1(%arg0: i32, %arg1: i32) -> (i32, i32) {
    %c0_i32 = arith.constant 0 : i32
    %c0_i32_0 = arith.constant 0 : i32
    %c0_i32_1 = arith.constant 0 : i32
    return %c0_i32, %c0_i32_0 : i32, i32
  }
  func.func @transform_2(%arg0: i32, %arg1: i32) -> (i32, i32) {
    %c0_i32 = arith.constant 0 : i32
    %c0_i32_0 = arith.constant 0 : i32
    %c0_i32_1 = arith.constant 0 : i32
    return %c0_i32, %c0_i32_0 : i32, i32
  }
  func.func @transform_3(%arg0: i32, %arg1: i32) -> (i32, i32) {
    %c0_i32 = arith.constant 0 : i32
    %c0_i32_0 = arith.constant 0 : i32
    %c0_i32_1 = arith.constant 0 : i32
    return %c0_i32, %c0_i32_0 : i32, i32
  }
  func.func @transform_4(%arg0: i32, %arg1: i32) -> (i32, i32) {
    %c0_i32 = arith.constant 0 : i32
    %c0_i32_0 = arith.constant 0 : i32
    %c0_i32_1 = arith.constant 0 : i32
    return %c0_i32, %c0_i32_0 : i32, i32
  }
  func.func @transform_5(%arg0: i32, %arg1: i32) -> (i32, i32) {
    %c0_i32 = arith.constant 0 : i32
    %c0_i32_0 = arith.constant 0 : i32
    %c0_i32_1 = arith.constant 0 : i32
    return %c0_i32, %c0_i32_0 : i32, i32
  }
  func.func @transform_6(%arg0: i32, %arg1: i32) -> (i32, i32, i32, i32) {
    %c0_i32 = arith.constant 0 : i32
    %c0_i32_0 = arith.constant 0 : i32
    %c0_i32_1 = arith.constant 0 : i32
    return %arg0, %c0_i32, %arg1, %c0_i32_0 : i32, i32, i32, i32
  }
  func.func @transform_7(%arg0: i32, %arg1: i32) -> (i32, i32, i32, i32) {
    %c0_i32 = arith.constant 0 : i32
    %c0_i32_0 = arith.constant 0 : i32
    %c0_i32_1 = arith.constant 0 : i32
    return %arg0, %c0_i32, %arg1, %c0_i32_0 : i32, i32, i32, i32
  }
  func.func @transform_8(%arg0: i32, %arg1: i32) -> (i32, i32, i32, i32) {
    %c0_i32 = arith.constant 0 : i32
    %c0_i32_0 = arith.constant 0 : i32
    %c0_i32_1 = arith.constant 0 : i32
    return %arg0, %c0_i32, %arg1, %c0_i32_0 : i32, i32, i32, i32
  }
}

module attributes {stable_mosaic.version = 11 : i64} {
  func.func @qkv_project_kernel(%arg0: i32, %arg1: i32, %arg2: memref<1x32x32xf32, #tpu.memory_space<vmem>>, %arg3: memref<1x32xf32, #tpu.memory_space<vmem>>, %arg4: memref<1x32xf32, #tpu.memory_space<vmem>>, %arg5: memref<32x32xbf16, #tpu.memory_space<vmem>>, %arg6: memref<32x32xbf16, #tpu.memory_space<vmem>>, %arg7: memref<32x32xbf16, #tpu.memory_space<vmem>>, %arg8: memref<1x4x32x8xbf16, #tpu.memory_space<vmem>>, %arg9: memref<1x4x32x8xbf16, #tpu.memory_space<vmem>>, %arg10: memref<1x4x32x8xbf16, #tpu.memory_space<vmem>>) attributes {dimension_semantics = [#tpu.dimension_semantics<parallel>, #tpu.dimension_semantics<parallel>], iteration_bounds = array<i64: 2, 2>, scalar_prefetch = 0 : i64, scratch_operands = 0 : i64, tpu.core_type = #tpu.core_type<tc>, window_params = [{transform_indices = @transform_0, window_bounds = array<i64: 1, 32, 32>}, {pipeline_mode = #tpu.pipeline_mode<synchronous>, transform_indices = @transform_1, window_bounds = array<i64: 1, 32>}, {pipeline_mode = #tpu.pipeline_mode<synchronous>, transform_indices = @transform_2, window_bounds = array<i64: 1, 32>}, {pipeline_mode = #tpu.pipeline_mode<synchronous>, transform_indices = @transform_3, window_bounds = array<i64: 32, 32>}, {pipeline_mode = #tpu.pipeline_mode<synchronous>, transform_indices = @transform_4, window_bounds = array<i64: 32, 32>}, {pipeline_mode = #tpu.pipeline_mode<synchronous>, transform_indices = @transform_5, window_bounds = array<i64: 32, 32>}, {transform_indices = @transform_6, window_bounds = array<i64: 1, 4, 32, 8>}, {transform_indices = @transform_7, window_bounds = array<i64: 1, 4, 32, 8>}, {transform_indices = @transform_8, window_bounds = array<i64: 1, 4, 32, 8>}]} {
    %c0 = arith.constant 0 : index
    %c0_0 = arith.constant 0 : index
    %c0_1 = arith.constant 0 : index
    %0 = vector.load %arg2[%c0, %c0_0, %c0_1] : memref<1x32x32xf32, #tpu.memory_space<vmem>>, vector<1x32x32xf32>
    %1 = vector.shape_cast %0 : vector<1x32x32xf32> to vector<32x32xf32>
    %c0_2 = arith.constant 0 : index
    %c0_3 = arith.constant 0 : index
    %2 = vector.load %arg3[%c0_2, %c0_3] : memref<1x32xf32, #tpu.memory_space<vmem>>, vector<1x32xf32>
    %c0_4 = arith.constant 0 : index
    %c0_5 = arith.constant 0 : index
    %3 = vector.load %arg4[%c0_4, %c0_5] : memref<1x32xf32, #tpu.memory_space<vmem>>, vector<1x32xf32>
    %cst = arith.constant dense<0.000000e+00> : vector<32xf32>
    %4 = vector.multi_reduction <add>, %1, %cst [1] : vector<32x32xf32> to vector<32xf32>
    %5 = vector.shape_cast %4 : vector<32xf32> to vector<32x1xf32>
    %cst_6 = arith.constant 3.200000e+01 : f32
    %6 = vector.broadcast %cst_6 : f32 to vector<32x1xf32>
    %7 = arith.divf %5, %6 : vector<32x1xf32>
    %8 = vector.broadcast %7 : vector<32x1xf32> to vector<32x32xf32>
    %9 = arith.subf %1, %8 : vector<32x32xf32>
    %10 = arith.mulf %9, %9 : vector<32x32xf32>
    %cst_7 = arith.constant dense<0.000000e+00> : vector<32xf32>
    %11 = vector.multi_reduction <add>, %10, %cst_7 [1] : vector<32x32xf32> to vector<32xf32>
    %12 = vector.shape_cast %11 : vector<32xf32> to vector<32x1xf32>
    %cst_8 = arith.constant 3.200000e+01 : f32
    %13 = vector.broadcast %cst_8 : f32 to vector<32x1xf32>
    %14 = arith.divf %12, %13 : vector<32x1xf32>
    %15 = vector.broadcast %7 : vector<32x1xf32> to vector<32x32xf32>
    %16 = arith.subf %1, %15 : vector<32x32xf32>
    %cst_9 = arith.constant 9.99999974E-6 : f32
    %17 = vector.broadcast %cst_9 : f32 to vector<32x1xf32>
    %18 = arith.addf %14, %17 : vector<32x1xf32>
    %19 = math.rsqrt %18 : vector<32x1xf32>
    %20 = vector.broadcast %19 : vector<32x1xf32> to vector<32x32xf32>
    %21 = arith.mulf %16, %20 : vector<32x32xf32>
    %22 = vector.broadcast %2 : vector<1x32xf32> to vector<32x32xf32>
    %23 = arith.mulf %21, %22 : vector<32x32xf32>
    %24 = vector.broadcast %3 : vector<1x32xf32> to vector<32x32xf32>
    %25 = arith.addf %23, %24 : vector<32x32xf32>
    %26 = arith.truncf %25 : vector<32x32xf32> to vector<32x32xbf16>
    %c0_10 = arith.constant 0 : index
    %c0_11 = arith.constant 0 : index
    %27 = vector.load %arg5[%c0_10, %c0_11] : memref<32x32xbf16, #tpu.memory_space<vmem>>, vector<32x32xbf16>
    %cst_12 = arith.constant dense<0.000000e+00> : vector<32x32xf32>
    %28 = tpu.matmul %26, %27, %cst_12 {dimension_numbers = #tpu.dot_dimension_numbers<[1], [0], [0], [1], [0, 0, 1, 1], [], []>} : vector<32x32xbf16>, vector<32x32xbf16>, vector<32x32xf32> -> vector<32x32xf32>
    %cst_13 = arith.constant 0.353553385 : f32
    %29 = vector.broadcast %cst_13 : f32 to vector<32x32xf32>
    %30 = arith.mulf %28, %29 : vector<32x32xf32>
    %31 = vector.shape_cast %30 : vector<32x32xf32> to vector<32x4x8xf32>
    %32 = tpu.transpose %31, [1, 0, 2] : vector<32x4x8xf32> -> vector<4x32x8xf32>
    %33 = arith.truncf %32 : vector<4x32x8xf32> to vector<4x32x8xbf16>
    %c0_14 = arith.constant 0 : index
    %c0_15 = arith.constant 0 : index
    %c0_16 = arith.constant 0 : index
    %c0_17 = arith.constant 0 : index
    %34 = vector.load %arg8[%c0_14, %c0_15, %c0_16, %c0_17] : memref<1x4x32x8xbf16, #tpu.memory_space<vmem>>, vector<1x4x32x8xbf16>
    %35 = vector.shape_cast %34 : vector<1x4x32x8xbf16> to vector<4x32x8xbf16>
    %36 = vector.shape_cast %33 : vector<4x32x8xbf16> to vector<1x4x32x8xbf16>
    tpu.vector_store %arg8[%c0_14, %c0_15, %c0_16, %c0_17], %36 {strides = array<i32>} : memref<1x4x32x8xbf16, #tpu.memory_space<vmem>>, vector<1x4x32x8xbf16>,
    %c0_18 = arith.constant 0 : index
    %c0_19 = arith.constant 0 : index
    %37 = vector.load %arg6[%c0_18, %c0_19] : memref<32x32xbf16, #tpu.memory_space<vmem>>, vector<32x32xbf16>
    %cst_20 = arith.constant dense<0.000000e+00> : vector<32x32xf32>
    %38 = tpu.matmul %26, %37, %cst_20 {dimension_numbers = #tpu.dot_dimension_numbers<[1], [0], [0], [1], [0, 0, 1, 1], [], []>} : vector<32x32xbf16>, vector<32x32xbf16>, vector<32x32xf32> -> vector<32x32xf32>
    %39 = vector.shape_cast %38 : vector<32x32xf32> to vector<32x4x8xf32>
    %40 = tpu.transpose %39, [1, 0, 2] : vector<32x4x8xf32> -> vector<4x32x8xf32>
    %41 = arith.truncf %40 : vector<4x32x8xf32> to vector<4x32x8xbf16>
    %c0_21 = arith.constant 0 : index
    %c0_22 = arith.constant 0 : index
    %c0_23 = arith.constant 0 : index
    %c0_24 = arith.constant 0 : index
    %42 = vector.load %arg9[%c0_21, %c0_22, %c0_23, %c0_24] : memref<1x4x32x8xbf16, #tpu.memory_space<vmem>>, vector<1x4x32x8xbf16>
    %43 = vector.shape_cast %42 : vector<1x4x32x8xbf16> to vector<4x32x8xbf16>
    %44 = vector.shape_cast %41 : vector<4x32x8xbf16> to vector<1x4x32x8xbf16>
    tpu.vector_store %arg9[%c0_21, %c0_22, %c0_23, %c0_24], %44 {strides = array<i32>} : memref<1x4x32x8xbf16, #tpu.memory_space<vmem>>, vector<1x4x32x8xbf16>,
    %c0_25 = arith.constant 0 : index
    %c0_26 = arith.constant 0 : index
    %45 = vector.load %arg7[%c0_25, %c0_26] : memref<32x32xbf16, #tpu.memory_space<vmem>>, vector<32x32xbf16>
    %cst_27 = arith.constant dense<0.000000e+00> : vector<32x32xf32>
    %46 = tpu.matmul %26, %45, %cst_27 {dimension_numbers = #tpu.dot_dimension_numbers<[1], [0], [0], [1], [0, 0, 1, 1], [], []>} : vector<32x32xbf16>, vector<32x32xbf16>, vector<32x32xf32> -> vector<32x32xf32>
    %47 = vector.shape_cast %46 : vector<32x32xf32> to vector<32x4x8xf32>
    %48 = tpu.transpose %47, [1, 0, 2] : vector<32x4x8xf32> -> vector<4x32x8xf32>
    %49 = arith.truncf %48 : vector<4x32x8xf32> to vector<4x32x8xbf16>
    %c0_28 = arith.constant 0 : index
    %c0_29 = arith.constant 0 : index
    %c0_30 = arith.constant 0 : index
    %c0_31 = arith.constant 0 : index
    %50 = vector.load %arg10[%c0_28, %c0_29, %c0_30, %c0_31] : memref<1x4x32x8xbf16, #tpu.memory_space<vmem>>, vector<1x4x32x8xbf16>
    %51 = vector.shape_cast %50 : vector<1x4x32x8xbf16> to vector<4x32x8xbf16>
    %52 = vector.shape_cast %49 : vector<4x32x8xbf16> to vector<1x4x32x8xbf16>
    tpu.vector_store %arg10[%c0_28, %c0_29, %c0_30, %c0_31], %52 {strides = array<i32>} : memref<1x4x32x8xbf16, #tpu.memory_space<vmem>>, vector<1x4x32x8xbf16>,
    return
  }
  func.func @transform_0(%arg0: i32, %arg1: i32) -> (i32, i32, i32) {
    %c0_i32 = arith.constant 0 : i32
    %c0_i32_0 = arith.constant 0 : i32
    return %arg0, %arg1, %c0_i32 : i32, i32, i32
  }
  func.func @transform_1(%arg0: i32, %arg1: i32) -> (i32, i32) {
    %c0_i32 = arith.constant 0 : i32
    %c0_i32_0 = arith.constant 0 : i32
    %c0_i32_1 = arith.constant 0 : i32
    return %c0_i32, %c0_i32_0 : i32, i32
  }
  func.func @transform_2(%arg0: i32, %arg1: i32) -> (i32, i32) {
    %c0_i32 = arith.constant 0 : i32
    %c0_i32_0 = arith.constant 0 : i32
    %c0_i32_1 = arith.constant 0 : i32
    return %c0_i32, %c0_i32_0 : i32, i32
  }
  func.func @transform_3(%arg0: i32, %arg1: i32) -> (i32, i32) {
    %c0_i32 = arith.constant 0 : i32
    %c0_i32_0 = arith.constant 0 : i32
    %c0_i32_1 = arith.constant 0 : i32
    return %c0_i32, %c0_i32_0 : i32, i32
  }
  func.func @transform_4(%arg0: i32, %arg1: i32) -> (i32, i32) {
    %c0_i32 = arith.constant 0 : i32
    %c0_i32_0 = arith.constant 0 : i32
    %c0_i32_1 = arith.constant 0 : i32
    return %c0_i32, %c0_i32_0 : i32, i32
  }
  func.func @transform_5(%arg0: i32, %arg1: i32) -> (i32, i32) {
    %c0_i32 = arith.constant 0 : i32
    %c0_i32_0 = arith.constant 0 : i32
    %c0_i32_1 = arith.constant 0 : i32
    return %c0_i32, %c0_i32_0 : i32, i32
  }
  func.func @transform_6(%arg0: i32, %arg1: i32) -> (i32, i32, i32, i32) {
    %c0_i32 = arith.constant 0 : i32
    %c0_i32_0 = arith.constant 0 : i32
    %c0_i32_1 = arith.constant 0 : i32
    return %arg0, %c0_i32, %arg1, %c0_i32_0 : i32, i32, i32, i32
  }
  func.func @transform_7(%arg0: i32, %arg1: i32) -> (i32, i32, i32, i32) {
    %c0_i32 = arith.constant 0 : i32
    %c0_i32_0 = arith.constant 0 : i32
    %c0_i32_1 = arith.constant 0 : i32
    return %arg0, %c0_i32, %arg1, %c0_i32_0 : i32, i32, i32, i32
  }
  func.func @transform_8(%arg0: i32, %arg1: i32) -> (i32, i32, i32, i32) {
    %c0_i32 = arith.constant 0 : i32
    %c0_i32_0 = arith.constant 0 : i32
    %c0_i32_1 = arith.constant 0 : i32
    return %arg0, %c0_i32, %arg1, %c0_i32_0 : i32, i32, i32, i32
  }
}

</mosaic_0001>

<llo_original>
// kernel: tpu_custom_call.1
$region0: #{tpu_custom_call.1}
  #allocation0 [shape = 'u32[]', space=smem, size = 0x4, offset = 0x4, fixed_abs, tag = 'smem constant byte address 0x4 - core index']
  #allocation1 [shape = 'u32[72,128]{1,0:T(1,128)}', space=vmem, size = 0x9000, scoped, tag = 'internal scratch']
  %s0 = inlined_call_operand.vmem [shape: f32[2,64,32], index: 0, kind: input, shape index: {}]
  %s1 = inlined_call_operand.vmem [shape: f32[1,32], index: 1, kind: input, shape index: {}]
  %s2 = inlined_call_operand.vmem [shape: f32[1,32], index: 2, kind: input, shape index: {}]
  %s3 = inlined_call_operand.vmem [shape: bf16[32,32], index: 3, kind: input, shape index: {}]
  %s4 = inlined_call_operand.vmem [shape: bf16[32,32], index: 4, kind: input, shape index: {}]
  %s5 = inlined_call_operand.vmem [shape: bf16[32,32], index: 5, kind: input, shape index: {}]
  %s6 = inlined_call_operand.vmem [shape: bf16[2,4,64,8], index: 6, kind: output, shape index: {0}]
  %s7 = inlined_call_operand.vmem [shape: bf16[2,4,64,8], index: 7, kind: output, shape index: {1}]
  %s8 = inlined_call_operand.vmem [shape: bf16[2,4,64,8], index: 8, kind: output, shape index: {2}]
  %9 = xla_tuple %s6, %s7, %s8
  %s10 = sld [smem:[#allocation0]]
  $region184: #{tpu_custom_call.1} parent=0
    _
  %s12 = ssub.s32 1, %s10
  %s13 = scalar_select 0, %s12, %s10
  $region1: #{tpu_custom_call.1} parent=0
    #allocation2 [shape = 'u8[65536]{0}', space=vmem, size = 0x10000, scoped, tag = 'output window, operand 0']
    #allocation3 [shape = 'u8[65536]{0}', space=vmem, size = 0x10000, scoped, tag = 'output window, operand 1']
    #allocation4 [shape = 'u8[65536]{0}', space=vmem, size = 0x10000, scoped, tag = 'output window, operand 2']
    loop: start=0, step=1, limit=6
    $region2: #{tpu_custom_call.1} parent=1 // loop_pre_header
      _
    $region3: #{tpu_custom_call.1} parent=1 // loop_header
      %s15 = sphi 0, %s19
      %p16 = scmp.ge.s32.totalorder %s15, 6
      %s22 = sphi 0, %s34
      %s23 = sphi 0, %s30
      %s24 = sphi 0, %s22
      %s25 = sphi 0, %s23
      %s26 = sphi 0, %s24
      %s27 = sphi 0, %s25
      %s39 = sphi 0, %s41
      %s42 = sphi 0, %s39
      %s43 = sphi 0, %s42
      %s59 = sphi 0, %s43
      %s63 = sphi 0, %s63
      %s65 = sphi 0, %s63
      %s66 = sphi 0, %s65
      %s80 = sphi 0, %s66
      %s84 = sphi 0, %s84
      %s86 = sphi 0, %s84
      %s87 = sphi 0, %s86
      %s101 = sphi 0, %s87
      %s105 = sphi 0, %s105
      %s107 = sphi 0, %s105
      %s108 = sphi 0, %s107
      %s122 = sphi 0, %s108
      %s126 = sphi 0, %s126
      %s128 = sphi 0, %s126
      %s129 = sphi 0, %s128
      %s143 = sphi 0, %s129
      %s147 = sphi 0, %s147
      %s149 = sphi 0, %s147
      %s150 = sphi 0, %s149
      %s164 = sphi 0, %s150
      %s172 = sphi 0, %s174
      %s175 = sphi 0, %s172
      %s176 = sphi 0, %s175
      %s192 = sphi 0, %s176
      %s200 = sphi 0, %s202
      %s203 = sphi 0, %s200
      %s204 = sphi 0, %s203
      %s220 = sphi 0, %s204
      %s228 = sphi 0, %s230
      %s231 = sphi 0, %s228
      %s232 = sphi 0, %s231
      %s248 = sphi 0, %s232
    $region4: #{tpu_custom_call.1} parent=1 // loop_header_branch
      %18 = sbr.rel (%p16) target = $region8
    $region5: #{tpu_custom_call.1} parent=1 // loop_body
      %s20 = ssub.s32 %s15, 1
      %s21 = ssub.s32 %s15, 2
      %s28 = sadd.s32 1, %s23
      %p29 = scmp.ge.s32.totalorder %s28, 2
      %s30 = scalar_select %p29, 0, %s28
      %s31 = sadd.s32 1, %s22
      %s32 = scalar_select %p29, %s31, %s22
      %p33 = scmp.ge.s32.totalorder %s32, 2
      %s34 = scalar_select %p33, 0, %s32
      %s35 = ssub.s32 %s22, %s34
      %s36 = ssub.s32 %s23, %s30
      %s37 = sor.u32 %s35, %s36
      %p38 = scmp.eq.s32.totalorder %s37, 0
      %s40 = sadd.s32 %s39, 1
      %s41 = scalar_select %p38, %s39, %s40
      %p44 = pneg %p38
      %p45 = scmp.eq.s32.totalorder %s15, 3
      %p46 = por %p44, %p45
      %p47 = scmp.ne.s32.totalorder %s39, %s42
      %p48 = scmp.eq.s32.totalorder %s15, 0
      %p49 = por %p47, %p48
      %p50 = scmp.ne.s32.totalorder %s39, %s42
      %p51 = scmp.eq.s32.totalorder %s20, 3
      %p52 = por %p50, %p51
      %p53 = scmp.ne.s32.totalorder %s42, %s43
      %p54 = scmp.eq.s32.totalorder %s20, 0
      %p55 = por %p53, %p54
      %p56 = scmp.ne.s32.totalorder %s42, %s43
      %p57 = scmp.eq.s32.totalorder %s21, 3
      %p58 = por %p56, %p57
      %p60 = scmp.ne.s32.totalorder %s43, %s59
      %p61 = scmp.eq.s32.totalorder %s21, 0
      %p62 = por %p60, %p61
      %s64 = sadd.s32 %s63, 1
      %p67 = scmp.eq.s32.totalorder %s15, 3
      %p68 = scmp.ne.s32.totalorder %s63, %s65
      %p69 = scmp.eq.s32.totalorder %s15, 0
      %p70 = por %p68, %p69
      %p71 = scmp.ne.s32.totalorder %s63, %s65
      %p72 = scmp.eq.s32.totalorder %s20, 3
      %p73 = por %p71, %p72
      %p74 = scmp.ne.s32.totalorder %s65, %s66
      %p75 = scmp.eq.s32.totalorder %s20, 0
      %p76 = por %p74, %p75
      %p77 = scmp.ne.s32.totalorder %s65, %s66
      %p78 = scmp.eq.s32.totalorder %s21, 3
      %p79 = por %p77, %p78
      %p81 = scmp.ne.s32.totalorder %s66, %s80
      %p82 = scmp.eq.s32.totalorder %s21, 0
      %p83 = por %p81, %p82
      %s85 = sadd.s32 %s84, 1
      %p88 = scmp.eq.s32.totalorder %s15, 3
      %p89 = scmp.ne.s32.totalorder %s84, %s86
      %p90 = scmp.eq.s32.totalorder %s15, 0
      %p91 = por %p89, %p90
      %p92 = scmp.ne.s32.totalorder %s84, %s86
      %p93 = scmp.eq.s32.totalorder %s20, 3
      %p94 = por %p92, %p93
      %p95 = scmp.ne.s32.totalorder %s86, %s87
      %p96 = scmp.eq.s32.totalorder %s20, 0
      %p97 = por %p95, %p96
      %p98 = scmp.ne.s32.totalorder %s86, %s87
      %p99 = scmp.eq.s32.totalorder %s21, 3
      %p100 = por %p98, %p99
      %p102 = scmp.ne.s32.totalorder %s87, %s101
      %p103 = scmp.eq.s32.totalorder %s21, 0
      %p104 = por %p102, %p103
      %s106 = sadd.s32 %s105, 1
      %p109 = scmp.eq.s32.totalorder %s15, 3
      %p110 = scmp.ne.s32.totalorder %s105, %s107
      %p111 = scmp.eq.s32.totalorder %s15, 0
      %p112 = por %p110, %p111
      %p113 = scmp.ne.s32.totalorder %s105, %s107
      %p114 = scmp.eq.s32.totalorder %s20, 3
      %p115 = por %p113, %p114
      %p116 = scmp.ne.s32.totalorder %s107, %s108
      %p117 = scmp.eq.s32.totalorder %s20, 0
      %p118 = por %p116, %p117
      %p119 = scmp.ne.s32.totalorder %s107, %s108
      %p120 = scmp.eq.s32.totalorder %s21, 3
      %p121 = por %p119, %p120
      %p123 = scmp.ne.s32.totalorder %s108, %s122
      %p124 = scmp.eq.s32.totalorder %s21, 0
      %p125 = por %p123, %p124
      %s127 = sadd.s32 %s126, 1
      %p130 = scmp.eq.s32.totalorder %s15, 3
      %p131 = scmp.ne.s32.totalorder %s126, %s128
      %p132 = scmp.eq.s32.totalorder %s15, 0
      %p133 = por %p131, %p132
      %p134 = scmp.ne.s32.totalorder %s126, %s128
      %p135 = scmp.eq.s32.totalorder %s20, 3
      %p136 = por %p134, %p135
      %p137 = scmp.ne.s32.totalorder %s128, %s129
      %p138 = scmp.eq.s32.totalorder %s20, 0
      %p139 = por %p137, %p138
      %p140 = scmp.ne.s32.totalorder %s128, %s129
      %p141 = scmp.eq.s32.totalorder %s21, 3
      %p142 = por %p140, %p141
      %p144 = scmp.ne.s32.totalorder %s129, %s143
      %p145 = scmp.eq.s32.totalorder %s21, 0
      %p146 = por %p144, %p145
      %s148 = sadd.s32 %s147, 1
      %p151 = scmp.eq.s32.totalorder %s15, 3
      %p152 = scmp.ne.s32.totalorder %s147, %s149
      %p153 = scmp.eq.s32.totalorder %s15, 0
      %p154 = por %p152, %p153
      %p155 = scmp.ne.s32.totalorder %s147, %s149
      %p156 = scmp.eq.s32.totalorder %s20, 3
      %p157 = por %p155, %p156
      %p158 = scmp.ne.s32.totalorder %s149, %s150
      %p159 = scmp.eq.s32.totalorder %s20, 0
      %p160 = por %p158, %p159
      %p161 = scmp.ne.s32.totalorder %s149, %s150
      %p162 = scmp.eq.s32.totalorder %s21, 3
      %p163 = por %p161, %p162
      %p165 = scmp.ne.s32.totalorder %s150, %s164
      %p166 = scmp.eq.s32.totalorder %s21, 0
      %p167 = por %p165, %p166
      %s168 = ssub.s32 %s22, %s34
      %s169 = ssub.s32 %s23, %s30
      %s170 = sor.u32 %s168, %s169
      %p171 = scmp.eq.s32.totalorder %s170, 0
      %s173 = sadd.s32 %s172, 1
      %s174 = scalar_select %p171, %s172, %s173
      %p177 = pneg %p171
      %p178 = scmp.eq.s32.totalorder %s15, 3
      %p179 = por %p177, %p178
      %p180 = scmp.ne.s32.totalorder %s172, %s175
      %p181 = scmp.eq.s32.totalorder %s15, 0
      %p182 = por %p180, %p181
      %p183 = scmp.ne.s32.totalorder %s172, %s175
      %p184 = scmp.eq.s32.totalorder %s20, 3
      %p185 = por %p183, %p184
      %p186 = scmp.ne.s32.totalorder %s175, %s176
      %p187 = scmp.eq.s32.totalorder %s20, 0
      %p188 = por %p186, %p187
      %p189 = scmp.ne.s32.totalorder %s175, %s176
      %p190 = scmp.eq.s32.totalorder %s21, 3
      %p191 = por %p189, %p190
      %p193 = scmp.ne.s32.totalorder %s176, %s192
      %p194 = scmp.eq.s32.totalorder %s21, 0
      %p195 = por %p193, %p194
      %s196 = ssub.s32 %s22, %s34
      %s197 = ssub.s32 %s23, %s30
      %s198 = sor.u32 %s196, %s197
      %p199 = scmp.eq.s32.totalorder %s198, 0
      %s201 = sadd.s32 %s200, 1
      %s202 = scalar_select %p199, %s200, %s201
      %p205 = pneg %p199
      %p206 = scmp.eq.s32.totalorder %s15, 3
      %p207 = por %p205, %p206
      %p208 = scmp.ne.s32.totalorder %s200, %s203
      %p209 = scmp.eq.s32.totalorder %s15, 0
      %p210 = por %p208, %p209
      %p211 = scmp.ne.s32.totalorder %s200, %s203
      %p212 = scmp.eq.s32.totalorder %s20, 3
      %p213 = por %p211, %p212
      %p214 = scmp.ne.s32.totalorder %s203, %s204
      %p215 = scmp.eq.s32.totalorder %s20, 0
      %p216 = por %p214, %p215
      %p217 = scmp.ne.s32.totalorder %s203, %s204
      %p218 = scmp.eq.s32.totalorder %s21, 3
      %p219 = por %p217, %p218
      %p221 = scmp.ne.s32.totalorder %s204, %s220
      %p222 = scmp.eq.s32.totalorder %s21, 0
      %p223 = por %p221, %p222
      %s224 = ssub.s32 %s22, %s34
      %s225 = ssub.s32 %s23, %s30
      %s226 = sor.u32 %s224, %s225
      %p227 = scmp.eq.s32.totalorder %s226, 0
      %s229 = sadd.s32 %s228, 1
      %s230 = scalar_select %p227, %s228, %s229
      %p233 = pneg %p227
      %p234 = scmp.eq.s32.totalorder %s15, 3
      %p235 = por %p233, %p234
      %p236 = scmp.ne.s32.totalorder %s228, %s231
      %p237 = scmp.eq.s32.totalorder %s15, 0
      %p238 = por %p236, %p237
      %p239 = scmp.ne.s32.totalorder %s228, %s231
      %p240 = scmp.eq.s32.totalorder %s20, 3
      %p241 = por %p239, %p240
      %p242 = scmp.ne.s32.totalorder %s231, %s232
      %p243 = scmp.eq.s32.totalorder %s20, 0
      %p244 = por %p242, %p243
      %p245 = scmp.ne.s32.totalorder %s231, %s232
      %p246 = scmp.eq.s32.totalorder %s21, 3
      %p247 = por %p245, %p246
      %p249 = scmp.ne.s32.totalorder %s232, %s248
      %p250 = scmp.eq.s32.totalorder %s21, 0
      %p251 = por %p249, %p250
      %p252 = scmp.le.s32.totalorder 1, %s15
      %p253 = scmp.lt.s32.totalorder %s15, 5
      %p254 = pnand %p252, %p253
      %p255 = pneg %p254
      // Predicated region
      $region9: #{tpu_custom_call.1} parent=5 // pred_check
        _
      $region10: #{tpu_custom_call.1} parent=5 // pred_check_branch
        %257 = sbr.rel (%p254) target = $region12
      $region11: #{tpu_custom_call.1} parent=5 // pred_region
        %s258 = ssub.s32 %s15, 1
        // Predicated region
        $region13: #{tpu_custom_call.1} parent=11 // pred_check
          %p259 = pneg %p76
        $region14: #{tpu_custom_call.1} parent=11 // pred_check_branch
          %261 = sbr.rel (%p259) target = $region16
        $region15: #{tpu_custom_call.1} parent=11 // pred_region
          _
        $region16: #{tpu_custom_call.1} parent=11 // pred_fallthru
          _
        // Predicated region
        $region17: #{tpu_custom_call.1} parent=11 // pred_check
          %p262 = pneg %p97
        $region18: #{tpu_custom_call.1} parent=11 // pred_check_branch
          %264 = sbr.rel (%p262) target = $region20
        $region19: #{tpu_custom_call.1} parent=11 // pred_region
          _
        $region20: #{tpu_custom_call.1} parent=11 // pred_fallthru
          _
        // Predicated region
        $region21: #{tpu_custom_call.1} parent=11 // pred_check
          %p265 = pneg %p118
        $region22: #{tpu_custom_call.1} parent=11 // pred_check_branch
          %267 = sbr.rel (%p265) target = $region24
        $region23: #{tpu_custom_call.1} parent=11 // pred_region
          _
        $region24: #{tpu_custom_call.1} parent=11 // pred_fallthru
          _
        // Predicated region
        $region25: #{tpu_custom_call.1} parent=11 // pred_check
          %p268 = pneg %p139
        $region26: #{tpu_custom_call.1} parent=11 // pred_check_branch
          %270 = sbr.rel (%p268) target = $region28
        $region27: #{tpu_custom_call.1} parent=11 // pred_region
          _
        $region28: #{tpu_custom_call.1} parent=11 // pred_fallthru
          _
        // Predicated region
        $region29: #{tpu_custom_call.1} parent=11 // pred_check
          %p271 = pneg %p160
        $region30: #{tpu_custom_call.1} parent=11 // pred_check_branch
          %273 = sbr.rel (%p271) target = $region32
        $region31: #{tpu_custom_call.1} parent=11 // pred_region
          _
        $region32: #{tpu_custom_call.1} parent=11 // pred_fallthru
          _
      $region12: #{tpu_custom_call.1} parent=5 // pred_fallthru
        _
      %p274 = scmp.lt.s32.totalorder %s15, 4
      // Predicated region
      $region33: #{tpu_custom_call.1} parent=5 // pred_check
        %p275 = pneg %p274
      $region34: #{tpu_custom_call.1} parent=5 // pred_check_branch
        %277 = sbr.rel (%p275) target = $region36
      $region35: #{tpu_custom_call.1} parent=5 // pred_region
        // Predicated region
        $region37: #{tpu_custom_call.1} parent=35 // pred_check
          %p278 = pneg %p49
        $region38: #{tpu_custom_call.1} parent=35 // pred_check_branch
          %280 = sbr.rel (%p278) target = $region40
        $region39: #{tpu_custom_call.1} parent=35 // pred_region
          %s281 = smul.u32 4, %s23
          %p282 = scmp.lt.s32.totalorder %s22, 1
          %s283 = scalar_select %p282, %s22, 1
          %p284 = scmp.lt.s32.totalorder %s281, 7
          %s285 = scalar_select %p284, %s281, 7
          %s286 = smul.addr %s283, 8
          %s287 = sadd.s32 %s285, %s286
          %s288 = smul.addr %s287, 8
          %s289 = scalar_lea.vmem %s0, %s288
          %s290 = smul.u32 4, %s23
        $region40: #{tpu_custom_call.1} parent=35 // pred_fallthru
          _
      $region36: #{tpu_custom_call.1} parent=5 // pred_fallthru
        _
      %p291 = scmp.le.s32.totalorder 1, %s15
      %p292 = scmp.lt.s32.totalorder %s15, 5
      %p293 = pnand %p291, %p292
      %p294 = pneg %p293
      // Predicated region
      $region41: #{tpu_custom_call.1} parent=5 // pred_check
        _
      $region42: #{tpu_custom_call.1} parent=5 // pred_check_branch
        %296 = sbr.rel (%p293) target = $region44
      $region43: #{tpu_custom_call.1} parent=5 // pred_region
        %s297 = ssub.s32 %s15, 1
        %s298 = smul.u32 4, %s25
        %p299 = scmp.lt.s32.totalorder %s24, 1
        %s300 = scalar_select %p299, %s24, 1
        %p301 = scmp.lt.s32.totalorder %s298, 7
        %s302 = scalar_select %p301, %s298, 7
        %s303 = smul.addr %s300, 8
        %s304 = sadd.s32 %s302, %s303
        %s305 = smul.addr %s304, 8
        %s306 = scalar_lea.vmem %s0, %s305
        %p307 = pneg %p55
        %p308 = pneg %p52
        %p309 = pneg %p76
        %p310 = pneg %p73
        %p311 = pneg %p97
        %p312 = pneg %p94
        %p313 = pneg %p118
        %p314 = pneg %p115
        %p315 = pneg %p139
        %p316 = pneg %p136
        %p317 = pneg %p160
        %p318 = pneg %p157
        %p319 = pneg %p188
        %p320 = pneg %p185
        %s321 = sand.u32 %s175, 1
        %s322 = sand.u32 %s175, 1
        %s323 = smul.addr %s322, 64
        %s324 = scalar_lea.vmem [#allocation2], %s323
        %p325 = pneg %p216
        %p326 = pneg %p213
        %s327 = sand.u32 %s203, 1
        %s328 = sand.u32 %s203, 1
        %s329 = smul.addr %s328, 64
        %s330 = scalar_lea.vmem [#allocation3], %s329
        %p331 = pneg %p244
        %p332 = pneg %p241
        %s333 = sand.u32 %s231, 1
        %s334 = sand.u32 %s231, 1
        %s335 = smul.addr %s334, 64
        %s336 = scalar_lea.vmem [#allocation4], %s335
        %s337 = smul.u32 4, %s25
        %p338 = scmp.lt.s32.totalorder %s24, 1
        %s339 = scalar_select %p338, %s24, 1
        %p340 = scmp.lt.s32.totalorder %s337, 7
        %s341 = scalar_select %p340, %s337, 7
        %s342 = smul.addr %s339, 8
        %s343 = sadd.s32 %s341, %s342
        %s344 = smul.addr %s343, 8
        %s345 = scalar_lea.vmem %s0, %s344
        %s346 = smul.u32 4, %s25
        %s347 = smul.u32 4, %s25
        %s348 = smul.u32 4, %s25
        %s349 = smul.u32 4, %s25
        %v351 = vld [vmem:[%s345] sm:$0xff]
        %v352 = vld [vmem:[%s345 + $0x8] sm:$0xff]
        %v353 = vld [vmem:[%s345 + $0x10] sm:$0xff]
        %v354 = vld [vmem:[%s345 + $0x18] sm:$0xff]
        %v355 = vld [vmem:[%s1] sm:$0x1]
        %v356 = vld [vmem:[%s2] sm:$0x1]
        %vm357 = vcmask 261120
        %v358 = vsel %vm357, %v351, 0.0
        %359 = vadd.xlane.f32.xlu0 %v358
        %v360 = vpop.xlane.xlu0 %359
        %v361 = vsel %vm357, %v352, 0.0
        %362 = vadd.xlane.f32.xlu0 %v361
        %v363 = vpop.xlane.xlu0 %362
        %v364 = vsel %vm357, %v353, 0.0
        %365 = vadd.xlane.f32.xlu0 %v364
        %v366 = vpop.xlane.xlu0 %365
        %v367 = vsel %vm357, %v354, 0.0
        %368 = vadd.xlane.f32.xlu0 %v367
        %v369 = vpop.xlane.xlu0 %368
        %v370 = vrcp.pop 32.0
        %v371 = vmul.f32 32.0, %v370
        %v372 = vsub.f32 1.0, %v371
        %v373 = vmul.f32 %v370, %v372
        %v374 = vadd.f32 %v370, %v373
        %vm375 = vweird.f32 %v370
        %v376 = vsel %vm375, %v370, %v374
        %v377 = vmul.f32 %v360, %v376
        %v378 = vmul.f32 %v363, %v376
        %v379 = vmul.f32 %v366, %v376
        %v380 = vmul.f32 %v369, %v376
        %v381 = vsub.f32 %v351, %v377
        %v382 = vsub.f32 %v352, %v378
        %v383 = vsub.f32 %v353, %v379
        %v384 = vsub.f32 %v354, %v380
        %v385 = vmul.f32 %v381, %v381
        %v386 = vmul.f32 %v382, %v382
        %v387 = vmul.f32 %v383, %v383
        %v388 = vmul.f32 %v384, %v384
        %v389 = vsel %vm357, %v385, 0.0
        %390 = vadd.xlane.f32.xlu0 %v389
        %v391 = vpop.xlane.xlu0 %390
        %v392 = vsel %vm357, %v386, 0.0
        %393 = vadd.xlane.f32.xlu0 %v392
        %v394 = vpop.xlane.xlu0 %393
        %v395 = vsel %vm357, %v387, 0.0
        %396 = vadd.xlane.f32.xlu0 %v395
        %v397 = vpop.xlane.xlu0 %396
        %v398 = vsel %vm357, %v388, 0.0
        %399 = vadd.xlane.f32.xlu0 %v398
        %v400 = vpop.xlane.xlu0 %399
        %v401 = vmul.f32 %v391, %v376
        %v402 = vmul.f32 %v394, %v376
        %v403 = vmul.f32 %v397, %v376
        %v404 = vmul.f32 %v400, %v376
        %v405 = vadd.f32 %v401, 1e-05
        %v406 = vadd.f32 %v402, 1e-05
        %v407 = vadd.f32 %v403, 1e-05
        %v408 = vadd.f32 %v404, 1e-05
        %v409 = vrsqrt.pop %v405
        %v410 = vmul.f32 %v409, %v405
        %v411 = vmul.f32 %v410, %v409
        %v412 = vmul.f32 0.5, %v411
        %v413 = vsub.f32 1.5, %v412
        %v414 = vmul.f32 %v409, %v413
        %vm415 = vweird.f32 %v405
        %vm416 = vweird.f32 %v409
        %vm417 = vmor %vm415, %vm416
        %v418 = vsel %vm417, %v409, %v414
        %v419 = vrsqrt.pop %v406
        %v420 = vmul.f32 %v419, %v406
        %v421 = vmul.f32 %v420, %v419
        %v422 = vmul.f32 0.5, %v421
        %v423 = vsub.f32 1.5, %v422
        %v424 = vmul.f32 %v419, %v423
        %vm425 = vweird.f32 %v406
        %vm426 = vweird.f32 %v419
        %vm427 = vmor %vm425, %vm426
        %v428 = vsel %vm427, %v419, %v424
        %v429 = vrsqrt.pop %v407
        %v430 = vmul.f32 %v429, %v407
        %v431 = vmul.f32 %v430, %v429
        %v432 = vmul.f32 0.5, %v431
        %v433 = vsub.f32 1.5, %v432
        %v434 = vmul.f32 %v429, %v433
        %vm435 = vweird.f32 %v407
        %vm436 = vweird.f32 %v429
        %vm437 = vmor %vm435, %vm436
        %v438 = vsel %vm437, %v429, %v434
        %v439 = vrsqrt.pop %v408
        %v440 = vmul.f32 %v439, %v408
        %v441 = vmul.f32 %v440, %v439
        %v442 = vmul.f32 0.5, %v441
        %v443 = vsub.f32 1.5, %v442
        %v444 = vmul.f32 %v439, %v443
        %vm445 = vweird.f32 %v408
        %vm446 = vweird.f32 %v439
        %vm447 = vmor %vm445, %vm446
        %v448 = vsel %vm447, %v439, %v444
        %v449 = vmul.f32 %v381, %v418
        %v450 = vmul.f32 %v382, %v428
        %v451 = vmul.f32 %v383, %v438
        %v452 = vmul.f32 %v384, %v448
        %v454 = vperm.slane %v355, 0
        %v456 = vmul.f32 %v449, %v454
        %v457 = vmul.f32 %v450, %v454
        %v458 = vmul.f32 %v451, %v454
        %v459 = vmul.f32 %v452, %v454
        %v461 = vperm.slane %v356, 0
        %v463 = vadd.f32 %v456, %v461
        %v464 = vadd.f32 %v457, %v461
        %v465 = vadd.f32 %v458, %v461
        %v466 = vadd.f32 %v459, %v461
        %v467 = vpack.c.bf16 %v464, %v463
        %v468 = vpack.c.bf16 %v466, %v465
        %v469 = vld [vmem:[%s3] sm:$0xf]
        %v470 = vld [vmem:[%s3 + $0x4] sm:$0xf]
        %v471 = vld [vmem:[%s3 + $0x8] sm:$0xf]
        %v472 = vld [vmem:[%s3 + $0xc] sm:$0xf]
        %v477 = vunpack.c.l.b16 %v469
        %v478 = vunpack.c.l.b16 %v470
        %v479 = vunpack.c.l.b16 %v471
        %v480 = vunpack.c.l.b16 %v472
        %v481 = vpack.c.b16 %v478, %v477
        %v482 = vpack.c.b16 %v480, %v479
        %v486 = vsel %vm357, %v467, 0
        %v489 = vsel %vm357, %v468, 0
        %491 = vmatpush.bf16.msra.mxu0 0
        %492 = vmatpush.bf16.msra.mxu0 0
        %493 = vmatpush.bf16.msra.mxu0 0
        %494 = vmatpush.bf16.msra.mxu0 0
        %495 = vmatpush.bf16.msra.mxu0 0
        %496 = vmatpush.bf16.msra.mxu0 0
        %497 = vmatpush.bf16.msra.mxu0 %v482
        %498 = vmatpush.bf16.msra.mxu0 %v481
        %499 = vmatmul.bf16.gmra.mxu0 %v486
        %v500 = vpop.f32.mrf.mxu0
        %v501 = vadd.f32 0.0, %v500
        %v502 = vpop.f32.mrf.mxu0
        %v503 = vadd.f32 0.0, %v502
        %504 = vmatmul.bf16.gmra.mxu0 %v489
        %v505 = vpop.f32.mrf.mxu0
        %v506 = vadd.f32 0.0, %v505
        %v507 = vpop.f32.mrf.mxu0
        %v508 = vadd.f32 0.0, %v507
        %509 = vdwg.mxu0
        %v510 = vmul.f32 %v501, 0.35355338
        %v511 = vmul.f32 %v503, 0.35355338
        %v512 = vmul.f32 %v506, 0.35355338
        %v513 = vmul.f32 %v508, 0.35355338
        %518 = vrot.lane.b32.xlu0 %v510, 120
        %v519 = vpop.permute.xlu0 %518
        %520 = vrot.lane.b32.xlu0 %v511, 120
        %v521 = vpop.permute.xlu0 %520
        %522 = vrot.lane.b32.xlu0 %v512, 120
        %v523 = vpop.permute.xlu0 %522
        %524 = vrot.lane.b32.xlu0 %v513, 120
        %v525 = vpop.permute.xlu0 %524
        %530 = vrot.lane.b32.xlu0 %v510, 112
        %v531 = vpop.permute.xlu0 %530
        %532 = vrot.lane.b32.xlu0 %v511, 112
        %v533 = vpop.permute.xlu0 %532
        %534 = vrot.lane.b32.xlu0 %v512, 112
        %v535 = vpop.permute.xlu0 %534
        %536 = vrot.lane.b32.xlu0 %v513, 112
        %v537 = vpop.permute.xlu0 %536
        %542 = vrot.lane.b32.xlu0 %v510, 104
        %v543 = vpop.permute.xlu0 %542
        %544 = vrot.lane.b32.xlu0 %v511, 104
        %v545 = vpop.permute.xlu0 %544
        %546 = vrot.lane.b32.xlu0 %v512, 104
        %v547 = vpop.permute.xlu0 %546
        %548 = vrot.lane.b32.xlu0 %v513, 104
        %v549 = vpop.permute.xlu0 %548
        %v554 = vrot.slane %v531, 4
        %vm555 = vcmask 1047556
        %v556 = vsel %vm555, %v554, %v510
        %v557 = vrot.slane %v510, 4
        %v558 = vsel %vm555, %v531, %v557
        %v560 = vunpack.c.l.s4 1983009808
        %v561 = vunpack.c.0.s8 %v560
        %v562 = vperm.slane %v556, %v561
        %v564 = vunpack.c.l.s4 1983009808
        %v565 = vunpack.c.0.s8 %v564
        %v566 = vperm.slane %v558, %v565
        %v567 = vrot.slane %v543, 4
        %v568 = vsel %vm555, %v567, %v519
        %v569 = vrot.slane %v519, 4
        %v570 = vsel %vm555, %v543, %v569
        %v572 = vunpack.c.l.s4 1983009808
        %v573 = vunpack.c.0.s8 %v572
        %v574 = vperm.slane %v568, %v573
        %v576 = vunpack.c.l.s4 1983009808
        %v577 = vunpack.c.0.s8 %v576
        %v578 = vperm.slane %v570, %v577
        %v579 = vrot.slane %v574, 4
        %v580 = vsel %vm555, %v579, %v562
        %v581 = vrot.slane %v562, 4
        %v582 = vsel %vm555, %v574, %v581
        %v584 = vunpack.c.l.s4 1934713408
        %v585 = vunpack.c.0.s8 %v584
        %v586 = vperm.slane %v580, %v585
        %v588 = vunpack.c.l.s4 1934713408
        %v589 = vunpack.c.0.s8 %v588
        %v590 = vperm.slane %v582, %v589
        %v591 = vrot.slane %v578, 4
        %v592 = vsel %vm555, %v591, %v566
        %v593 = vrot.slane %v566, 4
        %v594 = vsel %vm555, %v578, %v593
        %v596 = vunpack.c.l.s4 1934713408
        %v597 = vunpack.c.0.s8 %v596
        %v598 = vperm.slane %v592, %v597
        %v600 = vunpack.c.l.s4 1934713408
        %v601 = vunpack.c.0.s8 %v600
        %v602 = vperm.slane %v594, %v601
        %v603 = vrot.slane %v586, 4
        %v604 = vsel %vm555, 0.0, %v603
        %v605 = vrot.slane %v590, 4
        %v606 = vsel %vm555, 0.0, %v605
        %v607 = vrot.slane %v598, 4
        %v608 = vsel %vm555, 0.0, %v607
        %v609 = vrot.slane %v602, 4
        %v610 = vsel %vm555, 0.0, %v609
        %v611 = vrot.slane %v533, 4
        %v612 = vsel %vm555, %v611, %v511
        %v613 = vrot.slane %v511, 4
        %v614 = vsel %vm555, %v533, %v613
        %v616 = vunpack.c.l.s4 1983009808
        %v617 = vunpack.c.0.s8 %v616
        %v618 = vperm.slane %v612, %v617
        %v620 = vunpack.c.l.s4 1983009808
        %v621 = vunpack.c.0.s8 %v620
        %v622 = vperm.slane %v614, %v621
        %v623 = vrot.slane %v545, 4
        %v624 = vsel %vm555, %v623, %v521
        %v625 = vrot.slane %v521, 4
        %v626 = vsel %vm555, %v545, %v625
        %v628 = vunpack.c.l.s4 1983009808
        %v629 = vunpack.c.0.s8 %v628
        %v630 = vperm.slane %v624, %v629
        %v632 = vunpack.c.l.s4 1983009808
        %v633 = vunpack.c.0.s8 %v632
        %v634 = vperm.slane %v626, %v633
        %v635 = vrot.slane %v630, 4
        %v636 = vsel %vm555, %v635, %v618
        %v637 = vrot.slane %v618, 4
        %v638 = vsel %vm555, %v630, %v637
        %v640 = vunpack.c.l.s4 1934713408
        %v641 = vunpack.c.0.s8 %v640
        %v642 = vperm.slane %v636, %v641
        %v644 = vunpack.c.l.s4 1934713408
        %v645 = vunpack.c.0.s8 %v644
        %v646 = vperm.slane %v638, %v645
        %v647 = vrot.slane %v634, 4
        %v648 = vsel %vm555, %v647, %v622
        %v649 = vrot.slane %v622, 4
        %v650 = vsel %vm555, %v634, %v649
        %v652 = vunpack.c.l.s4 1934713408
        %v653 = vunpack.c.0.s8 %v652
        %v654 = vperm.slane %v648, %v653
        %v656 = vunpack.c.l.s4 1934713408
        %v657 = vunpack.c.0.s8 %v656
        %v658 = vperm.slane %v650, %v657
        %v659 = vrot.slane %v642, 4
        %v660 = vsel %vm555, 0.0, %v659
        %v661 = vrot.slane %v646, 4
        %v662 = vsel %vm555, 0.0, %v661
        %v663 = vrot.slane %v654, 4
        %v664 = vsel %vm555, 0.0, %v663
        %v665 = vrot.slane %v658, 4
        %v666 = vsel %vm555, 0.0, %v665
        %v667 = vrot.slane %v535, 4
        %v668 = vsel %vm555, %v667, %v512
        %v669 = vrot.slane %v512, 4
        %v670 = vsel %vm555, %v535, %v669
        %v672 = vunpack.c.l.s4 1983009808
        %v673 = vunpack.c.0.s8 %v672
        %v674 = vperm.slane %v668, %v673
        %v676 = vunpack.c.l.s4 1983009808
        %v677 = vunpack.c.0.s8 %v676
        %v678 = vperm.slane %v670, %v677
        %v679 = vrot.slane %v547, 4
        %v680 = vsel %vm555, %v679, %v523
        %v681 = vrot.slane %v523, 4
        %v682 = vsel %vm555, %v547, %v681
        %v684 = vunpack.c.l.s4 1983009808
        %v685 = vunpack.c.0.s8 %v684
        %v686 = vperm.slane %v680, %v685
        %v688 = vunpack.c.l.s4 1983009808
        %v689 = vunpack.c.0.s8 %v688
        %v690 = vperm.slane %v682, %v689
        %v691 = vrot.slane %v686, 4
        %v692 = vsel %vm555, %v691, %v674
        %v693 = vrot.slane %v674, 4
        %v694 = vsel %vm555, %v686, %v693
        %v696 = vunpack.c.l.s4 1934713408
        %v697 = vunpack.c.0.s8 %v696
        %v698 = vperm.slane %v692, %v697
        %v700 = vunpack.c.l.s4 1934713408
        %v701 = vunpack.c.0.s8 %v700
        %v702 = vperm.slane %v694, %v701
        %v703 = vrot.slane %v690, 4
        %v704 = vsel %vm555, %v703, %v678
        %v705 = vrot.slane %v678, 4
        %v706 = vsel %vm555, %v690, %v705
        %v708 = vunpack.c.l.s4 1934713408
        %v709 = vunpack.c.0.s8 %v708
        %v710 = vperm.slane %v704, %v709
        %v712 = vunpack.c.l.s4 1934713408
        %v713 = vunpack.c.0.s8 %v712
        %v714 = vperm.slane %v706, %v713
        %v715 = vrot.slane %v698, 4
        %v716 = vsel %vm555, 0.0, %v715
        %v717 = vrot.slane %v702, 4
        %v718 = vsel %vm555, 0.0, %v717
        %v719 = vrot.slane %v710, 4
        %v720 = vsel %vm555, 0.0, %v719
        %v721 = vrot.slane %v714, 4
        %v722 = vsel %vm555, 0.0, %v721
        %v723 = vrot.slane %v537, 4
        %v724 = vsel %vm555, %v723, %v513
        %v725 = vrot.slane %v513, 4
        %v726 = vsel %vm555, %v537, %v725
        %v728 = vunpack.c.l.s4 1983009808
        %v729 = vunpack.c.0.s8 %v728
        %v730 = vperm.slane %v724, %v729
        %v732 = vunpack.c.l.s4 1983009808
        %v733 = vunpack.c.0.s8 %v732
        %v734 = vperm.slane %v726, %v733
        %v735 = vrot.slane %v549, 4
        %v736 = vsel %vm555, %v735, %v525
        %v737 = vrot.slane %v525, 4
        %v738 = vsel %vm555, %v549, %v737
        %v740 = vunpack.c.l.s4 1983009808
        %v741 = vunpack.c.0.s8 %v740
        %v742 = vperm.slane %v736, %v741
        %v744 = vunpack.c.l.s4 1983009808
        %v745 = vunpack.c.0.s8 %v744
        %v746 = vperm.slane %v738, %v745
        %v747 = vrot.slane %v742, 4
        %v748 = vsel %vm555, %v747, %v730
        %v749 = vrot.slane %v730, 4
        %v750 = vsel %vm555, %v742, %v749
        %v752 = vunpack.c.l.s4 1934713408
        %v753 = vunpack.c.0.s8 %v752
        %v754 = vperm.slane %v748, %v753
        %v756 = vunpack.c.l.s4 1934713408
        %v757 = vunpack.c.0.s8 %v756
        %v758 = vperm.slane %v750, %v757
        %v759 = vrot.slane %v746, 4
        %v760 = vsel %vm555, %v759, %v734
        %v761 = vrot.slane %v734, 4
        %v762 = vsel %vm555, %v746, %v761
        %v764 = vunpack.c.l.s4 1934713408
        %v765 = vunpack.c.0.s8 %v764
        %v766 = vperm.slane %v760, %v765
        %v768 = vunpack.c.l.s4 1934713408
        %v769 = vunpack.c.0.s8 %v768
        %v770 = vperm.slane %v762, %v769
        %v771 = vrot.slane %v754, 4
        %v772 = vsel %vm555, 0.0, %v771
        %v773 = vrot.slane %v758, 4
        %v774 = vsel %vm555, 0.0, %v773
        %v775 = vrot.slane %v766, 4
        %v776 = vsel %vm555, 0.0, %v775
        %v777 = vrot.slane %v770, 4
        %v778 = vsel %vm555, 0.0, %v777
        %v779 = vsel %vm555, %v605, %v586
        %v781 = vunpack.c.l.s4 1983009808
        %v782 = vunpack.c.0.s8 %v781
        %v783 = vperm.slane %v779, %v782
        %v784 = vrot.slane %v606, 4
        %v785 = vsel %vm555, %v784, %v604
        %v787 = vunpack.c.l.s4 1983009808
        %v788 = vunpack.c.0.s8 %v787
        %v789 = vperm.slane %v785, %v788
        %v790 = vsel %vm555, %v609, %v598
        %v792 = vunpack.c.l.s4 1983009808
        %v793 = vunpack.c.0.s8 %v792
        %v794 = vperm.slane %v790, %v793
        %v795 = vrot.slane %v610, 4
        %v796 = vsel %vm555, %v795, %v608
        %v798 = vunpack.c.l.s4 1983009808
        %v799 = vunpack.c.0.s8 %v798
        %v800 = vperm.slane %v796, %v799
        %v801 = vrot.slane %v789, 4
        %v802 = vsel %vm555, %v801, %v783
        %v803 = vrot.slane %v783, 4
        %v804 = vsel %vm555, %v789, %v803
        %v806 = vunpack.c.l.s4 1934713408
        %v807 = vunpack.c.0.s8 %v806
        %v808 = vperm.slane %v802, %v807
        %v810 = vunpack.c.l.s4 1934713408
        %v811 = vunpack.c.0.s8 %v810
        %v812 = vperm.slane %v804, %v811
        %v813 = vrot.slane %v800, 4
        %v814 = vsel %vm555, %v813, %v794
        %v815 = vrot.slane %v794, 4
        %v816 = vsel %vm555, %v800, %v815
        %v818 = vunpack.c.l.s4 1934713408
        %v819 = vunpack.c.0.s8 %v818
        %v820 = vperm.slane %v814, %v819
        %v822 = vunpack.c.l.s4 1934713408
        %v823 = vunpack.c.0.s8 %v822
        %v824 = vperm.slane %v816, %v823
        %v825 = vrot.slane %v820, 4
        %v826 = vsel %vm555, %v825, %v808
        %v827 = vrot.slane %v808, 4
        %v828 = vsel %vm555, %v820, %v827
        %v829 = vrot.slane %v824, 4
        %v830 = vsel %vm555, %v829, %v812
        %v831 = vrot.slane %v812, 4
        %v832 = vsel %vm555, %v824, %v831
        %v833 = vsel %vm555, %v661, %v642
        %v835 = vunpack.c.l.s4 1983009808
        %v836 = vunpack.c.0.s8 %v835
        %v837 = vperm.slane %v833, %v836
        %v838 = vrot.slane %v662, 4
        %v839 = vsel %vm555, %v838, %v660
        %v841 = vunpack.c.l.s4 1983009808
        %v842 = vunpack.c.0.s8 %v841
        %v843 = vperm.slane %v839, %v842
        %v844 = vsel %vm555, %v665, %v654
        %v846 = vunpack.c.l.s4 1983009808
        %v847 = vunpack.c.0.s8 %v846
        %v848 = vperm.slane %v844, %v847
        %v849 = vrot.slane %v666, 4
        %v850 = vsel %vm555, %v849, %v664
        %v852 = vunpack.c.l.s4 1983009808
        %v853 = vunpack.c.0.s8 %v852
        %v854 = vperm.slane %v850, %v853
        %v855 = vrot.slane %v843, 4
        %v856 = vsel %vm555, %v855, %v837
        %v857 = vrot.slane %v837, 4
        %v858 = vsel %vm555, %v843, %v857
        %v860 = vunpack.c.l.s4 1934713408
        %v861 = vunpack.c.0.s8 %v860
        %v862 = vperm.slane %v856, %v861
        %v864 = vunpack.c.l.s4 1934713408
        %v865 = vunpack.c.0.s8 %v864
        %v866 = vperm.slane %v858, %v865
        %v867 = vrot.slane %v854, 4
        %v868 = vsel %vm555, %v867, %v848
        %v869 = vrot.slane %v848, 4
        %v870 = vsel %vm555, %v854, %v869
        %v872 = vunpack.c.l.s4 1934713408
        %v873 = vunpack.c.0.s8 %v872
        %v874 = vperm.slane %v868, %v873
        %v876 = vunpack.c.l.s4 1934713408
        %v877 = vunpack.c.0.s8 %v876
        %v878 = vperm.slane %v870, %v877
        %v879 = vrot.slane %v874, 4
        %v880 = vsel %vm555, %v879, %v862
        %v881 = vrot.slane %v862, 4
        %v882 = vsel %vm555, %v874, %v881
        %v883 = vrot.slane %v878, 4
        %v884 = vsel %vm555, %v883, %v866
        %v885 = vrot.slane %v866, 4
        %v886 = vsel %vm555, %v878, %v885
        %v887 = vsel %vm555, %v717, %v698
        %v889 = vunpack.c.l.s4 1983009808
        %v890 = vunpack.c.0.s8 %v889
        %v891 = vperm.slane %v887, %v890
        %v892 = vrot.slane %v718, 4
        %v893 = vsel %vm555, %v892, %v716
        %v895 = vunpack.c.l.s4 1983009808
        %v896 = vunpack.c.0.s8 %v895
        %v897 = vperm.slane %v893, %v896
        %v898 = vsel %vm555, %v721, %v710
        %v900 = vunpack.c.l.s4 1983009808
        %v901 = vunpack.c.0.s8 %v900
        %v902 = vperm.slane %v898, %v901
        %v903 = vrot.slane %v722, 4
        %v904 = vsel %vm555, %v903, %v720
        %v906 = vunpack.c.l.s4 1983009808
        %v907 = vunpack.c.0.s8 %v906
        %v908 = vperm.slane %v904, %v907
        %v909 = vrot.slane %v897, 4
        %v910 = vsel %vm555, %v909, %v891
        %v911 = vrot.slane %v891, 4
        %v912 = vsel %vm555, %v897, %v911
        %v914 = vunpack.c.l.s4 1934713408
        %v915 = vunpack.c.0.s8 %v914
        %v916 = vperm.slane %v910, %v915
        %v918 = vunpack.c.l.s4 1934713408
        %v919 = vunpack.c.0.s8 %v918
        %v920 = vperm.slane %v912, %v919
        %v921 = vrot.slane %v908, 4
        %v922 = vsel %vm555, %v921, %v902
        %v923 = vrot.slane %v902, 4
        %v924 = vsel %vm555, %v908, %v923
        %v926 = vunpack.c.l.s4 1934713408
        %v927 = vunpack.c.0.s8 %v926
        %v928 = vperm.slane %v922, %v927
        %v930 = vunpack.c.l.s4 1934713408
        %v931 = vunpack.c.0.s8 %v930
        %v932 = vperm.slane %v924, %v931
        %v933 = vrot.slane %v928, 4
        %v934 = vsel %vm555, %v933, %v916
        %v935 = vrot.slane %v916, 4
        %v936 = vsel %vm555, %v928, %v935
        %v937 = vrot.slane %v932, 4
        %v938 = vsel %vm555, %v937, %v920
        %v939 = vrot.slane %v920, 4
        %v940 = vsel %vm555, %v932, %v939
        %v941 = vsel %vm555, %v773, %v754
        %v943 = vunpack.c.l.s4 1983009808
        %v944 = vunpack.c.0.s8 %v943
        %v945 = vperm.slane %v941, %v944
        %v946 = vrot.slane %v774, 4
        %v947 = vsel %vm555, %v946, %v772
        %v949 = vunpack.c.l.s4 1983009808
        %v950 = vunpack.c.0.s8 %v949
        %v951 = vperm.slane %v947, %v950
        %v952 = vsel %vm555, %v777, %v766
        %v954 = vunpack.c.l.s4 1983009808
        %v955 = vunpack.c.0.s8 %v954
        %v956 = vperm.slane %v952, %v955
        %v957 = vrot.slane %v778, 4
        %v958 = vsel %vm555, %v957, %v776
        %v960 = vunpack.c.l.s4 1983009808
        %v961 = vunpack.c.0.s8 %v960
        %v962 = vperm.slane %v958, %v961
        %v963 = vrot.slane %v951, 4
        %v964 = vsel %vm555, %v963, %v945
        %v965 = vrot.slane %v945, 4
        %v966 = vsel %vm555, %v951, %v965
        %v968 = vunpack.c.l.s4 1934713408
        %v969 = vunpack.c.0.s8 %v968
        %v970 = vperm.slane %v964, %v969
        %v972 = vunpack.c.l.s4 1934713408
        %v973 = vunpack.c.0.s8 %v972
        %v974 = vperm.slane %v966, %v973
        %v975 = vrot.slane %v962, 4
        %v976 = vsel %vm555, %v975, %v956
        %v977 = vrot.slane %v956, 4
        %v978 = vsel %vm555, %v962, %v977
        %v980 = vunpack.c.l.s4 1934713408
        %v981 = vunpack.c.0.s8 %v980
        %v982 = vperm.slane %v976, %v981
        %v984 = vunpack.c.l.s4 1934713408
        %v985 = vunpack.c.0.s8 %v984
        %v986 = vperm.slane %v978, %v985
        %v987 = vrot.slane %v982, 4
        %v988 = vsel %vm555, %v987, %v970
        %v989 = vrot.slane %v970, 4
        %v990 = vsel %vm555, %v982, %v989
        %v991 = vrot.slane %v986, 4
        %v992 = vsel %vm555, %v991, %v974
        %v993 = vrot.slane %v974, 4
        %v994 = vsel %vm555, %v986, %v993
        %v995 = vpack.c.bf16 %v826, %v826
        %v996 = vpack.c.bf16 %v880, %v880
        %v997 = vpack.c.bf16 %v934, %v934
        %v998 = vpack.c.bf16 %v988, %v988
        %v999 = vpack.c.bf16 %v828, %v828
        %v1000 = vpack.c.bf16 %v882, %v882
        %v1001 = vpack.c.bf16 %v936, %v936
        %v1002 = vpack.c.bf16 %v990, %v990
        %v1003 = vpack.c.bf16 %v830, %v830
        %v1004 = vpack.c.bf16 %v884, %v884
        %v1005 = vpack.c.bf16 %v938, %v938
        %v1006 = vpack.c.bf16 %v992, %v992
        %v1007 = vpack.c.bf16 %v832, %v832
        %v1008 = vpack.c.bf16 %v886, %v886
        %v1009 = vpack.c.bf16 %v940, %v940
        %v1010 = vpack.c.bf16 %v994, %v994
        %vm1011 = vcmask 60416
        %1012 = vst.msk [vmem:[%s324] sm:$0xf] %vm1011, %v995
        %1013 = vst.msk [vmem:[%s324 + $0x4] sm:$0xf] %vm1011, %v996
        %1014 = vst.msk [vmem:[%s324 + $0x8] sm:$0xf] %vm1011, %v997
        %1015 = vst.msk [vmem:[%s324 + $0xc] sm:$0xf] %vm1011, %v998
        %1016 = vst.msk [vmem:[%s324 + $0x10] sm:$0xf] %vm1011, %v999
        %1017 = vst.msk [vmem:[%s324 + $0x14] sm:$0xf] %vm1011, %v1000
        %1018 = vst.msk [vmem:[%s324 + $0x18] sm:$0xf] %vm1011, %v1001
        %1019 = vst.msk [vmem:[%s324 + $0x1c] sm:$0xf] %vm1011, %v1002
        %1020 = vst.msk [vmem:[%s324 + $0x20] sm:$0xf] %vm1011, %v1003
        %1021 = vst.msk [vmem:[%s324 + $0x24] sm:$0xf] %vm1011, %v1004
        %1022 = vst.msk [vmem:[%s324 + $0x28] sm:$0xf] %vm1011, %v1005
        %1023 = vst.msk [vmem:[%s324 + $0x2c] sm:$0xf] %vm1011, %v1006
        %1024 = vst.msk [vmem:[%s324 + $0x30] sm:$0xf] %vm1011, %v1007
        %1025 = vst.msk [vmem:[%s324 + $0x34] sm:$0xf] %vm1011, %v1008
        %1026 = vst.msk [vmem:[%s324 + $0x38] sm:$0xf] %vm1011, %v1009
        %1027 = vst.msk [vmem:[%s324 + $0x3c] sm:$0xf] %vm1011, %v1010
        %v1028 = vld [vmem:[%s4] sm:$0xf]
        %v1029 = vld [vmem:[%s4 + $0x4] sm:$0xf]
        %v1030 = vld [vmem:[%s4 + $0x8] sm:$0xf]
        %v1031 = vld [vmem:[%s4 + $0xc] sm:$0xf]
        %v1036 = vunpack.c.l.b16 %v1028
        %v1037 = vunpack.c.l.b16 %v1029
        %v1038 = vunpack.c.l.b16 %v1030
        %v1039 = vunpack.c.l.b16 %v1031
        %v1040 = vpack.c.b16 %v1037, %v1036
        %v1041 = vpack.c.b16 %v1039, %v1038
        %1044 = vmatpush.bf16.msra.mxu0 0
        %1045 = vmatpush.bf16.msra.mxu0 0
        %1046 = vmatpush.bf16.msra.mxu0 0
        %1047 = vmatpush.bf16.msra.mxu0 0
        %1048 = vmatpush.bf16.msra.mxu0 0
        %1049 = vmatpush.bf16.msra.mxu0 0
        %1050 = vmatpush.bf16.msra.mxu0 %v1041
        %1051 = vmatpush.bf16.msra.mxu0 %v1040
        %1052 = vmatmul.bf16.gmra.mxu0 %v486
        %v1053 = vpop.f32.mrf.mxu0
        %v1054 = vadd.f32 0.0, %v1053
        %v1055 = vpop.f32.mrf.mxu0
        %v1056 = vadd.f32 0.0, %v1055
        %1057 = vmatmul.bf16.gmra.mxu0 %v489
        %v1058 = vpop.f32.mrf.mxu0
        %v1059 = vadd.f32 0.0, %v1058
        %v1060 = vpop.f32.mrf.mxu0
        %v1061 = vadd.f32 0.0, %v1060
        %1062 = vdwg.mxu0
        %1067 = vrot.lane.b32.xlu0 %v1054, 120
        %v1068 = vpop.permute.xlu0 %1067
        %1069 = vrot.lane.b32.xlu0 %v1056, 120
        %v1070 = vpop.permute.xlu0 %1069
        %1071 = vrot.lane.b32.xlu0 %v1059, 120
        %v1072 = vpop.permute.xlu0 %1071
        %1073 = vrot.lane.b32.xlu0 %v1061, 120
        %v1074 = vpop.permute.xlu0 %1073
        %1079 = vrot.lane.b32.xlu0 %v1054, 112
        %v1080 = vpop.permute.xlu0 %1079
        %1081 = vrot.lane.b32.xlu0 %v1056, 112
        %v1082 = vpop.permute.xlu0 %1081
        %1083 = vrot.lane.b32.xlu0 %v1059, 112
        %v1084 = vpop.permute.xlu0 %1083
        %1085 = vrot.lane.b32.xlu0 %v1061, 112
        %v1086 = vpop.permute.xlu0 %1085
        %1091 = vrot.lane.b32.xlu0 %v1054, 104
        %v1092 = vpop.permute.xlu0 %1091
        %1093 = vrot.lane.b32.xlu0 %v1056, 104
        %v1094 = vpop.permute.xlu0 %1093
        %1095 = vrot.lane.b32.xlu0 %v1059, 104
        %v1096 = vpop.permute.xlu0 %1095
        %1097 = vrot.lane.b32.xlu0 %v1061, 104
        %v1098 = vpop.permute.xlu0 %1097
        %v1103 = vrot.slane %v1080, 4
        %v1104 = vsel %vm555, %v1103, %v1054
        %v1105 = vrot.slane %v1054, 4
        %v1106 = vsel %vm555, %v1080, %v1105
        %v1108 = vunpack.c.l.s4 1983009808
        %v1109 = vunpack.c.0.s8 %v1108
        %v1110 = vperm.slane %v1104, %v1109
        %v1112 = vunpack.c.l.s4 1983009808
        %v1113 = vunpack.c.0.s8 %v1112
        %v1114 = vperm.slane %v1106, %v1113
        %v1115 = vrot.slane %v1092, 4
        %v1116 = vsel %vm555, %v1115, %v1068
        %v1117 = vrot.slane %v1068, 4
        %v1118 = vsel %vm555, %v1092, %v1117
        %v1120 = vunpack.c.l.s4 1983009808
        %v1121 = vunpack.c.0.s8 %v1120
        %v1122 = vperm.slane %v1116, %v1121
        %v1124 = vunpack.c.l.s4 1983009808
        %v1125 = vunpack.c.0.s8 %v1124
        %v1126 = vperm.slane %v1118, %v1125
        %v1127 = vrot.slane %v1122, 4
        %v1128 = vsel %vm555, %v1127, %v1110
        %v1129 = vrot.slane %v1110, 4
        %v1130 = vsel %vm555, %v1122, %v1129
        %v1132 = vunpack.c.l.s4 1934713408
        %v1133 = vunpack.c.0.s8 %v1132
        %v1134 = vperm.slane %v1128, %v1133
        %v1136 = vunpack.c.l.s4 1934713408
        %v1137 = vunpack.c.0.s8 %v1136
        %v1138 = vperm.slane %v1130, %v1137
        %v1139 = vrot.slane %v1126, 4
        %v1140 = vsel %vm555, %v1139, %v1114
        %v1141 = vrot.slane %v1114, 4
        %v1142 = vsel %vm555, %v1126, %v1141
        %v1144 = vunpack.c.l.s4 1934713408
        %v1145 = vunpack.c.0.s8 %v1144
        %v1146 = vperm.slane %v1140, %v1145
        %v1148 = vunpack.c.l.s4 1934713408
        %v1149 = vunpack.c.0.s8 %v1148
        %v1150 = vperm.slane %v1142, %v1149
        %v1151 = vrot.slane %v1134, 4
        %v1152 = vsel %vm555, 0.0, %v1151
        %v1153 = vrot.slane %v1138, 4
        %v1154 = vsel %vm555, 0.0, %v1153
        %v1155 = vrot.slane %v1146, 4
        %v1156 = vsel %vm555, 0.0, %v1155
        %v1157 = vrot.slane %v1150, 4
        %v1158 = vsel %vm555, 0.0, %v1157
        %v1159 = vrot.slane %v1082, 4
        %v1160 = vsel %vm555, %v1159, %v1056
        %v1161 = vrot.slane %v1056, 4
        %v1162 = vsel %vm555, %v1082, %v1161
        %v1164 = vunpack.c.l.s4 1983009808
        %v1165 = vunpack.c.0.s8 %v1164
        %v1166 = vperm.slane %v1160, %v1165
        %v1168 = vunpack.c.l.s4 1983009808
        %v1169 = vunpack.c.0.s8 %v1168
        %v1170 = vperm.slane %v1162, %v1169
        %v1171 = vrot.slane %v1094, 4
        %v1172 = vsel %vm555, %v1171, %v1070
        %v1173 = vrot.slane %v1070, 4
        %v1174 = vsel %vm555, %v1094, %v1173
        %v1176 = vunpack.c.l.s4 1983009808
        %v1177 = vunpack.c.0.s8 %v1176
        %v1178 = vperm.slane %v1172, %v1177
        %v1180 = vunpack.c.l.s4 1983009808
        %v1181 = vunpack.c.0.s8 %v1180
        %v1182 = vperm.slane %v1174, %v1181
        %v1183 = vrot.slane %v1178, 4
        %v1184 = vsel %vm555, %v1183, %v1166
        %v1185 = vrot.slane %v1166, 4
        %v1186 = vsel %vm555, %v1178, %v1185
        %v1188 = vunpack.c.l.s4 1934713408
        %v1189 = vunpack.c.0.s8 %v1188
        %v1190 = vperm.slane %v1184, %v1189
        %v1192 = vunpack.c.l.s4 1934713408
        %v1193 = vunpack.c.0.s8 %v1192
        %v1194 = vperm.slane %v1186, %v1193
        %v1195 = vrot.slane %v1182, 4
        %v1196 = vsel %vm555, %v1195, %v1170
        %v1197 = vrot.slane %v1170, 4
        %v1198 = vsel %vm555, %v1182, %v1197
        %v1200 = vunpack.c.l.s4 1934713408
        %v1201 = vunpack.c.0.s8 %v1200
        %v1202 = vperm.slane %v1196, %v1201
        %v1204 = vunpack.c.l.s4 1934713408
        %v1205 = vunpack.c.0.s8 %v1204
        %v1206 = vperm.slane %v1198, %v1205
        %v1207 = vrot.slane %v1190, 4
        %v1208 = vsel %vm555, 0.0, %v1207
        %v1209 = vrot.slane %v1194, 4
        %v1210 = vsel %vm555, 0.0, %v1209
        %v1211 = vrot.slane %v1202, 4
        %v1212 = vsel %vm555, 0.0, %v1211
        %v1213 = vrot.slane %v1206, 4
        %v1214 = vsel %vm555, 0.0, %v1213
        %v1215 = vrot.slane %v1084, 4
        %v1216 = vsel %vm555, %v1215, %v1059
        %v1217 = vrot.slane %v1059, 4
        %v1218 = vsel %vm555, %v1084, %v1217
        %v1220 = vunpack.c.l.s4 1983009808
        %v1221 = vunpack.c.0.s8 %v1220
        %v1222 = vperm.slane %v1216, %v1221
        %v1224 = vunpack.c.l.s4 1983009808
        %v1225 = vunpack.c.0.s8 %v1224
        %v1226 = vperm.slane %v1218, %v1225
        %v1227 = vrot.slane %v1096, 4
        %v1228 = vsel %vm555, %v1227, %v1072
        %v1229 = vrot.slane %v1072, 4
        %v1230 = vsel %vm555, %v1096, %v1229
        %v1232 = vunpack.c.l.s4 1983009808
        %v1233 = vunpack.c.0.s8 %v1232
        %v1234 = vperm.slane %v1228, %v1233
        %v1236 = vunpack.c.l.s4 1983009808
        %v1237 = vunpack.c.0.s8 %v1236
        %v1238 = vperm.slane %v1230, %v1237
        %v1239 = vrot.slane %v1234, 4
        %v1240 = vsel %vm555, %v1239, %v1222
        %v1241 = vrot.slane %v1222, 4
        %v1242 = vsel %vm555, %v1234, %v1241
        %v1244 = vunpack.c.l.s4 1934713408
        %v1245 = vunpack.c.0.s8 %v1244
        %v1246 = vperm.slane %v1240, %v1245
        %v1248 = vunpack.c.l.s4 1934713408
        %v1249 = vunpack.c.0.s8 %v1248
        %v1250 = vperm.slane %v1242, %v1249
        %v1251 = vrot.slane %v1238, 4
        %v1252 = vsel %vm555, %v1251, %v1226
        %v1253 = vrot.slane %v1226, 4
        %v1254 = vsel %vm555, %v1238, %v1253
        %v1256 = vunpack.c.l.s4 1934713408
        %v1257 = vunpack.c.0.s8 %v1256
        %v1258 = vperm.slane %v1252, %v1257
        %v1260 = vunpack.c.l.s4 1934713408
        %v1261 = vunpack.c.0.s8 %v1260
        %v1262 = vperm.slane %v1254, %v1261
        %v1263 = vrot.slane %v1246, 4
        %v1264 = vsel %vm555, 0.0, %v1263
        %v1265 = vrot.slane %v1250, 4
        %v1266 = vsel %vm555, 0.0, %v1265
        %v1267 = vrot.slane %v1258, 4
        %v1268 = vsel %vm555, 0.0, %v1267
        %v1269 = vrot.slane %v1262, 4
        %v1270 = vsel %vm555, 0.0, %v1269
        %v1271 = vrot.slane %v1086, 4
        %v1272 = vsel %vm555, %v1271, %v1061
        %v1273 = vrot.slane %v1061, 4
        %v1274 = vsel %vm555, %v1086, %v1273
        %v1276 = vunpack.c.l.s4 1983009808
        %v1277 = vunpack.c.0.s8 %v1276
        %v1278 = vperm.slane %v1272, %v1277
        %v1280 = vunpack.c.l.s4 1983009808
        %v1281 = vunpack.c.0.s8 %v1280
        %v1282 = vperm.slane %v1274, %v1281
        %v1283 = vrot.slane %v1098, 4
        %v1284 = vsel %vm555, %v1283, %v1074
        %v1285 = vrot.slane %v1074, 4
        %v1286 = vsel %vm555, %v1098, %v1285
        %v1288 = vunpack.c.l.s4 1983009808
        %v1289 = vunpack.c.0.s8 %v1288
        %v1290 = vperm.slane %v1284, %v1289
        %v1292 = vunpack.c.l.s4 1983009808
        %v1293 = vunpack.c.0.s8 %v1292
        %v1294 = vperm.slane %v1286, %v1293
        %v1295 = vrot.slane %v1290, 4
        %v1296 = vsel %vm555, %v1295, %v1278
        %v1297 = vrot.slane %v1278, 4
        %v1298 = vsel %vm555, %v1290, %v1297
        %v1300 = vunpack.c.l.s4 1934713408
        %v1301 = vunpack.c.0.s8 %v1300
        %v1302 = vperm.slane %v1296, %v1301
        %v1304 = vunpack.c.l.s4 1934713408
        %v1305 = vunpack.c.0.s8 %v1304
        %v1306 = vperm.slane %v1298, %v1305
        %v1307 = vrot.slane %v1294, 4
        %v1308 = vsel %vm555, %v1307, %v1282
        %v1309 = vrot.slane %v1282, 4
        %v1310 = vsel %vm555, %v1294, %v1309
        %v1312 = vunpack.c.l.s4 1934713408
        %v1313 = vunpack.c.0.s8 %v1312
        %v1314 = vperm.slane %v1308, %v1313
        %v1316 = vunpack.c.l.s4 1934713408
        %v1317 = vunpack.c.0.s8 %v1316
        %v1318 = vperm.slane %v1310, %v1317
        %v1319 = vrot.slane %v1302, 4
        %v1320 = vsel %vm555, 0.0, %v1319
        %v1321 = vrot.slane %v1306, 4
        %v1322 = vsel %vm555, 0.0, %v1321
        %v1323 = vrot.slane %v1314, 4
        %v1324 = vsel %vm555, 0.0, %v1323
        %v1325 = vrot.slane %v1318, 4
        %v1326 = vsel %vm555, 0.0, %v1325
        %v1327 = vsel %vm555, %v1153, %v1134
        %v1329 = vunpack.c.l.s4 1983009808
        %v1330 = vunpack.c.0.s8 %v1329
        %v1331 = vperm.slane %v1327, %v1330
        %v1332 = vrot.slane %v1154, 4
        %v1333 = vsel %vm555, %v1332, %v1152
        %v1335 = vunpack.c.l.s4 1983009808
        %v1336 = vunpack.c.0.s8 %v1335
        %v1337 = vperm.slane %v1333, %v1336
        %v1338 = vsel %vm555, %v1157, %v1146
        %v1340 = vunpack.c.l.s4 1983009808
        %v1341 = vunpack.c.0.s8 %v1340
        %v1342 = vperm.slane %v1338, %v1341
        %v1343 = vrot.slane %v1158, 4
        %v1344 = vsel %vm555, %v1343, %v1156
        %v1346 = vunpack.c.l.s4 1983009808
        %v1347 = vunpack.c.0.s8 %v1346
        %v1348 = vperm.slane %v1344, %v1347
        %v1349 = vrot.slane %v1337, 4
        %v1350 = vsel %vm555, %v1349, %v1331
        %v1351 = vrot.slane %v1331, 4
        %v1352 = vsel %vm555, %v1337, %v1351
        %v1354 = vunpack.c.l.s4 1934713408
        %v1355 = vunpack.c.0.s8 %v1354
        %v1356 = vperm.slane %v1350, %v1355
        %v1358 = vunpack.c.l.s4 1934713408
        %v1359 = vunpack.c.0.s8 %v1358
        %v1360 = vperm.slane %v1352, %v1359
        %v1361 = vrot.slane %v1348, 4
        %v1362 = vsel %vm555, %v1361, %v1342
        %v1363 = vrot.slane %v1342, 4
        %v1364 = vsel %vm555, %v1348, %v1363
        %v1366 = vunpack.c.l.s4 1934713408
        %v1367 = vunpack.c.0.s8 %v1366
        %v1368 = vperm.slane %v1362, %v1367
        %v1370 = vunpack.c.l.s4 1934713408
        %v1371 = vunpack.c.0.s8 %v1370
        %v1372 = vperm.slane %v1364, %v1371
        %v1373 = vrot.slane %v1368, 4
        %v1374 = vsel %vm555, %v1373, %v1356
        %v1375 = vrot.slane %v1356, 4
        %v1376 = vsel %vm555, %v1368, %v1375
        %v1377 = vrot.slane %v1372, 4
        %v1378 = vsel %vm555, %v1377, %v1360
        %v1379 = vrot.slane %v1360, 4
        %v1380 = vsel %vm555, %v1372, %v1379
        %v1381 = vsel %vm555, %v1209, %v1190
        %v1383 = vunpack.c.l.s4 1983009808
        %v1384 = vunpack.c.0.s8 %v1383
        %v1385 = vperm.slane %v1381, %v1384
        %v1386 = vrot.slane %v1210, 4
        %v1387 = vsel %vm555, %v1386, %v1208
        %v1389 = vunpack.c.l.s4 1983009808
        %v1390 = vunpack.c.0.s8 %v1389
        %v1391 = vperm.slane %v1387, %v1390
        %v1392 = vsel %vm555, %v1213, %v1202
        %v1394 = vunpack.c.l.s4 1983009808
        %v1395 = vunpack.c.0.s8 %v1394
        %v1396 = vperm.slane %v1392, %v1395
        %v1397 = vrot.slane %v1214, 4
        %v1398 = vsel %vm555, %v1397, %v1212
        %v1400 = vunpack.c.l.s4 1983009808
        %v1401 = vunpack.c.0.s8 %v1400
        %v1402 = vperm.slane %v1398, %v1401
        %v1403 = vrot.slane %v1391, 4
        %v1404 = vsel %vm555, %v1403, %v1385
        %v1405 = vrot.slane %v1385, 4
        %v1406 = vsel %vm555, %v1391, %v1405
        %v1408 = vunpack.c.l.s4 1934713408
        %v1409 = vunpack.c.0.s8 %v1408
        %v1410 = vperm.slane %v1404, %v1409
        %v1412 = vunpack.c.l.s4 1934713408
        %v1413 = vunpack.c.0.s8 %v1412
        %v1414 = vperm.slane %v1406, %v1413
        %v1415 = vrot.slane %v1402, 4
        %v1416 = vsel %vm555, %v1415, %v1396
        %v1417 = vrot.slane %v1396, 4
        %v1418 = vsel %vm555, %v1402, %v1417
        %v1420 = vunpack.c.l.s4 1934713408
        %v1421 = vunpack.c.0.s8 %v1420
        %v1422 = vperm.slane %v1416, %v1421
        %v1424 = vunpack.c.l.s4 1934713408
        %v1425 = vunpack.c.0.s8 %v1424
        %v1426 = vperm.slane %v1418, %v1425
        %v1427 = vrot.slane %v1422, 4
        %v1428 = vsel %vm555, %v1427, %v1410
        %v1429 = vrot.slane %v1410, 4
        %v1430 = vsel %vm555, %v1422, %v1429
        %v1431 = vrot.slane %v1426, 4
        %v1432 = vsel %vm555, %v1431, %v1414
        %v1433 = vrot.slane %v1414, 4
        %v1434 = vsel %vm555, %v1426, %v1433
        %v1435 = vsel %vm555, %v1265, %v1246
        %v1437 = vunpack.c.l.s4 1983009808
        %v1438 = vunpack.c.0.s8 %v1437
        %v1439 = vperm.slane %v1435, %v1438
        %v1440 = vrot.slane %v1266, 4
        %v1441 = vsel %vm555, %v1440, %v1264
        %v1443 = vunpack.c.l.s4 1983009808
        %v1444 = vunpack.c.0.s8 %v1443
        %v1445 = vperm.slane %v1441, %v1444
        %v1446 = vsel %vm555, %v1269, %v1258
        %v1448 = vunpack.c.l.s4 1983009808
        %v1449 = vunpack.c.0.s8 %v1448
        %v1450 = vperm.slane %v1446, %v1449
        %v1451 = vrot.slane %v1270, 4
        %v1452 = vsel %vm555, %v1451, %v1268
        %v1454 = vunpack.c.l.s4 1983009808
        %v1455 = vunpack.c.0.s8 %v1454
        %v1456 = vperm.slane %v1452, %v1455
        %v1457 = vrot.slane %v1445, 4
        %v1458 = vsel %vm555, %v1457, %v1439
        %v1459 = vrot.slane %v1439, 4
        %v1460 = vsel %vm555, %v1445, %v1459
        %v1462 = vunpack.c.l.s4 1934713408
        %v1463 = vunpack.c.0.s8 %v1462
        %v1464 = vperm.slane %v1458, %v1463
        %v1466 = vunpack.c.l.s4 1934713408
        %v1467 = vunpack.c.0.s8 %v1466
        %v1468 = vperm.slane %v1460, %v1467
        %v1469 = vrot.slane %v1456, 4
        %v1470 = vsel %vm555, %v1469, %v1450
        %v1471 = vrot.slane %v1450, 4
        %v1472 = vsel %vm555, %v1456, %v1471
        %v1474 = vunpack.c.l.s4 1934713408
        %v1475 = vunpack.c.0.s8 %v1474
        %v1476 = vperm.slane %v1470, %v1475
        %v1478 = vunpack.c.l.s4 1934713408
        %v1479 = vunpack.c.0.s8 %v1478
        %v1480 = vperm.slane %v1472, %v1479
        %v1481 = vrot.slane %v1476, 4
        %v1482 = vsel %vm555, %v1481, %v1464
        %v1483 = vrot.slane %v1464, 4
        %v1484 = vsel %vm555, %v1476, %v1483
        %v1485 = vrot.slane %v1480, 4
        %v1486 = vsel %vm555, %v1485, %v1468
        %v1487 = vrot.slane %v1468, 4
        %v1488 = vsel %vm555, %v1480, %v1487
        %v1489 = vsel %vm555, %v1321, %v1302
        %v1491 = vunpack.c.l.s4 1983009808
        %v1492 = vunpack.c.0.s8 %v1491
        %v1493 = vperm.slane %v1489, %v1492
        %v1494 = vrot.slane %v1322, 4
        %v1495 = vsel %vm555, %v1494, %v1320
        %v1497 = vunpack.c.l.s4 1983009808
        %v1498 = vunpack.c.0.s8 %v1497
        %v1499 = vperm.slane %v1495, %v1498
        %v1500 = vsel %vm555, %v1325, %v1314
        %v1502 = vunpack.c.l.s4 1983009808
        %v1503 = vunpack.c.0.s8 %v1502
        %v1504 = vperm.slane %v1500, %v1503
        %v1505 = vrot.slane %v1326, 4
        %v1506 = vsel %vm555, %v1505, %v1324
        %v1508 = vunpack.c.l.s4 1983009808
        %v1509 = vunpack.c.0.s8 %v1508
        %v1510 = vperm.slane %v1506, %v1509
        %v1511 = vrot.slane %v1499, 4
        %v1512 = vsel %vm555, %v1511, %v1493
        %v1513 = vrot.slane %v1493, 4
        %v1514 = vsel %vm555, %v1499, %v1513
        %v1516 = vunpack.c.l.s4 1934713408
        %v1517 = vunpack.c.0.s8 %v1516
        %v1518 = vperm.slane %v1512, %v1517
        %v1520 = vunpack.c.l.s4 1934713408
        %v1521 = vunpack.c.0.s8 %v1520
        %v1522 = vperm.slane %v1514, %v1521
        %v1523 = vrot.slane %v1510, 4
        %v1524 = vsel %vm555, %v1523, %v1504
        %v1525 = vrot.slane %v1504, 4
        %v1526 = vsel %vm555, %v1510, %v1525
        %v1528 = vunpack.c.l.s4 1934713408
        %v1529 = vunpack.c.0.s8 %v1528
        %v1530 = vperm.slane %v1524, %v1529
        %v1532 = vunpack.c.l.s4 1934713408
        %v1533 = vunpack.c.0.s8 %v1532
        %v1534 = vperm.slane %v1526, %v1533
        %v1535 = vrot.slane %v1530, 4
        %v1536 = vsel %vm555, %v1535, %v1518
        %v1537 = vrot.slane %v1518, 4
        %v1538 = vsel %vm555, %v1530, %v1537
        %v1539 = vrot.slane %v1534, 4
        %v1540 = vsel %vm555, %v1539, %v1522
        %v1541 = vrot.slane %v1522, 4
        %v1542 = vsel %vm555, %v1534, %v1541
        %v1543 = vpack.c.bf16 %v1374, %v1374
        %v1544 = vpack.c.bf16 %v1428, %v1428
        %v1545 = vpack.c.bf16 %v1482, %v1482
        %v1546 = vpack.c.bf16 %v1536, %v1536
        %v1547 = vpack.c.bf16 %v1376, %v1376
        %v1548 = vpack.c.bf16 %v1430, %v1430
        %v1549 = vpack.c.bf16 %v1484, %v1484
        %v1550 = vpack.c.bf16 %v1538, %v1538
        %v1551 = vpack.c.bf16 %v1378, %v1378
        %v1552 = vpack.c.bf16 %v1432, %v1432
        %v1553 = vpack.c.bf16 %v1486, %v1486
        %v1554 = vpack.c.bf16 %v1540, %v1540
        %v1555 = vpack.c.bf16 %v1380, %v1380
        %v1556 = vpack.c.bf16 %v1434, %v1434
        %v1557 = vpack.c.bf16 %v1488, %v1488
        %v1558 = vpack.c.bf16 %v1542, %v1542
        %1559 = vst.msk [vmem:[%s330] sm:$0xf] %vm1011, %v1543
        %1560 = vst.msk [vmem:[%s330 + $0x4] sm:$0xf] %vm1011, %v1544
        %1561 = vst.msk [vmem:[%s330 + $0x8] sm:$0xf] %vm1011, %v1545
        %1562 = vst.msk [vmem:[%s330 + $0xc] sm:$0xf] %vm1011, %v1546
        %1563 = vst.msk [vmem:[%s330 + $0x10] sm:$0xf] %vm1011, %v1547
        %1564 = vst.msk [vmem:[%s330 + $0x14] sm:$0xf] %vm1011, %v1548
        %1565 = vst.msk [vmem:[%s330 + $0x18] sm:$0xf] %vm1011, %v1549
        %1566 = vst.msk [vmem:[%s330 + $0x1c] sm:$0xf] %vm1011, %v1550
        %1567 = vst.msk [vmem:[%s330 + $0x20] sm:$0xf] %vm1011, %v1551
        %1568 = vst.msk [vmem:[%s330 + $0x24] sm:$0xf] %vm1011, %v1552
        %1569 = vst.msk [vmem:[%s330 + $0x28] sm:$0xf] %vm1011, %v1553
        %1570 = vst.msk [vmem:[%s330 + $0x2c] sm:$0xf] %vm1011, %v1554
        %1571 = vst.msk [vmem:[%s330 + $0x30] sm:$0xf] %vm1011, %v1555
        %1572 = vst.msk [vmem:[%s330 + $0x34] sm:$0xf] %vm1011, %v1556
        %1573 = vst.msk [vmem:[%s330 + $0x38] sm:$0xf] %vm1011, %v1557
        %1574 = vst.msk [vmem:[%s330 + $0x3c] sm:$0xf] %vm1011, %v1558
        %v1575 = vld [vmem:[%s5] sm:$0xf]
        %v1576 = vld [vmem:[%s5 + $0x4] sm:$0xf]
        %v1577 = vld [vmem:[%s5 + $0x8] sm:$0xf]
        %v1578 = vld [vmem:[%s5 + $0xc] sm:$0xf]
        %v1583 = vunpack.c.l.b16 %v1575
        %v1584 = vunpack.c.l.b16 %v1576
        %v1585 = vunpack.c.l.b16 %v1577
        %v1586 = vunpack.c.l.b16 %v1578
        %v1587 = vpack.c.b16 %v1584, %v1583
        %v1588 = vpack.c.b16 %v1586, %v1585
        %1591 = vmatpush.bf16.msra.mxu0 0
        %1592 = vmatpush.bf16.msra.mxu0 0
        %1593 = vmatpush.bf16.msra.mxu0 0
        %1594 = vmatpush.bf16.msra.mxu0 0
        %1595 = vmatpush.bf16.msra.mxu0 0
        %1596 = vmatpush.bf16.msra.mxu0 0
        %1597 = vmatpush.bf16.msra.mxu0 %v1588
        %1598 = vmatpush.bf16.msra.mxu0 %v1587
        %1599 = vmatmul.bf16.gmra.mxu0 %v486
        %v1600 = vpop.f32.mrf.mxu0
        %v1601 = vadd.f32 0.0, %v1600
        %v1602 = vpop.f32.mrf.mxu0
        %v1603 = vadd.f32 0.0, %v1602
        %1604 = vmatmul.bf16.gmra.mxu0 %v489
        %v1605 = vpop.f32.mrf.mxu0
        %v1606 = vadd.f32 0.0, %v1605
        %v1607 = vpop.f32.mrf.mxu0
        %v1608 = vadd.f32 0.0, %v1607
        %1609 = vdwg.mxu0
        %1614 = vrot.lane.b32.xlu0 %v1601, 120
        %v1615 = vpop.permute.xlu0 %1614
        %1616 = vrot.lane.b32.xlu0 %v1603, 120
        %v1617 = vpop.permute.xlu0 %1616
        %1618 = vrot.lane.b32.xlu0 %v1606, 120
        %v1619 = vpop.permute.xlu0 %1618
        %1620 = vrot.lane.b32.xlu0 %v1608, 120
        %v1621 = vpop.permute.xlu0 %1620
        %1626 = vrot.lane.b32.xlu0 %v1601, 112
        %v1627 = vpop.permute.xlu0 %1626
        %1628 = vrot.lane.b32.xlu0 %v1603, 112
        %v1629 = vpop.permute.xlu0 %1628
        %1630 = vrot.lane.b32.xlu0 %v1606, 112
        %v1631 = vpop.permute.xlu0 %1630
        %1632 = vrot.lane.b32.xlu0 %v1608, 112
        %v1633 = vpop.permute.xlu0 %1632
        %1638 = vrot.lane.b32.xlu0 %v1601, 104
        %v1639 = vpop.permute.xlu0 %1638
        %1640 = vrot.lane.b32.xlu0 %v1603, 104
        %v1641 = vpop.permute.xlu0 %1640
        %1642 = vrot.lane.b32.xlu0 %v1606, 104
        %v1643 = vpop.permute.xlu0 %1642
        %1644 = vrot.lane.b32.xlu0 %v1608, 104
        %v1645 = vpop.permute.xlu0 %1644
        %v1650 = vrot.slane %v1627, 4
        %v1651 = vsel %vm555, %v1650, %v1601
        %v1652 = vrot.slane %v1601, 4
        %v1653 = vsel %vm555, %v1627, %v1652
        %v1655 = vunpack.c.l.s4 1983009808
        %v1656 = vunpack.c.0.s8 %v1655
        %v1657 = vperm.slane %v1651, %v1656
        %v1659 = vunpack.c.l.s4 1983009808
        %v1660 = vunpack.c.0.s8 %v1659
        %v1661 = vperm.slane %v1653, %v1660
        %v1662 = vrot.slane %v1639, 4
        %v1663 = vsel %vm555, %v1662, %v1615
        %v1664 = vrot.slane %v1615, 4
        %v1665 = vsel %vm555, %v1639, %v1664
        %v1667 = vunpack.c.l.s4 1983009808
        %v1668 = vunpack.c.0.s8 %v1667
        %v1669 = vperm.slane %v1663, %v1668
        %v1671 = vunpack.c.l.s4 1983009808
        %v1672 = vunpack.c.0.s8 %v1671
        %v1673 = vperm.slane %v1665, %v1672
        %v1674 = vrot.slane %v1669, 4
        %v1675 = vsel %vm555, %v1674, %v1657
        %v1676 = vrot.slane %v1657, 4
        %v1677 = vsel %vm555, %v1669, %v1676
        %v1679 = vunpack.c.l.s4 1934713408
        %v1680 = vunpack.c.0.s8 %v1679
        %v1681 = vperm.slane %v1675, %v1680
        %v1683 = vunpack.c.l.s4 1934713408
        %v1684 = vunpack.c.0.s8 %v1683
        %v1685 = vperm.slane %v1677, %v1684
        %v1686 = vrot.slane %v1673, 4
        %v1687 = vsel %vm555, %v1686, %v1661
        %v1688 = vrot.slane %v1661, 4
        %v1689 = vsel %vm555, %v1673, %v1688
        %v1691 = vunpack.c.l.s4 1934713408
        %v1692 = vunpack.c.0.s8 %v1691
        %v1693 = vperm.slane %v1687, %v1692
        %v1695 = vunpack.c.l.s4 1934713408
        %v1696 = vunpack.c.0.s8 %v1695
        %v1697 = vperm.slane %v1689, %v1696
        %v1698 = vrot.slane %v1681, 4
        %v1699 = vsel %vm555, 0.0, %v1698
        %v1700 = vrot.slane %v1685, 4
        %v1701 = vsel %vm555, 0.0, %v1700
        %v1702 = vrot.slane %v1693, 4
        %v1703 = vsel %vm555, 0.0, %v1702
        %v1704 = vrot.slane %v1697, 4
        %v1705 = vsel %vm555, 0.0, %v1704
        %v1706 = vrot.slane %v1629, 4
        %v1707 = vsel %vm555, %v1706, %v1603
        %v1708 = vrot.slane %v1603, 4
        %v1709 = vsel %vm555, %v1629, %v1708
        %v1711 = vunpack.c.l.s4 1983009808
        %v1712 = vunpack.c.0.s8 %v1711
        %v1713 = vperm.slane %v1707, %v1712
        %v1715 = vunpack.c.l.s4 1983009808
        %v1716 = vunpack.c.0.s8 %v1715
        %v1717 = vperm.slane %v1709, %v1716
        %v1718 = vrot.slane %v1641, 4
        %v1719 = vsel %vm555, %v1718, %v1617
        %v1720 = vrot.slane %v1617, 4
        %v1721 = vsel %vm555, %v1641, %v1720
        %v1723 = vunpack.c.l.s4 1983009808
        %v1724 = vunpack.c.0.s8 %v1723
        %v1725 = vperm.slane %v1719, %v1724
        %v1727 = vunpack.c.l.s4 1983009808
        %v1728 = vunpack.c.0.s8 %v1727
        %v1729 = vperm.slane %v1721, %v1728
        %v1730 = vrot.slane %v1725, 4
        %v1731 = vsel %vm555, %v1730, %v1713
        %v1732 = vrot.slane %v1713, 4
        %v1733 = vsel %vm555, %v1725, %v1732
        %v1735 = vunpack.c.l.s4 1934713408
        %v1736 = vunpack.c.0.s8 %v1735
        %v1737 = vperm.slane %v1731, %v1736
        %v1739 = vunpack.c.l.s4 1934713408
        %v1740 = vunpack.c.0.s8 %v1739
        %v1741 = vperm.slane %v1733, %v1740
        %v1742 = vrot.slane %v1729, 4
        %v1743 = vsel %vm555, %v1742, %v1717
        %v1744 = vrot.slane %v1717, 4
        %v1745 = vsel %vm555, %v1729, %v1744
        %v1747 = vunpack.c.l.s4 1934713408
        %v1748 = vunpack.c.0.s8 %v1747
        %v1749 = vperm.slane %v1743, %v1748
        %v1751 = vunpack.c.l.s4 1934713408
        %v1752 = vunpack.c.0.s8 %v1751
        %v1753 = vperm.slane %v1745, %v1752
        %v1754 = vrot.slane %v1737, 4
        %v1755 = vsel %vm555, 0.0, %v1754
        %v1756 = vrot.slane %v1741, 4
        %v1757 = vsel %vm555, 0.0, %v1756
        %v1758 = vrot.slane %v1749, 4
        %v1759 = vsel %vm555, 0.0, %v1758
        %v1760 = vrot.slane %v1753, 4
        %v1761 = vsel %vm555, 0.0, %v1760
        %v1762 = vrot.slane %v1631, 4
        %v1763 = vsel %vm555, %v1762, %v1606
        %v1764 = vrot.slane %v1606, 4
        %v1765 = vsel %vm555, %v1631, %v1764
        %v1767 = vunpack.c.l.s4 1983009808
        %v1768 = vunpack.c.0.s8 %v1767
        %v1769 = vperm.slane %v1763, %v1768
        %v1771 = vunpack.c.l.s4 1983009808
        %v1772 = vunpack.c.0.s8 %v1771
        %v1773 = vperm.slane %v1765, %v1772
        %v1774 = vrot.slane %v1643, 4
        %v1775 = vsel %vm555, %v1774, %v1619
        %v1776 = vrot.slane %v1619, 4
        %v1777 = vsel %vm555, %v1643, %v1776
        %v1779 = vunpack.c.l.s4 1983009808
        %v1780 = vunpack.c.0.s8 %v1779
        %v1781 = vperm.slane %v1775, %v1780
        %v1783 = vunpack.c.l.s4 1983009808
        %v1784 = vunpack.c.0.s8 %v1783
        %v1785 = vperm.slane %v1777, %v1784
        %v1786 = vrot.slane %v1781, 4
        %v1787 = vsel %vm555, %v1786, %v1769
        %v1788 = vrot.slane %v1769, 4
        %v1789 = vsel %vm555, %v1781, %v1788
        %v1791 = vunpack.c.l.s4 1934713408
        %v1792 = vunpack.c.0.s8 %v1791
        %v1793 = vperm.slane %v1787, %v1792
        %v1795 = vunpack.c.l.s4 1934713408
        %v1796 = vunpack.c.0.s8 %v1795
        %v1797 = vperm.slane %v1789, %v1796
        %v1798 = vrot.slane %v1785, 4
        %v1799 = vsel %vm555, %v1798, %v1773
        %v1800 = vrot.slane %v1773, 4
        %v1801 = vsel %vm555, %v1785, %v1800
        %v1803 = vunpack.c.l.s4 1934713408
        %v1804 = vunpack.c.0.s8 %v1803
        %v1805 = vperm.slane %v1799, %v1804
        %v1807 = vunpack.c.l.s4 1934713408
        %v1808 = vunpack.c.0.s8 %v1807
        %v1809 = vperm.slane %v1801, %v1808
        %v1810 = vrot.slane %v1793, 4
        %v1811 = vsel %vm555, 0.0, %v1810
        %v1812 = vrot.slane %v1797, 4
        %v1813 = vsel %vm555, 0.0, %v1812
        %v1814 = vrot.slane %v1805, 4
        %v1815 = vsel %vm555, 0.0, %v1814
        %v1816 = vrot.slane %v1809, 4
        %v1817 = vsel %vm555, 0.0, %v1816
        %v1818 = vrot.slane %v1633, 4
        %v1819 = vsel %vm555, %v1818, %v1608
        %v1820 = vrot.slane %v1608, 4
        %v1821 = vsel %vm555, %v1633, %v1820
        %v1823 = vunpack.c.l.s4 1983009808
        %v1824 = vunpack.c.0.s8 %v1823
        %v1825 = vperm.slane %v1819, %v1824
        %v1827 = vunpack.c.l.s4 1983009808
        %v1828 = vunpack.c.0.s8 %v1827
        %v1829 = vperm.slane %v1821, %v1828
        %v1830 = vrot.slane %v1645, 4
        %v1831 = vsel %vm555, %v1830, %v1621
        %v1832 = vrot.slane %v1621, 4
        %v1833 = vsel %vm555, %v1645, %v1832
        %v1835 = vunpack.c.l.s4 1983009808
        %v1836 = vunpack.c.0.s8 %v1835
        %v1837 = vperm.slane %v1831, %v1836
        %v1839 = vunpack.c.l.s4 1983009808
        %v1840 = vunpack.c.0.s8 %v1839
        %v1841 = vperm.slane %v1833, %v1840
        %v1842 = vrot.slane %v1837, 4
        %v1843 = vsel %vm555, %v1842, %v1825
        %v1844 = vrot.slane %v1825, 4
        %v1845 = vsel %vm555, %v1837, %v1844
        %v1847 = vunpack.c.l.s4 1934713408
        %v1848 = vunpack.c.0.s8 %v1847
        %v1849 = vperm.slane %v1843, %v1848
        %v1851 = vunpack.c.l.s4 1934713408
        %v1852 = vunpack.c.0.s8 %v1851
        %v1853 = vperm.slane %v1845, %v1852
        %v1854 = vrot.slane %v1841, 4
        %v1855 = vsel %vm555, %v1854, %v1829
        %v1856 = vrot.slane %v1829, 4
        %v1857 = vsel %vm555, %v1841, %v1856
        %v1859 = vunpack.c.l.s4 1934713408
        %v1860 = vunpack.c.0.s8 %v1859
        %v1861 = vperm.slane %v1855, %v1860
        %v1863 = vunpack.c.l.s4 1934713408
        %v1864 = vunpack.c.0.s8 %v1863
        %v1865 = vperm.slane %v1857, %v1864
        %v1866 = vrot.slane %v1849, 4
        %v1867 = vsel %vm555, 0.0, %v1866
        %v1868 = vrot.slane %v1853, 4
        %v1869 = vsel %vm555, 0.0, %v1868
        %v1870 = vrot.slane %v1861, 4
        %v1871 = vsel %vm555, 0.0, %v1870
        %v1872 = vrot.slane %v1865, 4
        %v1873 = vsel %vm555, 0.0, %v1872
        %v1874 = vsel %vm555, %v1700, %v1681
        %v1876 = vunpack.c.l.s4 1983009808
        %v1877 = vunpack.c.0.s8 %v1876
        %v1878 = vperm.slane %v1874, %v1877
        %v1879 = vrot.slane %v1701, 4
        %v1880 = vsel %vm555, %v1879, %v1699
        %v1882 = vunpack.c.l.s4 1983009808
        %v1883 = vunpack.c.0.s8 %v1882
        %v1884 = vperm.slane %v1880, %v1883
        %v1885 = vsel %vm555, %v1704, %v1693
        %v1887 = vunpack.c.l.s4 1983009808
        %v1888 = vunpack.c.0.s8 %v1887
        %v1889 = vperm.slane %v1885, %v1888
        %v1890 = vrot.slane %v1705, 4
        %v1891 = vsel %vm555, %v1890, %v1703
        %v1893 = vunpack.c.l.s4 1983009808
        %v1894 = vunpack.c.0.s8 %v1893
        %v1895 = vperm.slane %v1891, %v1894
        %v1896 = vrot.slane %v1884, 4
        %v1897 = vsel %vm555, %v1896, %v1878
        %v1898 = vrot.slane %v1878, 4
        %v1899 = vsel %vm555, %v1884, %v1898
        %v1901 = vunpack.c.l.s4 1934713408
        %v1902 = vunpack.c.0.s8 %v1901
        %v1903 = vperm.slane %v1897, %v1902
        %v1905 = vunpack.c.l.s4 1934713408
        %v1906 = vunpack.c.0.s8 %v1905
        %v1907 = vperm.slane %v1899, %v1906
        %v1908 = vrot.slane %v1895, 4
        %v1909 = vsel %vm555, %v1908, %v1889
        %v1910 = vrot.slane %v1889, 4
        %v1911 = vsel %vm555, %v1895, %v1910
        %v1913 = vunpack.c.l.s4 1934713408
        %v1914 = vunpack.c.0.s8 %v1913
        %v1915 = vperm.slane %v1909, %v1914
        %v1917 = vunpack.c.l.s4 1934713408
        %v1918 = vunpack.c.0.s8 %v1917
        %v1919 = vperm.slane %v1911, %v1918
        %v1920 = vrot.slane %v1915, 4
        %v1921 = vsel %vm555, %v1920, %v1903
        %v1922 = vrot.slane %v1903, 4
        %v1923 = vsel %vm555, %v1915, %v1922
        %v1924 = vrot.slane %v1919, 4
        %v1925 = vsel %vm555, %v1924, %v1907
        %v1926 = vrot.slane %v1907, 4
        %v1927 = vsel %vm555, %v1919, %v1926
        %v1928 = vsel %vm555, %v1756, %v1737
        %v1930 = vunpack.c.l.s4 1983009808
        %v1931 = vunpack.c.0.s8 %v1930
        %v1932 = vperm.slane %v1928, %v1931
        %v1933 = vrot.slane %v1757, 4
        %v1934 = vsel %vm555, %v1933, %v1755
        %v1936 = vunpack.c.l.s4 1983009808
        %v1937 = vunpack.c.0.s8 %v1936
        %v1938 = vperm.slane %v1934, %v1937
        %v1939 = vsel %vm555, %v1760, %v1749
        %v1941 = vunpack.c.l.s4 1983009808
        %v1942 = vunpack.c.0.s8 %v1941
        %v1943 = vperm.slane %v1939, %v1942
        %v1944 = vrot.slane %v1761, 4
        %v1945 = vsel %vm555, %v1944, %v1759
        %v1947 = vunpack.c.l.s4 1983009808
        %v1948 = vunpack.c.0.s8 %v1947
        %v1949 = vperm.slane %v1945, %v1948
        %v1950 = vrot.slane %v1938, 4
        %v1951 = vsel %vm555, %v1950, %v1932
        %v1952 = vrot.slane %v1932, 4
        %v1953 = vsel %vm555, %v1938, %v1952
        %v1955 = vunpack.c.l.s4 1934713408
        %v1956 = vunpack.c.0.s8 %v1955
        %v1957 = vperm.slane %v1951, %v1956
        %v1959 = vunpack.c.l.s4 1934713408
        %v1960 = vunpack.c.0.s8 %v1959
        %v1961 = vperm.slane %v1953, %v1960
        %v1962 = vrot.slane %v1949, 4
        %v1963 = vsel %vm555, %v1962, %v1943
        %v1964 = vrot.slane %v1943, 4
        %v1965 = vsel %vm555, %v1949, %v1964
        %v1967 = vunpack.c.l.s4 1934713408
        %v1968 = vunpack.c.0.s8 %v1967
        %v1969 = vperm.slane %v1963, %v1968
        %v1971 = vunpack.c.l.s4 1934713408
        %v1972 = vunpack.c.0.s8 %v1971
        %v1973 = vperm.slane %v1965, %v1972
        %v1974 = vrot.slane %v1969, 4
        %v1975 = vsel %vm555, %v1974, %v1957
        %v1976 = vrot.slane %v1957, 4
        %v1977 = vsel %vm555, %v1969, %v1976
        %v1978 = vrot.slane %v1973, 4
        %v1979 = vsel %vm555, %v1978, %v1961
        %v1980 = vrot.slane %v1961, 4
        %v1981 = vsel %vm555, %v1973, %v1980
        %v1982 = vsel %vm555, %v1812, %v1793
        %v1984 = vunpack.c.l.s4 1983009808
        %v1985 = vunpack.c.0.s8 %v1984
        %v1986 = vperm.slane %v1982, %v1985
        %v1987 = vrot.slane %v1813, 4
        %v1988 = vsel %vm555, %v1987, %v1811
        %v1990 = vunpack.c.l.s4 1983009808
        %v1991 = vunpack.c.0.s8 %v1990
        %v1992 = vperm.slane %v1988, %v1991
        %v1993 = vsel %vm555, %v1816, %v1805
        %v1995 = vunpack.c.l.s4 1983009808
        %v1996 = vunpack.c.0.s8 %v1995
        %v1997 = vperm.slane %v1993, %v1996
        %v1998 = vrot.slane %v1817, 4
        %v1999 = vsel %vm555, %v1998, %v1815
        %v2001 = vunpack.c.l.s4 1983009808
        %v2002 = vunpack.c.0.s8 %v2001
        %v2003 = vperm.slane %v1999, %v2002
        %v2004 = vrot.slane %v1992, 4
        %v2005 = vsel %vm555, %v2004, %v1986
        %v2006 = vrot.slane %v1986, 4
        %v2007 = vsel %vm555, %v1992, %v2006
        %v2009 = vunpack.c.l.s4 1934713408
        %v2010 = vunpack.c.0.s8 %v2009
        %v2011 = vperm.slane %v2005, %v2010
        %v2013 = vunpack.c.l.s4 1934713408
        %v2014 = vunpack.c.0.s8 %v2013
        %v2015 = vperm.slane %v2007, %v2014
        %v2016 = vrot.slane %v2003, 4
        %v2017 = vsel %vm555, %v2016, %v1997
        %v2018 = vrot.slane %v1997, 4
        %v2019 = vsel %vm555, %v2003, %v2018
        %v2021 = vunpack.c.l.s4 1934713408
        %v2022 = vunpack.c.0.s8 %v2021
        %v2023 = vperm.slane %v2017, %v2022
        %v2025 = vunpack.c.l.s4 1934713408
        %v2026 = vunpack.c.0.s8 %v2025
        %v2027 = vperm.slane %v2019, %v2026
        %v2028 = vrot.slane %v2023, 4
        %v2029 = vsel %vm555, %v2028, %v2011
        %v2030 = vrot.slane %v2011, 4
        %v2031 = vsel %vm555, %v2023, %v2030
        %v2032 = vrot.slane %v2027, 4
        %v2033 = vsel %vm555, %v2032, %v2015
        %v2034 = vrot.slane %v2015, 4
        %v2035 = vsel %vm555, %v2027, %v2034
        %v2036 = vsel %vm555, %v1868, %v1849
        %v2038 = vunpack.c.l.s4 1983009808
        %v2039 = vunpack.c.0.s8 %v2038
        %v2040 = vperm.slane %v2036, %v2039
        %v2041 = vrot.slane %v1869, 4
        %v2042 = vsel %vm555, %v2041, %v1867
        %v2044 = vunpack.c.l.s4 1983009808
        %v2045 = vunpack.c.0.s8 %v2044
        %v2046 = vperm.slane %v2042, %v2045
        %v2047 = vsel %vm555, %v1872, %v1861
        %v2049 = vunpack.c.l.s4 1983009808
        %v2050 = vunpack.c.0.s8 %v2049
        %v2051 = vperm.slane %v2047, %v2050
        %v2052 = vrot.slane %v1873, 4
        %v2053 = vsel %vm555, %v2052, %v1871
        %v2055 = vunpack.c.l.s4 1983009808
        %v2056 = vunpack.c.0.s8 %v2055
        %v2057 = vperm.slane %v2053, %v2056
        %v2058 = vrot.slane %v2046, 4
        %v2059 = vsel %vm555, %v2058, %v2040
        %v2060 = vrot.slane %v2040, 4
        %v2061 = vsel %vm555, %v2046, %v2060
        %v2063 = vunpack.c.l.s4 1934713408
        %v2064 = vunpack.c.0.s8 %v2063
        %v2065 = vperm.slane %v2059, %v2064
        %v2067 = vunpack.c.l.s4 1934713408
        %v2068 = vunpack.c.0.s8 %v2067
        %v2069 = vperm.slane %v2061, %v2068
        %v2070 = vrot.slane %v2057, 4
        %v2071 = vsel %vm555, %v2070, %v2051
        %v2072 = vrot.slane %v2051, 4
        %v2073 = vsel %vm555, %v2057, %v2072
        %v2075 = vunpack.c.l.s4 1934713408
        %v2076 = vunpack.c.0.s8 %v2075
        %v2077 = vperm.slane %v2071, %v2076
        %v2079 = vunpack.c.l.s4 1934713408
        %v2080 = vunpack.c.0.s8 %v2079
        %v2081 = vperm.slane %v2073, %v2080
        %v2082 = vrot.slane %v2077, 4
        %v2083 = vsel %vm555, %v2082, %v2065
        %v2084 = vrot.slane %v2065, 4
        %v2085 = vsel %vm555, %v2077, %v2084
        %v2086 = vrot.slane %v2081, 4
        %v2087 = vsel %vm555, %v2086, %v2069
        %v2088 = vrot.slane %v2069, 4
        %v2089 = vsel %vm555, %v2081, %v2088
        %v2090 = vpack.c.bf16 %v1921, %v1921
        %v2091 = vpack.c.bf16 %v1975, %v1975
        %v2092 = vpack.c.bf16 %v2029, %v2029
        %v2093 = vpack.c.bf16 %v2083, %v2083
        %v2094 = vpack.c.bf16 %v1923, %v1923
        %v2095 = vpack.c.bf16 %v1977, %v1977
        %v2096 = vpack.c.bf16 %v2031, %v2031
        %v2097 = vpack.c.bf16 %v2085, %v2085
        %v2098 = vpack.c.bf16 %v1925, %v1925
        %v2099 = vpack.c.bf16 %v1979, %v1979
        %v2100 = vpack.c.bf16 %v2033, %v2033
        %v2101 = vpack.c.bf16 %v2087, %v2087
        %v2102 = vpack.c.bf16 %v1927, %v1927
        %v2103 = vpack.c.bf16 %v1981, %v1981
        %v2104 = vpack.c.bf16 %v2035, %v2035
        %v2105 = vpack.c.bf16 %v2089, %v2089
        %2106 = vst.msk [vmem:[%s336] sm:$0xf] %vm1011, %v2090
        %2107 = vst.msk [vmem:[%s336 + $0x4] sm:$0xf] %vm1011, %v2091
        %2108 = vst.msk [vmem:[%s336 + $0x8] sm:$0xf] %vm1011, %v2092
        %2109 = vst.msk [vmem:[%s336 + $0xc] sm:$0xf] %vm1011, %v2093
        %2110 = vst.msk [vmem:[%s336 + $0x10] sm:$0xf] %vm1011, %v2094
        %2111 = vst.msk [vmem:[%s336 + $0x14] sm:$0xf] %vm1011, %v2095
        %2112 = vst.msk [vmem:[%s336 + $0x18] sm:$0xf] %vm1011, %v2096
        %2113 = vst.msk [vmem:[%s336 + $0x1c] sm:$0xf] %vm1011, %v2097
        %2114 = vst.msk [vmem:[%s336 + $0x20] sm:$0xf] %vm1011, %v2098
        %2115 = vst.msk [vmem:[%s336 + $0x24] sm:$0xf] %vm1011, %v2099
        %2116 = vst.msk [vmem:[%s336 + $0x28] sm:$0xf] %vm1011, %v2100
        %2117 = vst.msk [vmem:[%s336 + $0x2c] sm:$0xf] %vm1011, %v2101
        %2118 = vst.msk [vmem:[%s336 + $0x30] sm:$0xf] %vm1011, %v2102
        %2119 = vst.msk [vmem:[%s336 + $0x34] sm:$0xf] %vm1011, %v2103
        %2120 = vst.msk [vmem:[%s336 + $0x38] sm:$0xf] %vm1011, %v2104
        %2121 = vst.msk [vmem:[%s336 + $0x3c] sm:$0xf] %vm1011, %v2105
        %s2122 = sand.u32 %s175, 1
        %s2123 = sand.u32 %s175, 1
        %s2124 = smul.addr %s2123, 64
        %s2125 = scalar_lea.vmem [#allocation2], %s2124
        %s2126 = sand.u32 %s203, 1
        %s2127 = sand.u32 %s203, 1
        %s2128 = smul.addr %s2127, 64
        %s2129 = scalar_lea.vmem [#allocation3], %s2128
        %s2130 = sand.u32 %s231, 1
        %s2131 = sand.u32 %s231, 1
        %s2132 = smul.addr %s2131, 64
        %s2133 = scalar_lea.vmem [#allocation4], %s2132
        // Predicated region
        $region45: #{tpu_custom_call.1} parent=43 // pred_check
          %p2134 = pneg %p185
        $region46: #{tpu_custom_call.1} parent=43 // pred_check_branch
          %2136 = sbr.rel (%p2134) target = $region48
        $region47: #{tpu_custom_call.1} parent=43 // pred_region
          %s2137 = smul.u32 4, %s25
          %s2138 = smul.addr %s24, 32
          %s2139 = sadd.s32 %s2137, %s2138
          %s2140 = smul.addr %s2139, 4
          %s2141 = scalar_lea.vmem %s6, %s2140
          // Predicated region
          $region49: #{tpu_custom_call.1} parent=47 // pred_check
            _
          $region50: #{tpu_custom_call.1} parent=47 // pred_check_branch
            %2143 = sbr.rel (0) target = $region52
          $region51: #{tpu_custom_call.1} parent=47 // pred_region
            // Predicated region
            $region53: #{tpu_custom_call.1} parent=51 // pred_check
              _
            $region54: #{tpu_custom_call.1} parent=51 // pred_check_branch
              %2145 = sbr.rel target = $region56
            $region55: #{tpu_custom_call.1} parent=51 // pred_region
              // Predicated region
              $region68: #{tpu_custom_call.1} parent=55 // pred_check
                _
              $region69: #{tpu_custom_call.1} parent=55 // pred_check_branch
                %2191 = sbr.rel (0) target = $region71
              $region70: #{tpu_custom_call.1} parent=55 // pred_region
                loop: start=0, step=1, limit=1
                $region72: #{tpu_custom_call.1} parent=70 // loop_pre_header
                  _
                $region73: #{tpu_custom_call.1} parent=70 // loop_header
                  %s2193 = sphi 0, %s2197
                  %p2194 = scmp.ge.s32.totalorder %s2193, 1
                  %s2198 = sphi %s2125, %s2125
                  %s2199 = sphi %s2141, %s2141
                $region74: #{tpu_custom_call.1} parent=70 // loop_header_branch
                  %2196 = sbr.rel (%p2194) target = $region78
                $region75: #{tpu_custom_call.1} parent=70 // loop_body
                  _
                $region76: #{tpu_custom_call.1} parent=70 // loop_footer
                  %s2197 = sadd.s32 1, %s2193
                $region77: #{tpu_custom_call.1} parent=70 // loop_footer_branch
                  %2192 = sbr.rel target = $region73
                $region78: #{tpu_custom_call.1} parent=70 // loop_exit
                  _
                %s2201 = ssub.s32 16, 1
                loop: start=0, step=1, limit=1
                $region79: #{tpu_custom_call.1} parent=70 // loop_pre_header
                  _
                $region80: #{tpu_custom_call.1} parent=70 // loop_header
                  %s2203 = sphi 0, %s2207
                  %p2204 = scmp.ge.s32.totalorder %s2203, 1
                  %s2208 = sphi %s2125, %s2125
                  %s2209 = sphi %s2141, %s2141
                $region81: #{tpu_custom_call.1} parent=70 // loop_header_branch
                  %2206 = sbr.rel (%p2204) target = $region85
                $region82: #{tpu_custom_call.1} parent=70 // loop_body
                  %v2210 = vld [vmem:[%s2208] sm:%s2201]
                  %2211 = vst [vmem:[%s2209] sm:%s2201] %v2210
                  %v2212 = vld [vmem:[%s2208 + $0x4] sm:%s2201]
                  %2213 = vst [vmem:[%s2209 + $0x4] sm:%s2201] %v2212
                  %v2214 = vld [vmem:[%s2208 + $0x8] sm:%s2201]
                  %2215 = vst [vmem:[%s2209 + $0x8] sm:%s2201] %v2214
                  %v2216 = vld [vmem:[%s2208 + $0xc] sm:%s2201]
                  %2217 = vst [vmem:[%s2209 + $0xc] sm:%s2201] %v2216
                  %v2218 = vld [vmem:[%s2208 + $0x10] sm:%s2201]
                  %2219 = vst [vmem:[%s2209 + $0x20] sm:%s2201] %v2218
                  %v2220 = vld [vmem:[%s2208 + $0x14] sm:%s2201]
                  %2221 = vst [vmem:[%s2209 + $0x24] sm:%s2201] %v2220
                  %v2222 = vld [vmem:[%s2208 + $0x18] sm:%s2201]
                  %2223 = vst [vmem:[%s2209 + $0x28] sm:%s2201] %v2222
                  %v2224 = vld [vmem:[%s2208 + $0x1c] sm:%s2201]
                  %2225 = vst [vmem:[%s2209 + $0x2c] sm:%s2201] %v2224
                  %v2226 = vld [vmem:[%s2208 + $0x20] sm:%s2201]
                  %2227 = vst [vmem:[%s2209 + $0x40] sm:%s2201] %v2226
                  %v2228 = vld [vmem:[%s2208 + $0x24] sm:%s2201]
                  %2229 = vst [vmem:[%s2209 + $0x44] sm:%s2201] %v2228
                  %v2230 = vld [vmem:[%s2208 + $0x28] sm:%s2201]
                  %2231 = vst [vmem:[%s2209 + $0x48] sm:%s2201] %v2230
                  %v2232 = vld [vmem:[%s2208 + $0x2c] sm:%s2201]
                  %2233 = vst [vmem:[%s2209 + $0x4c] sm:%s2201] %v2232
                  %v2234 = vld [vmem:[%s2208 + $0x30] sm:%s2201]
                  %2235 = vst [vmem:[%s2209 + $0x60] sm:%s2201] %v2234
                  %v2236 = vld [vmem:[%s2208 + $0x34] sm:%s2201]
                  %2237 = vst [vmem:[%s2209 + $0x64] sm:%s2201] %v2236
                  %v2238 = vld [vmem:[%s2208 + $0x38] sm:%s2201]
                  %2239 = vst [vmem:[%s2209 + $0x68] sm:%s2201] %v2238
                  %v2240 = vld [vmem:[%s2208 + $0x3c] sm:%s2201]
                  %2241 = vst [vmem:[%s2209 + $0x6c] sm:%s2201] %v2240
                $region83: #{tpu_custom_call.1} parent=70 // loop_footer
                  %s2207 = sadd.s32 1, %s2203
                $region84: #{tpu_custom_call.1} parent=70 // loop_footer_branch
                  %2202 = sbr.rel target = $region80
                $region85: #{tpu_custom_call.1} parent=70 // loop_exit
                  _
              $region71: #{tpu_custom_call.1} parent=55 // pred_fallthru
                _
            $region56: #{tpu_custom_call.1} parent=51 // pred_fallthru
              _
            // Predicated region
            $region57: #{tpu_custom_call.1} parent=51 // pred_check
              _
            $region58: #{tpu_custom_call.1} parent=51 // pred_check_branch
              %2147 = sbr.rel (0) target = $region60
            $region59: #{tpu_custom_call.1} parent=51 // pred_region
              %s2149 = ssub.s32 16, 1
              loop: start=0, step=1, limit=1
              $region61: #{tpu_custom_call.1} parent=59 // loop_pre_header
                _
              $region62: #{tpu_custom_call.1} parent=59 // loop_header
                %s2151 = sphi 0, %s2155
                %p2152 = scmp.ge.s32.totalorder %s2151, 1
                %s2156 = sphi %s2125, %s2125
                %s2157 = sphi %s2141, %s2141
              $region63: #{tpu_custom_call.1} parent=59 // loop_header_branch
                %2154 = sbr.rel (%p2152) target = $region67
              $region64: #{tpu_custom_call.1} parent=59 // loop_body
                %v2158 = vld [vmem:[%s2156] sm:%s2149]
                %2159 = vst [vmem:[%s2157] sm:%s2149] %v2158
                %v2160 = vld [vmem:[%s2156 + $0x4] sm:%s2149]
                %2161 = vst [vmem:[%s2157 + $0x4] sm:%s2149] %v2160
                %v2162 = vld [vmem:[%s2156 + $0x8] sm:%s2149]
                %2163 = vst [vmem:[%s2157 + $0x8] sm:%s2149] %v2162
                %v2164 = vld [vmem:[%s2156 + $0xc] sm:%s2149]
                %2165 = vst [vmem:[%s2157 + $0xc] sm:%s2149] %v2164
                %v2166 = vld [vmem:[%s2156 + $0x10] sm:%s2149]
                %2167 = vst [vmem:[%s2157 + $0x20] sm:%s2149] %v2166
                %v2168 = vld [vmem:[%s2156 + $0x14] sm:%s2149]
                %2169 = vst [vmem:[%s2157 + $0x24] sm:%s2149] %v2168
                %v2170 = vld [vmem:[%s2156 + $0x18] sm:%s2149]
                %2171 = vst [vmem:[%s2157 + $0x28] sm:%s2149] %v2170
                %v2172 = vld [vmem:[%s2156 + $0x1c] sm:%s2149]
                %2173 = vst [vmem:[%s2157 + $0x2c] sm:%s2149] %v2172
                %v2174 = vld [vmem:[%s2156 + $0x20] sm:%s2149]
                %2175 = vst [vmem:[%s2157 + $0x40] sm:%s2149] %v2174
                %v2176 = vld [vmem:[%s2156 + $0x24] sm:%s2149]
                %2177 = vst [vmem:[%s2157 + $0x44] sm:%s2149] %v2176
                %v2178 = vld [vmem:[%s2156 + $0x28] sm:%s2149]
                %2179 = vst [vmem:[%s2157 + $0x48] sm:%s2149] %v2178
                %v2180 = vld [vmem:[%s2156 + $0x2c] sm:%s2149]
                %2181 = vst [vmem:[%s2157 + $0x4c] sm:%s2149] %v2180
                %v2182 = vld [vmem:[%s2156 + $0x30] sm:%s2149]
                %2183 = vst [vmem:[%s2157 + $0x60] sm:%s2149] %v2182
                %v2184 = vld [vmem:[%s2156 + $0x34] sm:%s2149]
                %2185 = vst [vmem:[%s2157 + $0x64] sm:%s2149] %v2184
                %v2186 = vld [vmem:[%s2156 + $0x38] sm:%s2149]
                %2187 = vst [vmem:[%s2157 + $0x68] sm:%s2149] %v2186
                %v2188 = vld [vmem:[%s2156 + $0x3c] sm:%s2149]
                %2189 = vst [vmem:[%s2157 + $0x6c] sm:%s2149] %v2188
              $region65: #{tpu_custom_call.1} parent=59 // loop_footer
                %s2155 = sadd.s32 1, %s2151
              $region66: #{tpu_custom_call.1} parent=59 // loop_footer_branch
                %2150 = sbr.rel target = $region62
              $region67: #{tpu_custom_call.1} parent=59 // loop_exit
                _
            $region60: #{tpu_custom_call.1} parent=51 // pred_fallthru
              _
          $region52: #{tpu_custom_call.1} parent=47 // pred_fallthru
            _
          %2242 = vnop
        $region48: #{tpu_custom_call.1} parent=43 // pred_fallthru
          _
        // Predicated region
        $region86: #{tpu_custom_call.1} parent=43 // pred_check
          %p2243 = pneg %p213
        $region87: #{tpu_custom_call.1} parent=43 // pred_check_branch
          %2245 = sbr.rel (%p2243) target = $region89
        $region88: #{tpu_custom_call.1} parent=43 // pred_region
          %s2246 = smul.u32 4, %s25
          %s2247 = smul.addr %s24, 32
          %s2248 = sadd.s32 %s2246, %s2247
          %s2249 = smul.addr %s2248, 4
          %s2250 = scalar_lea.vmem %s7, %s2249
          // Predicated region
          $region90: #{tpu_custom_call.1} parent=88 // pred_check
            _
          $region91: #{tpu_custom_call.1} parent=88 // pred_check_branch
            %2252 = sbr.rel (0) target = $region93
          $region92: #{tpu_custom_call.1} parent=88 // pred_region
            // Predicated region
            $region94: #{tpu_custom_call.1} parent=92 // pred_check
              _
            $region95: #{tpu_custom_call.1} parent=92 // pred_check_branch
              %2254 = sbr.rel target = $region97
            $region96: #{tpu_custom_call.1} parent=92 // pred_region
              // Predicated region
              $region109: #{tpu_custom_call.1} parent=96 // pred_check
                _
              $region110: #{tpu_custom_call.1} parent=96 // pred_check_branch
                %2300 = sbr.rel (0) target = $region112
              $region111: #{tpu_custom_call.1} parent=96 // pred_region
                loop: start=0, step=1, limit=1
                $region113: #{tpu_custom_call.1} parent=111 // loop_pre_header
                  _
                $region114: #{tpu_custom_call.1} parent=111 // loop_header
                  %s2302 = sphi 0, %s2306
                  %p2303 = scmp.ge.s32.totalorder %s2302, 1
                  %s2307 = sphi %s2129, %s2129
                  %s2308 = sphi %s2250, %s2250
                $region115: #{tpu_custom_call.1} parent=111 // loop_header_branch
                  %2305 = sbr.rel (%p2303) target = $region119
                $region116: #{tpu_custom_call.1} parent=111 // loop_body
                  _
                $region117: #{tpu_custom_call.1} parent=111 // loop_footer
                  %s2306 = sadd.s32 1, %s2302
                $region118: #{tpu_custom_call.1} parent=111 // loop_footer_branch
                  %2301 = sbr.rel target = $region114
                $region119: #{tpu_custom_call.1} parent=111 // loop_exit
                  _
                %s2310 = ssub.s32 16, 1
                loop: start=0, step=1, limit=1
                $region120: #{tpu_custom_call.1} parent=111 // loop_pre_header
                  _
                $region121: #{tpu_custom_call.1} parent=111 // loop_header
                  %s2312 = sphi 0, %s2316
                  %p2313 = scmp.ge.s32.totalorder %s2312, 1
                  %s2317 = sphi %s2129, %s2129
                  %s2318 = sphi %s2250, %s2250
                $region122: #{tpu_custom_call.1} parent=111 // loop_header_branch
                  %2315 = sbr.rel (%p2313) target = $region126
                $region123: #{tpu_custom_call.1} parent=111 // loop_body
                  %v2319 = vld [vmem:[%s2317] sm:%s2310]
                  %2320 = vst [vmem:[%s2318] sm:%s2310] %v2319
                  %v2321 = vld [vmem:[%s2317 + $0x4] sm:%s2310]
                  %2322 = vst [vmem:[%s2318 + $0x4] sm:%s2310] %v2321
                  %v2323 = vld [vmem:[%s2317 + $0x8] sm:%s2310]
                  %2324 = vst [vmem:[%s2318 + $0x8] sm:%s2310] %v2323
                  %v2325 = vld [vmem:[%s2317 + $0xc] sm:%s2310]
                  %2326 = vst [vmem:[%s2318 + $0xc] sm:%s2310] %v2325
                  %v2327 = vld [vmem:[%s2317 + $0x10] sm:%s2310]
                  %2328 = vst [vmem:[%s2318 + $0x20] sm:%s2310] %v2327
                  %v2329 = vld [vmem:[%s2317 + $0x14] sm:%s2310]
                  %2330 = vst [vmem:[%s2318 + $0x24] sm:%s2310] %v2329
                  %v2331 = vld [vmem:[%s2317 + $0x18] sm:%s2310]
                  %2332 = vst [vmem:[%s2318 + $0x28] sm:%s2310] %v2331
                  %v2333 = vld [vmem:[%s2317 + $0x1c] sm:%s2310]
                  %2334 = vst [vmem:[%s2318 + $0x2c] sm:%s2310] %v2333
                  %v2335 = vld [vmem:[%s2317 + $0x20] sm:%s2310]
                  %2336 = vst [vmem:[%s2318 + $0x40] sm:%s2310] %v2335
                  %v2337 = vld [vmem:[%s2317 + $0x24] sm:%s2310]
                  %2338 = vst [vmem:[%s2318 + $0x44] sm:%s2310] %v2337
                  %v2339 = vld [vmem:[%s2317 + $0x28] sm:%s2310]
                  %2340 = vst [vmem:[%s2318 + $0x48] sm:%s2310] %v2339
                  %v2341 = vld [vmem:[%s2317 + $0x2c] sm:%s2310]
                  %2342 = vst [vmem:[%s2318 + $0x4c] sm:%s2310] %v2341
                  %v2343 = vld [vmem:[%s2317 + $0x30] sm:%s2310]
                  %2344 = vst [vmem:[%s2318 + $0x60] sm:%s2310] %v2343
                  %v2345 = vld [vmem:[%s2317 + $0x34] sm:%s2310]
                  %2346 = vst [vmem:[%s2318 + $0x64] sm:%s2310] %v2345
                  %v2347 = vld [vmem:[%s2317 + $0x38] sm:%s2310]
                  %2348 = vst [vmem:[%s2318 + $0x68] sm:%s2310] %v2347
                  %v2349 = vld [vmem:[%s2317 + $0x3c] sm:%s2310]
                  %2350 = vst [vmem:[%s2318 + $0x6c] sm:%s2310] %v2349
                $region124: #{tpu_custom_call.1} parent=111 // loop_footer
                  %s2316 = sadd.s32 1, %s2312
                $region125: #{tpu_custom_call.1} parent=111 // loop_footer_branch
                  %2311 = sbr.rel target = $region121
                $region126: #{tpu_custom_call.1} parent=111 // loop_exit
                  _
              $region112: #{tpu_custom_call.1} parent=96 // pred_fallthru
                _
            $region97: #{tpu_custom_call.1} parent=92 // pred_fallthru
              _
            // Predicated region
            $region98: #{tpu_custom_call.1} parent=92 // pred_check
              _
            $region99: #{tpu_custom_call.1} parent=92 // pred_check_branch
              %2256 = sbr.rel (0) target = $region101
            $region100: #{tpu_custom_call.1} parent=92 // pred_region
              %s2258 = ssub.s32 16, 1
              loop: start=0, step=1, limit=1
              $region102: #{tpu_custom_call.1} parent=100 // loop_pre_header
                _
              $region103: #{tpu_custom_call.1} parent=100 // loop_header
                %s2260 = sphi 0, %s2264
                %p2261 = scmp.ge.s32.totalorder %s2260, 1
                %s2265 = sphi %s2129, %s2129
                %s2266 = sphi %s2250, %s2250
              $region104: #{tpu_custom_call.1} parent=100 // loop_header_branch
                %2263 = sbr.rel (%p2261) target = $region108
              $region105: #{tpu_custom_call.1} parent=100 // loop_body
                %v2267 = vld [vmem:[%s2265] sm:%s2258]
                %2268 = vst [vmem:[%s2266] sm:%s2258] %v2267
                %v2269 = vld [vmem:[%s2265 + $0x4] sm:%s2258]
                %2270 = vst [vmem:[%s2266 + $0x4] sm:%s2258] %v2269
                %v2271 = vld [vmem:[%s2265 + $0x8] sm:%s2258]
                %2272 = vst [vmem:[%s2266 + $0x8] sm:%s2258] %v2271
                %v2273 = vld [vmem:[%s2265 + $0xc] sm:%s2258]
                %2274 = vst [vmem:[%s2266 + $0xc] sm:%s2258] %v2273
                %v2275 = vld [vmem:[%s2265 + $0x10] sm:%s2258]
                %2276 = vst [vmem:[%s2266 + $0x20] sm:%s2258] %v2275
                %v2277 = vld [vmem:[%s2265 + $0x14] sm:%s2258]
                %2278 = vst [vmem:[%s2266 + $0x24] sm:%s2258] %v2277
                %v2279 = vld [vmem:[%s2265 + $0x18] sm:%s2258]
                %2280 = vst [vmem:[%s2266 + $0x28] sm:%s2258] %v2279
                %v2281 = vld [vmem:[%s2265 + $0x1c] sm:%s2258]
                %2282 = vst [vmem:[%s2266 + $0x2c] sm:%s2258] %v2281
                %v2283 = vld [vmem:[%s2265 + $0x20] sm:%s2258]
                %2284 = vst [vmem:[%s2266 + $0x40] sm:%s2258] %v2283
                %v2285 = vld [vmem:[%s2265 + $0x24] sm:%s2258]
                %2286 = vst [vmem:[%s2266 + $0x44] sm:%s2258] %v2285
                %v2287 = vld [vmem:[%s2265 + $0x28] sm:%s2258]
                %2288 = vst [vmem:[%s2266 + $0x48] sm:%s2258] %v2287
                %v2289 = vld [vmem:[%s2265 + $0x2c] sm:%s2258]
                %2290 = vst [vmem:[%s2266 + $0x4c] sm:%s2258] %v2289
                %v2291 = vld [vmem:[%s2265 + $0x30] sm:%s2258]
                %2292 = vst [vmem:[%s2266 + $0x60] sm:%s2258] %v2291
                %v2293 = vld [vmem:[%s2265 + $0x34] sm:%s2258]
                %2294 = vst [vmem:[%s2266 + $0x64] sm:%s2258] %v2293
                %v2295 = vld [vmem:[%s2265 + $0x38] sm:%s2258]
                %2296 = vst [vmem:[%s2266 + $0x68] sm:%s2258] %v2295
                %v2297 = vld [vmem:[%s2265 + $0x3c] sm:%s2258]
                %2298 = vst [vmem:[%s2266 + $0x6c] sm:%s2258] %v2297
              $region106: #{tpu_custom_call.1} parent=100 // loop_footer
                %s2264 = sadd.s32 1, %s2260
              $region107: #{tpu_custom_call.1} parent=100 // loop_footer_branch
                %2259 = sbr.rel target = $region103
              $region108: #{tpu_custom_call.1} parent=100 // loop_exit
                _
            $region101: #{tpu_custom_call.1} parent=92 // pred_fallthru
              _
          $region93: #{tpu_custom_call.1} parent=88 // pred_fallthru
            _
          %2351 = vnop
        $region89: #{tpu_custom_call.1} parent=43 // pred_fallthru
          _
        // Predicated region
        $region127: #{tpu_custom_call.1} parent=43 // pred_check
          %p2352 = pneg %p241
        $region128: #{tpu_custom_call.1} parent=43 // pred_check_branch
          %2354 = sbr.rel (%p2352) target = $region130
        $region129: #{tpu_custom_call.1} parent=43 // pred_region
          %s2355 = smul.u32 4, %s25
          %s2356 = smul.addr %s24, 32
          %s2357 = sadd.s32 %s2355, %s2356
          %s2358 = smul.addr %s2357, 4
          %s2359 = scalar_lea.vmem %s8, %s2358
          // Predicated region
          $region131: #{tpu_custom_call.1} parent=129 // pred_check
            _
          $region132: #{tpu_custom_call.1} parent=129 // pred_check_branch
            %2361 = sbr.rel (0) target = $region134
          $region133: #{tpu_custom_call.1} parent=129 // pred_region
            // Predicated region
            $region135: #{tpu_custom_call.1} parent=133 // pred_check
              _
            $region136: #{tpu_custom_call.1} parent=133 // pred_check_branch
              %2363 = sbr.rel target = $region138
            $region137: #{tpu_custom_call.1} parent=133 // pred_region
              // Predicated region
              $region150: #{tpu_custom_call.1} parent=137 // pred_check
                _
              $region151: #{tpu_custom_call.1} parent=137 // pred_check_branch
                %2409 = sbr.rel (0) target = $region153
              $region152: #{tpu_custom_call.1} parent=137 // pred_region
                loop: start=0, step=1, limit=1
                $region154: #{tpu_custom_call.1} parent=152 // loop_pre_header
                  _
                $region155: #{tpu_custom_call.1} parent=152 // loop_header
                  %s2411 = sphi 0, %s2415
                  %p2412 = scmp.ge.s32.totalorder %s2411, 1
                  %s2416 = sphi %s2133, %s2133
                  %s2417 = sphi %s2359, %s2359
                $region156: #{tpu_custom_call.1} parent=152 // loop_header_branch
                  %2414 = sbr.rel (%p2412) target = $region160
                $region157: #{tpu_custom_call.1} parent=152 // loop_body
                  _
                $region158: #{tpu_custom_call.1} parent=152 // loop_footer
                  %s2415 = sadd.s32 1, %s2411
                $region159: #{tpu_custom_call.1} parent=152 // loop_footer_branch
                  %2410 = sbr.rel target = $region155
                $region160: #{tpu_custom_call.1} parent=152 // loop_exit
                  _
                %s2419 = ssub.s32 16, 1
                loop: start=0, step=1, limit=1
                $region161: #{tpu_custom_call.1} parent=152 // loop_pre_header
                  _
                $region162: #{tpu_custom_call.1} parent=152 // loop_header
                  %s2421 = sphi 0, %s2425
                  %p2422 = scmp.ge.s32.totalorder %s2421, 1
                  %s2426 = sphi %s2133, %s2133
                  %s2427 = sphi %s2359, %s2359
                $region163: #{tpu_custom_call.1} parent=152 // loop_header_branch
                  %2424 = sbr.rel (%p2422) target = $region167
                $region164: #{tpu_custom_call.1} parent=152 // loop_body
                  %v2428 = vld [vmem:[%s2426] sm:%s2419]
                  %2429 = vst [vmem:[%s2427] sm:%s2419] %v2428
                  %v2430 = vld [vmem:[%s2426 + $0x4] sm:%s2419]
                  %2431 = vst [vmem:[%s2427 + $0x4] sm:%s2419] %v2430
                  %v2432 = vld [vmem:[%s2426 + $0x8] sm:%s2419]
                  %2433 = vst [vmem:[%s2427 + $0x8] sm:%s2419] %v2432
                  %v2434 = vld [vmem:[%s2426 + $0xc] sm:%s2419]
                  %2435 = vst [vmem:[%s2427 + $0xc] sm:%s2419] %v2434
                  %v2436 = vld [vmem:[%s2426 + $0x10] sm:%s2419]
                  %2437 = vst [vmem:[%s2427 + $0x20] sm:%s2419] %v2436
                  %v2438 = vld [vmem:[%s2426 + $0x14] sm:%s2419]
                  %2439 = vst [vmem:[%s2427 + $0x24] sm:%s2419] %v2438
                  %v2440 = vld [vmem:[%s2426 + $0x18] sm:%s2419]
                  %2441 = vst [vmem:[%s2427 + $0x28] sm:%s2419] %v2440
                  %v2442 = vld [vmem:[%s2426 + $0x1c] sm:%s2419]
                  %2443 = vst [vmem:[%s2427 + $0x2c] sm:%s2419] %v2442
                  %v2444 = vld [vmem:[%s2426 + $0x20] sm:%s2419]
                  %2445 = vst [vmem:[%s2427 + $0x40] sm:%s2419] %v2444
                  %v2446 = vld [vmem:[%s2426 + $0x24] sm:%s2419]
                  %2447 = vst [vmem:[%s2427 + $0x44] sm:%s2419] %v2446
                  %v2448 = vld [vmem:[%s2426 + $0x28] sm:%s2419]
                  %2449 = vst [vmem:[%s2427 + $0x48] sm:%s2419] %v2448
                  %v2450 = vld [vmem:[%s2426 + $0x2c] sm:%s2419]
                  %2451 = vst [vmem:[%s2427 + $0x4c] sm:%s2419] %v2450
                  %v2452 = vld [vmem:[%s2426 + $0x30] sm:%s2419]
                  %2453 = vst [vmem:[%s2427 + $0x60] sm:%s2419] %v2452
                  %v2454 = vld [vmem:[%s2426 + $0x34] sm:%s2419]
                  %2455 = vst [vmem:[%s2427 + $0x64] sm:%s2419] %v2454
                  %v2456 = vld [vmem:[%s2426 + $0x38] sm:%s2419]
                  %2457 = vst [vmem:[%s2427 + $0x68] sm:%s2419] %v2456
                  %v2458 = vld [vmem:[%s2426 + $0x3c] sm:%s2419]
                  %2459 = vst [vmem:[%s2427 + $0x6c] sm:%s2419] %v2458
                $region165: #{tpu_custom_call.1} parent=152 // loop_footer
                  %s2425 = sadd.s32 1, %s2421
                $region166: #{tpu_custom_call.1} parent=152 // loop_footer_branch
                  %2420 = sbr.rel target = $region162
                $region167: #{tpu_custom_call.1} parent=152 // loop_exit
                  _
              $region153: #{tpu_custom_call.1} parent=137 // pred_fallthru
                _
            $region138: #{tpu_custom_call.1} parent=133 // pred_fallthru
              _
            // Predicated region
            $region139: #{tpu_custom_call.1} parent=133 // pred_check
              _
            $region140: #{tpu_custom_call.1} parent=133 // pred_check_branch
              %2365 = sbr.rel (0) target = $region142
            $region141: #{tpu_custom_call.1} parent=133 // pred_region
              %s2367 = ssub.s32 16, 1
              loop: start=0, step=1, limit=1
              $region143: #{tpu_custom_call.1} parent=141 // loop_pre_header
                _
              $region144: #{tpu_custom_call.1} parent=141 // loop_header
                %s2369 = sphi 0, %s2373
                %p2370 = scmp.ge.s32.totalorder %s2369, 1
                %s2374 = sphi %s2133, %s2133
                %s2375 = sphi %s2359, %s2359
              $region145: #{tpu_custom_call.1} parent=141 // loop_header_branch
                %2372 = sbr.rel (%p2370) target = $region149
              $region146: #{tpu_custom_call.1} parent=141 // loop_body
                %v2376 = vld [vmem:[%s2374] sm:%s2367]
                %2377 = vst [vmem:[%s2375] sm:%s2367] %v2376
                %v2378 = vld [vmem:[%s2374 + $0x4] sm:%s2367]
                %2379 = vst [vmem:[%s2375 + $0x4] sm:%s2367] %v2378
                %v2380 = vld [vmem:[%s2374 + $0x8] sm:%s2367]
                %2381 = vst [vmem:[%s2375 + $0x8] sm:%s2367] %v2380
                %v2382 = vld [vmem:[%s2374 + $0xc] sm:%s2367]
                %2383 = vst [vmem:[%s2375 + $0xc] sm:%s2367] %v2382
                %v2384 = vld [vmem:[%s2374 + $0x10] sm:%s2367]
                %2385 = vst [vmem:[%s2375 + $0x20] sm:%s2367] %v2384
                %v2386 = vld [vmem:[%s2374 + $0x14] sm:%s2367]
                %2387 = vst [vmem:[%s2375 + $0x24] sm:%s2367] %v2386
                %v2388 = vld [vmem:[%s2374 + $0x18] sm:%s2367]
                %2389 = vst [vmem:[%s2375 + $0x28] sm:%s2367] %v2388
                %v2390 = vld [vmem:[%s2374 + $0x1c] sm:%s2367]
                %2391 = vst [vmem:[%s2375 + $0x2c] sm:%s2367] %v2390
                %v2392 = vld [vmem:[%s2374 + $0x20] sm:%s2367]
                %2393 = vst [vmem:[%s2375 + $0x40] sm:%s2367] %v2392
                %v2394 = vld [vmem:[%s2374 + $0x24] sm:%s2367]
                %2395 = vst [vmem:[%s2375 + $0x44] sm:%s2367] %v2394
                %v2396 = vld [vmem:[%s2374 + $0x28] sm:%s2367]
                %2397 = vst [vmem:[%s2375 + $0x48] sm:%s2367] %v2396
                %v2398 = vld [vmem:[%s2374 + $0x2c] sm:%s2367]
                %2399 = vst [vmem:[%s2375 + $0x4c] sm:%s2367] %v2398
                %v2400 = vld [vmem:[%s2374 + $0x30] sm:%s2367]
                %2401 = vst [vmem:[%s2375 + $0x60] sm:%s2367] %v2400
                %v2402 = vld [vmem:[%s2374 + $0x34] sm:%s2367]
                %2403 = vst [vmem:[%s2375 + $0x64] sm:%s2367] %v2402
                %v2404 = vld [vmem:[%s2374 + $0x38] sm:%s2367]
                %2405 = vst [vmem:[%s2375 + $0x68] sm:%s2367] %v2404
                %v2406 = vld [vmem:[%s2374 + $0x3c] sm:%s2367]
                %2407 = vst [vmem:[%s2375 + $0x6c] sm:%s2367] %v2406
              $region147: #{tpu_custom_call.1} parent=141 // loop_footer
                %s2373 = sadd.s32 1, %s2369
              $region148: #{tpu_custom_call.1} parent=141 // loop_footer_branch
                %2368 = sbr.rel target = $region144
              $region149: #{tpu_custom_call.1} parent=141 // loop_exit
                _
            $region142: #{tpu_custom_call.1} parent=133 // pred_fallthru
              _
          $region134: #{tpu_custom_call.1} parent=129 // pred_fallthru
            _
          %2460 = vnop
        $region130: #{tpu_custom_call.1} parent=43 // pred_fallthru
          _
      $region44: #{tpu_custom_call.1} parent=5 // pred_fallthru
        _
      %p2461 = scmp.le.s32.totalorder 2, %s15
      // Predicated region
      $region168: #{tpu_custom_call.1} parent=5 // pred_check
        %p2462 = pneg %p2461
      $region169: #{tpu_custom_call.1} parent=5 // pred_check_branch
        %2464 = sbr.rel (%p2462) target = $region171
      $region170: #{tpu_custom_call.1} parent=5 // pred_region
        %s2465 = ssub.s32 %s15, 2
        // Predicated region
        $region172: #{tpu_custom_call.1} parent=170 // pred_check
          %p2466 = pneg %p191
        $region173: #{tpu_custom_call.1} parent=170 // pred_check_branch
          %2468 = sbr.rel (%p2466) target = $region175
        $region174: #{tpu_custom_call.1} parent=170 // pred_region
          %s2469 = sand.u32 %s176, 1
          %s2470 = sand.u32 %s176, 1
          %s2471 = smul.addr %s2470, 64
          %s2472 = scalar_lea.vmem [#allocation2], %s2471
        $region175: #{tpu_custom_call.1} parent=170 // pred_fallthru
          _
        // Predicated region
        $region176: #{tpu_custom_call.1} parent=170 // pred_check
          %p2473 = pneg %p219
        $region177: #{tpu_custom_call.1} parent=170 // pred_check_branch
          %2475 = sbr.rel (%p2473) target = $region179
        $region178: #{tpu_custom_call.1} parent=170 // pred_region
          %s2476 = sand.u32 %s204, 1
          %s2477 = sand.u32 %s204, 1
          %s2478 = smul.addr %s2477, 64
          %s2479 = scalar_lea.vmem [#allocation3], %s2478
        $region179: #{tpu_custom_call.1} parent=170 // pred_fallthru
          _
        // Predicated region
        $region180: #{tpu_custom_call.1} parent=170 // pred_check
          %p2480 = pneg %p247
        $region181: #{tpu_custom_call.1} parent=170 // pred_check_branch
          %2482 = sbr.rel (%p2480) target = $region183
        $region182: #{tpu_custom_call.1} parent=170 // pred_region
          %s2483 = sand.u32 %s232, 1
          %s2484 = sand.u32 %s232, 1
          %s2485 = smul.addr %s2484, 64
          %s2486 = scalar_lea.vmem [#allocation4], %s2485
        $region183: #{tpu_custom_call.1} parent=170 // pred_fallthru
          _
      $region171: #{tpu_custom_call.1} parent=5 // pred_fallthru
        _
    $region6: #{tpu_custom_call.1} parent=1 // loop_footer
      %s19 = sadd.s32 1, %s15
    $region7: #{tpu_custom_call.1} parent=1 // loop_footer_branch
      %14 = sbr.rel target = $region3
    $region8: #{tpu_custom_call.1} parent=1 // loop_exit
      _

// kernel: tpu_custom_call.1
$region0: #{tpu_custom_call.1}
  #allocation0 [shape = 'u32[]', space=smem, size = 0x4, offset = 0x4, fixed_abs, tag = 'smem constant byte address 0x4 - core index']
  #allocation1 [shape = 'u32[72,128]{1,0:T(1,128)}', space=vmem, size = 0x9000, scoped, tag = 'internal scratch']
  %s0 = inlined_call_operand.vmem [shape: f32[2,64,32], index: 0, kind: input, shape index: {}]
  %s1 = inlined_call_operand.vmem [shape: f32[1,32], index: 1, kind: input, shape index: {}]
  %s2 = inlined_call_operand.vmem [shape: f32[1,32], index: 2, kind: input, shape index: {}]
  %s3 = inlined_call_operand.vmem [shape: bf16[32,32], index: 3, kind: input, shape index: {}]
  %s4 = inlined_call_operand.vmem [shape: bf16[32,32], index: 4, kind: input, shape index: {}]
  %s5 = inlined_call_operand.vmem [shape: bf16[32,32], index: 5, kind: input, shape index: {}]
  %s6 = inlined_call_operand.vmem [shape: bf16[2,4,64,8], index: 6, kind: output, shape index: {0}]
  %s7 = inlined_call_operand.vmem [shape: bf16[2,4,64,8], index: 7, kind: output, shape index: {1}]
  %s8 = inlined_call_operand.vmem [shape: bf16[2,4,64,8], index: 8, kind: output, shape index: {2}]
  %9 = xla_tuple %s6, %s7, %s8
  %s10 = sld [smem:[#allocation0]]
  $region184: #{tpu_custom_call.1} parent=0
    _
  %s12 = ssub.s32 1, %s10
  %s13 = scalar_select 0, %s12, %s10
  $region1: #{tpu_custom_call.1} parent=0
    #allocation2 [shape = 'u8[65536]{0}', space=vmem, size = 0x10000, scoped, tag = 'output window, operand 0']
    #allocation3 [shape = 'u8[65536]{0}', space=vmem, size = 0x10000, scoped, tag = 'output window, operand 1']
    #allocation4 [shape = 'u8[65536]{0}', space=vmem, size = 0x10000, scoped, tag = 'output window, operand 2']
    loop: start=0, step=1, limit=6
    $region2: #{tpu_custom_call.1} parent=1 // loop_pre_header
      _
    $region3: #{tpu_custom_call.1} parent=1 // loop_header
      %s15 = sphi 0, %s19
      %p16 = scmp.ge.s32.totalorder %s15, 6
      %s22 = sphi 0, %s34
      %s23 = sphi 0, %s30
      %s24 = sphi 0, %s22
      %s25 = sphi 0, %s23
      %s26 = sphi 0, %s24
      %s27 = sphi 0, %s25
      %s39 = sphi 0, %s41
      %s42 = sphi 0, %s39
      %s43 = sphi 0, %s42
      %s59 = sphi 0, %s43
      %s63 = sphi 0, %s63
      %s65 = sphi 0, %s63
      %s66 = sphi 0, %s65
      %s80 = sphi 0, %s66
      %s84 = sphi 0, %s84
      %s86 = sphi 0, %s84
      %s87 = sphi 0, %s86
      %s101 = sphi 0, %s87
      %s105 = sphi 0, %s105
      %s107 = sphi 0, %s105
      %s108 = sphi 0, %s107
      %s122 = sphi 0, %s108
      %s126 = sphi 0, %s126
      %s128 = sphi 0, %s126
      %s129 = sphi 0, %s128
      %s143 = sphi 0, %s129
      %s147 = sphi 0, %s147
      %s149 = sphi 0, %s147
      %s150 = sphi 0, %s149
      %s164 = sphi 0, %s150
      %s172 = sphi 0, %s174
      %s175 = sphi 0, %s172
      %s176 = sphi 0, %s175
      %s192 = sphi 0, %s176
      %s200 = sphi 0, %s202
      %s203 = sphi 0, %s200
      %s204 = sphi 0, %s203
      %s220 = sphi 0, %s204
      %s228 = sphi 0, %s230
      %s231 = sphi 0, %s228
      %s232 = sphi 0, %s231
      %s248 = sphi 0, %s232
    $region4: #{tpu_custom_call.1} parent=1 // loop_header_branch
      %18 = sbr.rel (%p16) target = $region8
    $region5: #{tpu_custom_call.1} parent=1 // loop_body
      %s20 = ssub.s32 %s15, 1
      %s21 = ssub.s32 %s15, 2
      %s28 = sadd.s32 1, %s23
      %p29 = scmp.ge.s32.totalorder %s28, 2
      %s30 = scalar_select %p29, 0, %s28
      %s31 = sadd.s32 1, %s22
      %s32 = scalar_select %p29, %s31, %s22
      %p33 = scmp.ge.s32.totalorder %s32, 2
      %s34 = scalar_select %p33, 0, %s32
      %s35 = ssub.s32 %s22, %s34
      %s36 = ssub.s32 %s23, %s30
      %s37 = sor.u32 %s35, %s36
      %p38 = scmp.eq.s32.totalorder %s37, 0
      %s40 = sadd.s32 %s39, 1
      %s41 = scalar_select %p38, %s39, %s40
      %p44 = pneg %p38
      %p45 = scmp.eq.s32.totalorder %s15, 3
      %p46 = por %p44, %p45
      %p47 = scmp.ne.s32.totalorder %s39, %s42
      %p48 = scmp.eq.s32.totalorder %s15, 0
      %p49 = por %p47, %p48
      %p50 = scmp.ne.s32.totalorder %s39, %s42
      %p51 = scmp.eq.s32.totalorder %s20, 3
      %p52 = por %p50, %p51
      %p53 = scmp.ne.s32.totalorder %s42, %s43
      %p54 = scmp.eq.s32.totalorder %s20, 0
      %p55 = por %p53, %p54
      %p56 = scmp.ne.s32.totalorder %s42, %s43
      %p57 = scmp.eq.s32.totalorder %s21, 3
      %p58 = por %p56, %p57
      %p60 = scmp.ne.s32.totalorder %s43, %s59
      %p61 = scmp.eq.s32.totalorder %s21, 0
      %p62 = por %p60, %p61
      %s64 = sadd.s32 %s63, 1
      %p67 = scmp.eq.s32.totalorder %s15, 3
      %p68 = scmp.ne.s32.totalorder %s63, %s65
      %p69 = scmp.eq.s32.totalorder %s15, 0
      %p70 = por %p68, %p69
      %p71 = scmp.ne.s32.totalorder %s63, %s65
      %p72 = scmp.eq.s32.totalorder %s20, 3
      %p73 = por %p71, %p72
      %p74 = scmp.ne.s32.totalorder %s65, %s66
      %p75 = scmp.eq.s32.totalorder %s20, 0
      %p76 = por %p74, %p75
      %p77 = scmp.ne.s32.totalorder %s65, %s66
      %p78 = scmp.eq.s32.totalorder %s21, 3
      %p79 = por %p77, %p78
      %p81 = scmp.ne.s32.totalorder %s66, %s80
      %p82 = scmp.eq.s32.totalorder %s21, 0
      %p83 = por %p81, %p82
      %s85 = sadd.s32 %s84, 1
      %p88 = scmp.eq.s32.totalorder %s15, 3
      %p89 = scmp.ne.s32.totalorder %s84, %s86
      %p90 = scmp.eq.s32.totalorder %s15, 0
      %p91 = por %p89, %p90
      %p92 = scmp.ne.s32.totalorder %s84, %s86
      %p93 = scmp.eq.s32.totalorder %s20, 3
      %p94 = por %p92, %p93
      %p95 = scmp.ne.s32.totalorder %s86, %s87
      %p96 = scmp.eq.s32.totalorder %s20, 0
      %p97 = por %p95, %p96
      %p98 = scmp.ne.s32.totalorder %s86, %s87
      %p99 = scmp.eq.s32.totalorder %s21, 3
      %p100 = por %p98, %p99
      %p102 = scmp.ne.s32.totalorder %s87, %s101
      %p103 = scmp.eq.s32.totalorder %s21, 0
      %p104 = por %p102, %p103
      %s106 = sadd.s32 %s105, 1
      %p109 = scmp.eq.s32.totalorder %s15, 3
      %p110 = scmp.ne.s32.totalorder %s105, %s107
      %p111 = scmp.eq.s32.totalorder %s15, 0
      %p112 = por %p110, %p111
      %p113 = scmp.ne.s32.totalorder %s105, %s107
      %p114 = scmp.eq.s32.totalorder %s20, 3
      %p115 = por %p113, %p114
      %p116 = scmp.ne.s32.totalorder %s107, %s108
      %p117 = scmp.eq.s32.totalorder %s20, 0
      %p118 = por %p116, %p117
      %p119 = scmp.ne.s32.totalorder %s107, %s108
      %p120 = scmp.eq.s32.totalorder %s21, 3
      %p121 = por %p119, %p120
      %p123 = scmp.ne.s32.totalorder %s108, %s122
      %p124 = scmp.eq.s32.totalorder %s21, 0
      %p125 = por %p123, %p124
      %s127 = sadd.s32 %s126, 1
      %p130 = scmp.eq.s32.totalorder %s15, 3
      %p131 = scmp.ne.s32.totalorder %s126, %s128
      %p132 = scmp.eq.s32.totalorder %s15, 0
      %p133 = por %p131, %p132
      %p134 = scmp.ne.s32.totalorder %s126, %s128
      %p135 = scmp.eq.s32.totalorder %s20, 3
      %p136 = por %p134, %p135
      %p137 = scmp.ne.s32.totalorder %s128, %s129
      %p138 = scmp.eq.s32.totalorder %s20, 0
      %p139 = por %p137, %p138
      %p140 = scmp.ne.s32.totalorder %s128, %s129
      %p141 = scmp.eq.s32.totalorder %s21, 3
      %p142 = por %p140, %p141
      %p144 = scmp.ne.s32.totalorder %s129, %s143
      %p145 = scmp.eq.s32.totalorder %s21, 0
      %p146 = por %p144, %p145
      %s148 = sadd.s32 %s147, 1
      %p151 = scmp.eq.s32.totalorder %s15, 3
      %p152 = scmp.ne.s32.totalorder %s147, %s149
      %p153 = scmp.eq.s32.totalorder %s15, 0
      %p154 = por %p152, %p153
      %p155 = scmp.ne.s32.totalorder %s147, %s149
      %p156 = scmp.eq.s32.totalorder %s20, 3
      %p157 = por %p155, %p156
      %p158 = scmp.ne.s32.totalorder %s149, %s150
      %p159 = scmp.eq.s32.totalorder %s20, 0
      %p160 = por %p158, %p159
      %p161 = scmp.ne.s32.totalorder %s149, %s150
      %p162 = scmp.eq.s32.totalorder %s21, 3
      %p163 = por %p161, %p162
      %p165 = scmp.ne.s32.totalorder %s150, %s164
      %p166 = scmp.eq.s32.totalorder %s21, 0
      %p167 = por %p165, %p166
      %s168 = ssub.s32 %s22, %s34
      %s169 = ssub.s32 %s23, %s30
      %s170 = sor.u32 %s168, %s169
      %p171 = scmp.eq.s32.totalorder %s170, 0
      %s173 = sadd.s32 %s172, 1
      %s174 = scalar_select %p171, %s172, %s173
      %p177 = pneg %p171
      %p178 = scmp.eq.s32.totalorder %s15, 3
      %p179 = por %p177, %p178
      %p180 = scmp.ne.s32.totalorder %s172, %s175
      %p181 = scmp.eq.s32.totalorder %s15, 0
      %p182 = por %p180, %p181
      %p183 = scmp.ne.s32.totalorder %s172, %s175
      %p184 = scmp.eq.s32.totalorder %s20, 3
      %p185 = por %p183, %p184
      %p186 = scmp.ne.s32.totalorder %s175, %s176
      %p187 = scmp.eq.s32.totalorder %s20, 0
      %p188 = por %p186, %p187
      %p189 = scmp.ne.s32.totalorder %s175, %s176
      %p190 = scmp.eq.s32.totalorder %s21, 3
      %p191 = por %p189, %p190
      %p193 = scmp.ne.s32.totalorder %s176, %s192
      %p194 = scmp.eq.s32.totalorder %s21, 0
      %p195 = por %p193, %p194
      %s196 = ssub.s32 %s22, %s34
      %s197 = ssub.s32 %s23, %s30
      %s198 = sor.u32 %s196, %s197
      %p199 = scmp.eq.s32.totalorder %s198, 0
      %s201 = sadd.s32 %s200, 1
      %s202 = scalar_select %p199, %s200, %s201
      %p205 = pneg %p199
      %p206 = scmp.eq.s32.totalorder %s15, 3
      %p207 = por %p205, %p206
      %p208 = scmp.ne.s32.totalorder %s200, %s203
      %p209 = scmp.eq.s32.totalorder %s15, 0
      %p210 = por %p208, %p209
      %p211 = scmp.ne.s32.totalorder %s200, %s203
      %p212 = scmp.eq.s32.totalorder %s20, 3
      %p213 = por %p211, %p212
      %p214 = scmp.ne.s32.totalorder %s203, %s204
      %p215 = scmp.eq.s32.totalorder %s20, 0
      %p216 = por %p214, %p215
      %p217 = scmp.ne.s32.totalorder %s203, %s204
      %p218 = scmp.eq.s32.totalorder %s21, 3
      %p219 = por %p217, %p218
      %p221 = scmp.ne.s32.totalorder %s204, %s220
      %p222 = scmp.eq.s32.totalorder %s21, 0
      %p223 = por %p221, %p222
      %s224 = ssub.s32 %s22, %s34
      %s225 = ssub.s32 %s23, %s30
      %s226 = sor.u32 %s224, %s225
      %p227 = scmp.eq.s32.totalorder %s226, 0
      %s229 = sadd.s32 %s228, 1
      %s230 = scalar_select %p227, %s228, %s229
      %p233 = pneg %p227
      %p234 = scmp.eq.s32.totalorder %s15, 3
      %p235 = por %p233, %p234
      %p236 = scmp.ne.s32.totalorder %s228, %s231
      %p237 = scmp.eq.s32.totalorder %s15, 0
      %p238 = por %p236, %p237
      %p239 = scmp.ne.s32.totalorder %s228, %s231
      %p240 = scmp.eq.s32.totalorder %s20, 3
      %p241 = por %p239, %p240
      %p242 = scmp.ne.s32.totalorder %s231, %s232
      %p243 = scmp.eq.s32.totalorder %s20, 0
      %p244 = por %p242, %p243
      %p245 = scmp.ne.s32.totalorder %s231, %s232
      %p246 = scmp.eq.s32.totalorder %s21, 3
      %p247 = por %p245, %p246
      %p249 = scmp.ne.s32.totalorder %s232, %s248
      %p250 = scmp.eq.s32.totalorder %s21, 0
      %p251 = por %p249, %p250
      %p252 = scmp.le.s32.totalorder 1, %s15
      %p253 = scmp.lt.s32.totalorder %s15, 5
      %p254 = pnand %p252, %p253
      %p255 = pneg %p254
      // Predicated region
      $region9: #{tpu_custom_call.1} parent=5 // pred_check
        _
      $region10: #{tpu_custom_call.1} parent=5 // pred_check_branch
        %257 = sbr.rel (%p254) target = $region12
      $region11: #{tpu_custom_call.1} parent=5 // pred_region
        %s258 = ssub.s32 %s15, 1
        // Predicated region
        $region13: #{tpu_custom_call.1} parent=11 // pred_check
          %p259 = pneg %p76
        $region14: #{tpu_custom_call.1} parent=11 // pred_check_branch
          %261 = sbr.rel (%p259) target = $region16
        $region15: #{tpu_custom_call.1} parent=11 // pred_region
          _
        $region16: #{tpu_custom_call.1} parent=11 // pred_fallthru
          _
        // Predicated region
        $region17: #{tpu_custom_call.1} parent=11 // pred_check
          %p262 = pneg %p97
        $region18: #{tpu_custom_call.1} parent=11 // pred_check_branch
          %264 = sbr.rel (%p262) target = $region20
        $region19: #{tpu_custom_call.1} parent=11 // pred_region
          _
        $region20: #{tpu_custom_call.1} parent=11 // pred_fallthru
          _
        // Predicated region
        $region21: #{tpu_custom_call.1} parent=11 // pred_check
          %p265 = pneg %p118
        $region22: #{tpu_custom_call.1} parent=11 // pred_check_branch
          %267 = sbr.rel (%p265) target = $region24
        $region23: #{tpu_custom_call.1} parent=11 // pred_region
          _
        $region24: #{tpu_custom_call.1} parent=11 // pred_fallthru
          _
        // Predicated region
        $region25: #{tpu_custom_call.1} parent=11 // pred_check
          %p268 = pneg %p139
        $region26: #{tpu_custom_call.1} parent=11 // pred_check_branch
          %270 = sbr.rel (%p268) target = $region28
        $region27: #{tpu_custom_call.1} parent=11 // pred_region
          _
        $region28: #{tpu_custom_call.1} parent=11 // pred_fallthru
          _
        // Predicated region
        $region29: #{tpu_custom_call.1} parent=11 // pred_check
          %p271 = pneg %p160
        $region30: #{tpu_custom_call.1} parent=11 // pred_check_branch
          %273 = sbr.rel (%p271) target = $region32
        $region31: #{tpu_custom_call.1} parent=11 // pred_region
          _
        $region32: #{tpu_custom_call.1} parent=11 // pred_fallthru
          _
      $region12: #{tpu_custom_call.1} parent=5 // pred_fallthru
        _
      %p274 = scmp.lt.s32.totalorder %s15, 4
      // Predicated region
      $region33: #{tpu_custom_call.1} parent=5 // pred_check
        %p275 = pneg %p274
      $region34: #{tpu_custom_call.1} parent=5 // pred_check_branch
        %277 = sbr.rel (%p275) target = $region36
      $region35: #{tpu_custom_call.1} parent=5 // pred_region
        // Predicated region
        $region37: #{tpu_custom_call.1} parent=35 // pred_check
          %p278 = pneg %p49
        $region38: #{tpu_custom_call.1} parent=35 // pred_check_branch
          %280 = sbr.rel (%p278) target = $region40
        $region39: #{tpu_custom_call.1} parent=35 // pred_region
          %s281 = smul.u32 4, %s23
          %p282 = scmp.lt.s32.totalorder %s22, 1
          %s283 = scalar_select %p282, %s22, 1
          %p284 = scmp.lt.s32.totalorder %s281, 7
          %s285 = scalar_select %p284, %s281, 7
          %s286 = smul.addr %s283, 8
          %s287 = sadd.s32 %s285, %s286
          %s288 = smul.addr %s287, 8
          %s289 = scalar_lea.vmem %s0, %s288
          %s290 = smul.u32 4, %s23
        $region40: #{tpu_custom_call.1} parent=35 // pred_fallthru
          _
      $region36: #{tpu_custom_call.1} parent=5 // pred_fallthru
        _
      %p291 = scmp.le.s32.totalorder 1, %s15
      %p292 = scmp.lt.s32.totalorder %s15, 5
      %p293 = pnand %p291, %p292
      %p294 = pneg %p293
      // Predicated region
      $region41: #{tpu_custom_call.1} parent=5 // pred_check
        _
      $region42: #{tpu_custom_call.1} parent=5 // pred_check_branch
        %296 = sbr.rel (%p293) target = $region44
      $region43: #{tpu_custom_call.1} parent=5 // pred_region
        %s297 = ssub.s32 %s15, 1
        %s298 = smul.u32 4, %s25
        %p299 = scmp.lt.s32.totalorder %s24, 1
        %s300 = scalar_select %p299, %s24, 1
        %p301 = scmp.lt.s32.totalorder %s298, 7
        %s302 = scalar_select %p301, %s298, 7
        %s303 = smul.addr %s300, 8
        %s304 = sadd.s32 %s302, %s303
        %s305 = smul.addr %s304, 8
        %s306 = scalar_lea.vmem %s0, %s305
        %p307 = pneg %p55
        %p308 = pneg %p52
        %p309 = pneg %p76
        %p310 = pneg %p73
        %p311 = pneg %p97
        %p312 = pneg %p94
        %p313 = pneg %p118
        %p314 = pneg %p115
        %p315 = pneg %p139
        %p316 = pneg %p136
        %p317 = pneg %p160
        %p318 = pneg %p157
        %p319 = pneg %p188
        %p320 = pneg %p185
        %s321 = sand.u32 %s175, 1
        %s322 = sand.u32 %s175, 1
        %s323 = smul.addr %s322, 64
        %s324 = scalar_lea.vmem [#allocation2], %s323
        %p325 = pneg %p216
        %p326 = pneg %p213
        %s327 = sand.u32 %s203, 1
        %s328 = sand.u32 %s203, 1
        %s329 = smul.addr %s328, 64
        %s330 = scalar_lea.vmem [#allocation3], %s329
        %p331 = pneg %p244
        %p332 = pneg %p241
        %s333 = sand.u32 %s231, 1
        %s334 = sand.u32 %s231, 1
        %s335 = smul.addr %s334, 64
        %s336 = scalar_lea.vmem [#allocation4], %s335
        %s337 = smul.u32 4, %s25
        %p338 = scmp.lt.s32.totalorder %s24, 1
        %s339 = scalar_select %p338, %s24, 1
        %p340 = scmp.lt.s32.totalorder %s337, 7
        %s341 = scalar_select %p340, %s337, 7
        %s342 = smul.addr %s339, 8
        %s343 = sadd.s32 %s341, %s342
        %s344 = smul.addr %s343, 8
        %s345 = scalar_lea.vmem %s0, %s344
        %s346 = smul.u32 4, %s25
        %s347 = smul.u32 4, %s25
        %s348 = smul.u32 4, %s25
        %s349 = smul.u32 4, %s25
        %v351 = vld [vmem:[%s345] sm:$0xff]
        %v352 = vld [vmem:[%s345 + $0x8] sm:$0xff]
        %v353 = vld [vmem:[%s345 + $0x10] sm:$0xff]
        %v354 = vld [vmem:[%s345 + $0x18] sm:$0xff]
        %v355 = vld [vmem:[%s1] sm:$0x1]
        %v356 = vld [vmem:[%s2] sm:$0x1]
        %vm357 = vcmask 261120
        %v358 = vsel %vm357, %v351, 0.0
        %359 = vadd.xlane.f32.xlu0 %v358
        %v360 = vpop.xlane.xlu0 %359
        %v361 = vsel %vm357, %v352, 0.0
        %362 = vadd.xlane.f32.xlu0 %v361
        %v363 = vpop.xlane.xlu0 %362
        %v364 = vsel %vm357, %v353, 0.0
        %365 = vadd.xlane.f32.xlu0 %v364
        %v366 = vpop.xlane.xlu0 %365
        %v367 = vsel %vm357, %v354, 0.0
        %368 = vadd.xlane.f32.xlu0 %v367
        %v369 = vpop.xlane.xlu0 %368
        %v370 = vrcp.pop 32.0
        %v371 = vmul.f32 32.0, %v370
        %v372 = vsub.f32 1.0, %v371
        %v373 = vmul.f32 %v370, %v372
        %v374 = vadd.f32 %v370, %v373
        %vm375 = vweird.f32 %v370
        %v376 = vsel %vm375, %v370, %v374
        %v377 = vmul.f32 %v360, %v376
        %v378 = vmul.f32 %v363, %v376
        %v379 = vmul.f32 %v366, %v376
        %v380 = vmul.f32 %v369, %v376
        %v381 = vsub.f32 %v351, %v377
        %v382 = vsub.f32 %v352, %v378
        %v383 = vsub.f32 %v353, %v379
        %v384 = vsub.f32 %v354, %v380
        %v385 = vmul.f32 %v381, %v381
        %v386 = vmul.f32 %v382, %v382
        %v387 = vmul.f32 %v383, %v383
        %v388 = vmul.f32 %v384, %v384
        %v389 = vsel %vm357, %v385, 0.0
        %390 = vadd.xlane.f32.xlu0 %v389
        %v391 = vpop.xlane.xlu0 %390
        %v392 = vsel %vm357, %v386, 0.0
        %393 = vadd.xlane.f32.xlu0 %v392
        %v394 = vpop.xlane.xlu0 %393
        %v395 = vsel %vm357, %v387, 0.0
        %396 = vadd.xlane.f32.xlu0 %v395
        %v397 = vpop.xlane.xlu0 %396
        %v398 = vsel %vm357, %v388, 0.0
        %399 = vadd.xlane.f32.xlu0 %v398
        %v400 = vpop.xlane.xlu0 %399
        %v401 = vmul.f32 %v391, %v376
        %v402 = vmul.f32 %v394, %v376
        %v403 = vmul.f32 %v397, %v376
        %v404 = vmul.f32 %v400, %v376
        %v405 = vadd.f32 %v401, 1e-05
        %v406 = vadd.f32 %v402, 1e-05
        %v407 = vadd.f32 %v403, 1e-05
        %v408 = vadd.f32 %v404, 1e-05
        %v409 = vrsqrt.pop %v405
        %v410 = vmul.f32 %v409, %v405
        %v411 = vmul.f32 %v410, %v409
        %v412 = vmul.f32 0.5, %v411
        %v413 = vsub.f32 1.5, %v412
        %v414 = vmul.f32 %v409, %v413
        %vm415 = vweird.f32 %v405
        %vm416 = vweird.f32 %v409
        %vm417 = vmor %vm415, %vm416
        %v418 = vsel %vm417, %v409, %v414
        %v419 = vrsqrt.pop %v406
        %v420 = vmul.f32 %v419, %v406
        %v421 = vmul.f32 %v420, %v419
        %v422 = vmul.f32 0.5, %v421
        %v423 = vsub.f32 1.5, %v422
        %v424 = vmul.f32 %v419, %v423
        %vm425 = vweird.f32 %v406
        %vm426 = vweird.f32 %v419
        %vm427 = vmor %vm425, %vm426
        %v428 = vsel %vm427, %v419, %v424
        %v429 = vrsqrt.pop %v407
        %v430 = vmul.f32 %v429, %v407
        %v431 = vmul.f32 %v430, %v429
        %v432 = vmul.f32 0.5, %v431
        %v433 = vsub.f32 1.5, %v432
        %v434 = vmul.f32 %v429, %v433
        %vm435 = vweird.f32 %v407
        %vm436 = vweird.f32 %v429
        %vm437 = vmor %vm435, %vm436
        %v438 = vsel %vm437, %v429, %v434
        %v439 = vrsqrt.pop %v408
        %v440 = vmul.f32 %v439, %v408
        %v441 = vmul.f32 %v440, %v439
        %v442 = vmul.f32 0.5, %v441
        %v443 = vsub.f32 1.5, %v442
        %v444 = vmul.f32 %v439, %v443
        %vm445 = vweird.f32 %v408
        %vm446 = vweird.f32 %v439
        %vm447 = vmor %vm445, %vm446
        %v448 = vsel %vm447, %v439, %v444
        %v449 = vmul.f32 %v381, %v418
        %v450 = vmul.f32 %v382, %v428
        %v451 = vmul.f32 %v383, %v438
        %v452 = vmul.f32 %v384, %v448
        %v454 = vperm.slane %v355, 0
        %v456 = vmul.f32 %v449, %v454
        %v457 = vmul.f32 %v450, %v454
        %v458 = vmul.f32 %v451, %v454
        %v459 = vmul.f32 %v452, %v454
        %v461 = vperm.slane %v356, 0
        %v463 = vadd.f32 %v456, %v461
        %v464 = vadd.f32 %v457, %v461
        %v465 = vadd.f32 %v458, %v461
        %v466 = vadd.f32 %v459, %v461
        %v467 = vpack.c.bf16 %v464, %v463
        %v468 = vpack.c.bf16 %v466, %v465
        %v469 = vld [vmem:[%s3] sm:$0xf]
        %v470 = vld [vmem:[%s3 + $0x4] sm:$0xf]
        %v471 = vld [vmem:[%s3 + $0x8] sm:$0xf]
        %v472 = vld [vmem:[%s3 + $0xc] sm:$0xf]
        %v477 = vunpack.c.l.b16 %v469
        %v478 = vunpack.c.l.b16 %v470
        %v479 = vunpack.c.l.b16 %v471
        %v480 = vunpack.c.l.b16 %v472
        %v481 = vpack.c.b16 %v478, %v477
        %v482 = vpack.c.b16 %v480, %v479
        %v486 = vsel %vm357, %v467, 0
        %v489 = vsel %vm357, %v468, 0
        %491 = vmatpush.bf16.msra.mxu0 0
        %492 = vmatpush.bf16.msra.mxu0 0
        %493 = vmatpush.bf16.msra.mxu0 0
        %494 = vmatpush.bf16.msra.mxu0 0
        %495 = vmatpush.bf16.msra.mxu0 0
        %496 = vmatpush.bf16.msra.mxu0 0
        %497 = vmatpush.bf16.msra.mxu0 %v482
        %498 = vmatpush.bf16.msra.mxu0 %v481
        %499 = vmatmul.bf16.gmra.mxu0 %v486
        %v500 = vpop.f32.mrf.mxu0
        %v501 = vadd.f32 0.0, %v500
        %v502 = vpop.f32.mrf.mxu0
        %v503 = vadd.f32 0.0, %v502
        %504 = vmatmul.bf16.gmra.mxu0 %v489
        %v505 = vpop.f32.mrf.mxu0
        %v506 = vadd.f32 0.0, %v505
        %v507 = vpop.f32.mrf.mxu0
        %v508 = vadd.f32 0.0, %v507
        %509 = vdwg.mxu0
        %v510 = vmul.f32 %v501, 0.35355338
        %v511 = vmul.f32 %v503, 0.35355338
        %v512 = vmul.f32 %v506, 0.35355338
        %v513 = vmul.f32 %v508, 0.35355338
        %518 = vrot.lane.b32.xlu0 %v510, 120
        %v519 = vpop.permute.xlu0 %518
        %520 = vrot.lane.b32.xlu0 %v511, 120
        %v521 = vpop.permute.xlu0 %520
        %522 = vrot.lane.b32.xlu0 %v512, 120
        %v523 = vpop.permute.xlu0 %522
        %524 = vrot.lane.b32.xlu0 %v513, 120
        %v525 = vpop.permute.xlu0 %524
        %530 = vrot.lane.b32.xlu0 %v510, 112
        %v531 = vpop.permute.xlu0 %530
        %532 = vrot.lane.b32.xlu0 %v511, 112
        %v533 = vpop.permute.xlu0 %532
        %534 = vrot.lane.b32.xlu0 %v512, 112
        %v535 = vpop.permute.xlu0 %534
        %536 = vrot.lane.b32.xlu0 %v513, 112
        %v537 = vpop.permute.xlu0 %536
        %542 = vrot.lane.b32.xlu0 %v510, 104
        %v543 = vpop.permute.xlu0 %542
        %544 = vrot.lane.b32.xlu0 %v511, 104
        %v545 = vpop.permute.xlu0 %544
        %546 = vrot.lane.b32.xlu0 %v512, 104
        %v547 = vpop.permute.xlu0 %546
        %548 = vrot.lane.b32.xlu0 %v513, 104
        %v549 = vpop.permute.xlu0 %548
        %v554 = vrot.slane %v531, 4
        %vm555 = vcmask 1047556
        %v556 = vsel %vm555, %v554, %v510
        %v557 = vrot.slane %v510, 4
        %v558 = vsel %vm555, %v531, %v557
        %v560 = vunpack.c.l.s4 1983009808
        %v561 = vunpack.c.0.s8 %v560
        %v562 = vperm.slane %v556, %v561
        %v564 = vunpack.c.l.s4 1983009808
        %v565 = vunpack.c.0.s8 %v564
        %v566 = vperm.slane %v558, %v565
        %v567 = vrot.slane %v543, 4
        %v568 = vsel %vm555, %v567, %v519
        %v569 = vrot.slane %v519, 4
        %v570 = vsel %vm555, %v543, %v569
        %v572 = vunpack.c.l.s4 1983009808
        %v573 = vunpack.c.0.s8 %v572
        %v574 = vperm.slane %v568, %v573
        %v576 = vunpack.c.l.s4 1983009808
        %v577 = vunpack.c.0.s8 %v576
        %v578 = vperm.slane %v570, %v577
        %v579 = vrot.slane %v574, 4
        %v580 = vsel %vm555, %v579, %v562
        %v581 = vrot.slane %v562, 4
        %v582 = vsel %vm555, %v574, %v581
        %v584 = vunpack.c.l.s4 1934713408
        %v585 = vunpack.c.0.s8 %v584
        %v586 = vperm.slane %v580, %v585
        %v588 = vunpack.c.l.s4 1934713408
        %v589 = vunpack.c.0.s8 %v588
        %v590 = vperm.slane %v582, %v589
        %v591 = vrot.slane %v578, 4
        %v592 = vsel %vm555, %v591, %v566
        %v593 = vrot.slane %v566, 4
        %v594 = vsel %vm555, %v578, %v593
        %v596 = vunpack.c.l.s4 1934713408
        %v597 = vunpack.c.0.s8 %v596
        %v598 = vperm.slane %v592, %v597
        %v600 = vunpack.c.l.s4 1934713408
        %v601 = vunpack.c.0.s8 %v600
        %v602 = vperm.slane %v594, %v601
        %v603 = vrot.slane %v586, 4
        %v604 = vsel %vm555, 0.0, %v603
        %v605 = vrot.slane %v590, 4
        %v606 = vsel %vm555, 0.0, %v605
        %v607 = vrot.slane %v598, 4
        %v608 = vsel %vm555, 0.0, %v607
        %v609 = vrot.slane %v602, 4
        %v610 = vsel %vm555, 0.0, %v609
        %v611 = vrot.slane %v533, 4
        %v612 = vsel %vm555, %v611, %v511
        %v613 = vrot.slane %v511, 4
        %v614 = vsel %vm555, %v533, %v613
        %v616 = vunpack.c.l.s4 1983009808
        %v617 = vunpack.c.0.s8 %v616
        %v618 = vperm.slane %v612, %v617
        %v620 = vunpack.c.l.s4 1983009808
        %v621 = vunpack.c.0.s8 %v620
        %v622 = vperm.slane %v614, %v621
        %v623 = vrot.slane %v545, 4
        %v624 = vsel %vm555, %v623, %v521
        %v625 = vrot.slane %v521, 4
        %v626 = vsel %vm555, %v545, %v625
        %v628 = vunpack.c.l.s4 1983009808
        %v629 = vunpack.c.0.s8 %v628
        %v630 = vperm.slane %v624, %v629
        %v632 = vunpack.c.l.s4 1983009808
        %v633 = vunpack.c.0.s8 %v632
        %v634 = vperm.slane %v626, %v633
        %v635 = vrot.slane %v630, 4
        %v636 = vsel %vm555, %v635, %v618
        %v637 = vrot.slane %v618, 4
        %v638 = vsel %vm555, %v630, %v637
        %v640 = vunpack.c.l.s4 1934713408
        %v641 = vunpack.c.0.s8 %v640
        %v642 = vperm.slane %v636, %v641
        %v644 = vunpack.c.l.s4 1934713408
        %v645 = vunpack.c.0.s8 %v644
        %v646 = vperm.slane %v638, %v645
        %v647 = vrot.slane %v634, 4
        %v648 = vsel %vm555, %v647, %v622
        %v649 = vrot.slane %v622, 4
        %v650 = vsel %vm555, %v634, %v649
        %v652 = vunpack.c.l.s4 1934713408
        %v653 = vunpack.c.0.s8 %v652
        %v654 = vperm.slane %v648, %v653
        %v656 = vunpack.c.l.s4 1934713408
        %v657 = vunpack.c.0.s8 %v656
        %v658 = vperm.slane %v650, %v657
        %v659 = vrot.slane %v642, 4
        %v660 = vsel %vm555, 0.0, %v659
        %v661 = vrot.slane %v646, 4
        %v662 = vsel %vm555, 0.0, %v661
        %v663 = vrot.slane %v654, 4
        %v664 = vsel %vm555, 0.0, %v663
        %v665 = vrot.slane %v658, 4
        %v666 = vsel %vm555, 0.0, %v665
        %v667 = vrot.slane %v535, 4
        %v668 = vsel %vm555, %v667, %v512
        %v669 = vrot.slane %v512, 4
        %v670 = vsel %vm555, %v535, %v669
        %v672 = vunpack.c.l.s4 1983009808
        %v673 = vunpack.c.0.s8 %v672
        %v674 = vperm.slane %v668, %v673
        %v676 = vunpack.c.l.s4 1983009808
        %v677 = vunpack.c.0.s8 %v676
        %v678 = vperm.slane %v670, %v677
        %v679 = vrot.slane %v547, 4
        %v680 = vsel %vm555, %v679, %v523
        %v681 = vrot.slane %v523, 4
        %v682 = vsel %vm555, %v547, %v681
        %v684 = vunpack.c.l.s4 1983009808
        %v685 = vunpack.c.0.s8 %v684
        %v686 = vperm.slane %v680, %v685
        %v688 = vunpack.c.l.s4 1983009808
        %v689 = vunpack.c.0.s8 %v688
        %v690 = vperm.slane %v682, %v689
        %v691 = vrot.slane %v686, 4
        %v692 = vsel %vm555, %v691, %v674
        %v693 = vrot.slane %v674, 4
        %v694 = vsel %vm555, %v686, %v693
        %v696 = vunpack.c.l.s4 1934713408
        %v697 = vunpack.c.0.s8 %v696
        %v698 = vperm.slane %v692, %v697
        %v700 = vunpack.c.l.s4 1934713408
        %v701 = vunpack.c.0.s8 %v700
        %v702 = vperm.slane %v694, %v701
        %v703 = vrot.slane %v690, 4
        %v704 = vsel %vm555, %v703, %v678
        %v705 = vrot.slane %v678, 4
        %v706 = vsel %vm555, %v690, %v705
        %v708 = vunpack.c.l.s4 1934713408
        %v709 = vunpack.c.0.s8 %v708
        %v710 = vperm.slane %v704, %v709
        %v712 = vunpack.c.l.s4 1934713408
        %v713 = vunpack.c.0.s8 %v712
        %v714 = vperm.slane %v706, %v713
        %v715 = vrot.slane %v698, 4
        %v716 = vsel %vm555, 0.0, %v715
        %v717 = vrot.slane %v702, 4
        %v718 = vsel %vm555, 0.0, %v717
        %v719 = vrot.slane %v710, 4
        %v720 = vsel %vm555, 0.0, %v719
        %v721 = vrot.slane %v714, 4
        %v722 = vsel %vm555, 0.0, %v721
        %v723 = vrot.slane %v537, 4
        %v724 = vsel %vm555, %v723, %v513
        %v725 = vrot.slane %v513, 4
        %v726 = vsel %vm555, %v537, %v725
        %v728 = vunpack.c.l.s4 1983009808
        %v729 = vunpack.c.0.s8 %v728
        %v730 = vperm.slane %v724, %v729
        %v732 = vunpack.c.l.s4 1983009808
        %v733 = vunpack.c.0.s8 %v732
        %v734 = vperm.slane %v726, %v733
        %v735 = vrot.slane %v549, 4
        %v736 = vsel %vm555, %v735, %v525
        %v737 = vrot.slane %v525, 4
        %v738 = vsel %vm555, %v549, %v737
        %v740 = vunpack.c.l.s4 1983009808
        %v741 = vunpack.c.0.s8 %v740
        %v742 = vperm.slane %v736, %v741
        %v744 = vunpack.c.l.s4 1983009808
        %v745 = vunpack.c.0.s8 %v744
        %v746 = vperm.slane %v738, %v745
        %v747 = vrot.slane %v742, 4
        %v748 = vsel %vm555, %v747, %v730
        %v749 = vrot.slane %v730, 4
        %v750 = vsel %vm555, %v742, %v749
        %v752 = vunpack.c.l.s4 1934713408
        %v753 = vunpack.c.0.s8 %v752
        %v754 = vperm.slane %v748, %v753
        %v756 = vunpack.c.l.s4 1934713408
        %v757 = vunpack.c.0.s8 %v756
        %v758 = vperm.slane %v750, %v757
        %v759 = vrot.slane %v746, 4
        %v760 = vsel %vm555, %v759, %v734
        %v761 = vrot.slane %v734, 4
        %v762 = vsel %vm555, %v746, %v761
        %v764 = vunpack.c.l.s4 1934713408
        %v765 = vunpack.c.0.s8 %v764
        %v766 = vperm.slane %v760, %v765
        %v768 = vunpack.c.l.s4 1934713408
        %v769 = vunpack.c.0.s8 %v768
        %v770 = vperm.slane %v762, %v769
        %v771 = vrot.slane %v754, 4
        %v772 = vsel %vm555, 0.0, %v771
        %v773 = vrot.slane %v758, 4
        %v774 = vsel %vm555, 0.0, %v773
        %v775 = vrot.slane %v766, 4
        %v776 = vsel %vm555, 0.0, %v775
        %v777 = vrot.slane %v770, 4
        %v778 = vsel %vm555, 0.0, %v777
        %v779 = vsel %vm555, %v605, %v586
        %v781 = vunpack.c.l.s4 1983009808
        %v782 = vunpack.c.0.s8 %v781
        %v783 = vperm.slane %v779, %v782
        %v784 = vrot.slane %v606, 4
        %v785 = vsel %vm555, %v784, %v604
        %v787 = vunpack.c.l.s4 1983009808
        %v788 = vunpack.c.0.s8 %v787
        %v789 = vperm.slane %v785, %v788
        %v790 = vsel %vm555, %v609, %v598
        %v792 = vunpack.c.l.s4 1983009808
        %v793 = vunpack.c.0.s8 %v792
        %v794 = vperm.slane %v790, %v793
        %v795 = vrot.slane %v610, 4
        %v796 = vsel %vm555, %v795, %v608
        %v798 = vunpack.c.l.s4 1983009808
        %v799 = vunpack.c.0.s8 %v798
        %v800 = vperm.slane %v796, %v799
        %v801 = vrot.slane %v789, 4
        %v802 = vsel %vm555, %v801, %v783
        %v803 = vrot.slane %v783, 4
        %v804 = vsel %vm555, %v789, %v803
        %v806 = vunpack.c.l.s4 1934713408
        %v807 = vunpack.c.0.s8 %v806
        %v808 = vperm.slane %v802, %v807
        %v810 = vunpack.c.l.s4 1934713408
        %v811 = vunpack.c.0.s8 %v810
        %v812 = vperm.slane %v804, %v811
        %v813 = vrot.slane %v800, 4
        %v814 = vsel %vm555, %v813, %v794
        %v815 = vrot.slane %v794, 4
        %v816 = vsel %vm555, %v800, %v815
        %v818 = vunpack.c.l.s4 1934713408
        %v819 = vunpack.c.0.s8 %v818
        %v820 = vperm.slane %v814, %v819
        %v822 = vunpack.c.l.s4 1934713408
        %v823 = vunpack.c.0.s8 %v822
        %v824 = vperm.slane %v816, %v823
        %v825 = vrot.slane %v820, 4
        %v826 = vsel %vm555, %v825, %v808
        %v827 = vrot.slane %v808, 4
        %v828 = vsel %vm555, %v820, %v827
        %v829 = vrot.slane %v824, 4
        %v830 = vsel %vm555, %v829, %v812
        %v831 = vrot.slane %v812, 4
        %v832 = vsel %vm555, %v824, %v831
        %v833 = vsel %vm555, %v661, %v642
        %v835 = vunpack.c.l.s4 1983009808
        %v836 = vunpack.c.0.s8 %v835
        %v837 = vperm.slane %v833, %v836
        %v838 = vrot.slane %v662, 4
        %v839 = vsel %vm555, %v838, %v660
        %v841 = vunpack.c.l.s4 1983009808
        %v842 = vunpack.c.0.s8 %v841
        %v843 = vperm.slane %v839, %v842
        %v844 = vsel %vm555, %v665, %v654
        %v846 = vunpack.c.l.s4 1983009808
        %v847 = vunpack.c.0.s8 %v846
        %v848 = vperm.slane %v844, %v847
        %v849 = vrot.slane %v666, 4
        %v850 = vsel %vm555, %v849, %v664
        %v852 = vunpack.c.l.s4 1983009808
        %v853 = vunpack.c.0.s8 %v852
        %v854 = vperm.slane %v850, %v853
        %v855 = vrot.slane %v843, 4
        %v856 = vsel %vm555, %v855, %v837
        %v857 = vrot.slane %v837, 4
        %v858 = vsel %vm555, %v843, %v857
        %v860 = vunpack.c.l.s4 1934713408
        %v861 = vunpack.c.0.s8 %v860
        %v862 = vperm.slane %v856, %v861
        %v864 = vunpack.c.l.s4 1934713408
        %v865 = vunpack.c.0.s8 %v864
        %v866 = vperm.slane %v858, %v865
        %v867 = vrot.slane %v854, 4
        %v868 = vsel %vm555, %v867, %v848
        %v869 = vrot.slane %v848, 4
        %v870 = vsel %vm555, %v854, %v869
        %v872 = vunpack.c.l.s4 1934713408
        %v873 = vunpack.c.0.s8 %v872
        %v874 = vperm.slane %v868, %v873
        %v876 = vunpack.c.l.s4 1934713408
        %v877 = vunpack.c.0.s8 %v876
        %v878 = vperm.slane %v870, %v877
        %v879 = vrot.slane %v874, 4
        %v880 = vsel %vm555, %v879, %v862
        %v881 = vrot.slane %v862, 4
        %v882 = vsel %vm555, %v874, %v881
        %v883 = vrot.slane %v878, 4
        %v884 = vsel %vm555, %v883, %v866
        %v885 = vrot.slane %v866, 4
        %v886 = vsel %vm555, %v878, %v885
        %v887 = vsel %vm555, %v717, %v698
        %v889 = vunpack.c.l.s4 1983009808
        %v890 = vunpack.c.0.s8 %v889
        %v891 = vperm.slane %v887, %v890
        %v892 = vrot.slane %v718, 4
        %v893 = vsel %vm555, %v892, %v716
        %v895 = vunpack.c.l.s4 1983009808
        %v896 = vunpack.c.0.s8 %v895
        %v897 = vperm.slane %v893, %v896
        %v898 = vsel %vm555, %v721, %v710
        %v900 = vunpack.c.l.s4 1983009808
        %v901 = vunpack.c.0.s8 %v900
        %v902 = vperm.slane %v898, %v901
        %v903 = vrot.slane %v722, 4
        %v904 = vsel %vm555, %v903, %v720
        %v906 = vunpack.c.l.s4 1983009808
        %v907 = vunpack.c.0.s8 %v906
        %v908 = vperm.slane %v904, %v907
        %v909 = vrot.slane %v897, 4
        %v910 = vsel %vm555, %v909, %v891
        %v911 = vrot.slane %v891, 4
        %v912 = vsel %vm555, %v897, %v911
        %v914 = vunpack.c.l.s4 1934713408
        %v915 = vunpack.c.0.s8 %v914
        %v916 = vperm.slane %v910, %v915
        %v918 = vunpack.c.l.s4 1934713408
        %v919 = vunpack.c.0.s8 %v918
        %v920 = vperm.slane %v912, %v919
        %v921 = vrot.slane %v908, 4
        %v922 = vsel %vm555, %v921, %v902
        %v923 = vrot.slane %v902, 4
        %v924 = vsel %vm555, %v908, %v923
        %v926 = vunpack.c.l.s4 1934713408
        %v927 = vunpack.c.0.s8 %v926
        %v928 = vperm.slane %v922, %v927
        %v930 = vunpack.c.l.s4 1934713408
        %v931 = vunpack.c.0.s8 %v930
        %v932 = vperm.slane %v924, %v931
        %v933 = vrot.slane %v928, 4
        %v934 = vsel %vm555, %v933, %v916
        %v935 = vrot.slane %v916, 4
        %v936 = vsel %vm555, %v928, %v935
        %v937 = vrot.slane %v932, 4
        %v938 = vsel %vm555, %v937, %v920
        %v939 = vrot.slane %v920, 4
        %v940 = vsel %vm555, %v932, %v939
        %v941 = vsel %vm555, %v773, %v754
        %v943 = vunpack.c.l.s4 1983009808
        %v944 = vunpack.c.0.s8 %v943
        %v945 = vperm.slane %v941, %v944
        %v946 = vrot.slane %v774, 4
        %v947 = vsel %vm555, %v946, %v772
        %v949 = vunpack.c.l.s4 1983009808
        %v950 = vunpack.c.0.s8 %v949
        %v951 = vperm.slane %v947, %v950
        %v952 = vsel %vm555, %v777, %v766
        %v954 = vunpack.c.l.s4 1983009808
        %v955 = vunpack.c.0.s8 %v954
        %v956 = vperm.slane %v952, %v955
        %v957 = vrot.slane %v778, 4
        %v958 = vsel %vm555, %v957, %v776
        %v960 = vunpack.c.l.s4 1983009808
        %v961 = vunpack.c.0.s8 %v960
        %v962 = vperm.slane %v958, %v961
        %v963 = vrot.slane %v951, 4
        %v964 = vsel %vm555, %v963, %v945
        %v965 = vrot.slane %v945, 4
        %v966 = vsel %vm555, %v951, %v965
        %v968 = vunpack.c.l.s4 1934713408
        %v969 = vunpack.c.0.s8 %v968
        %v970 = vperm.slane %v964, %v969
        %v972 = vunpack.c.l.s4 1934713408
        %v973 = vunpack.c.0.s8 %v972
        %v974 = vperm.slane %v966, %v973
        %v975 = vrot.slane %v962, 4
        %v976 = vsel %vm555, %v975, %v956
        %v977 = vrot.slane %v956, 4
        %v978 = vsel %vm555, %v962, %v977
        %v980 = vunpack.c.l.s4 1934713408
        %v981 = vunpack.c.0.s8 %v980
        %v982 = vperm.slane %v976, %v981
        %v984 = vunpack.c.l.s4 1934713408
        %v985 = vunpack.c.0.s8 %v984
        %v986 = vperm.slane %v978, %v985
        %v987 = vrot.slane %v982, 4
        %v988 = vsel %vm555, %v987, %v970
        %v989 = vrot.slane %v970, 4
        %v990 = vsel %vm555, %v982, %v989
        %v991 = vrot.slane %v986, 4
        %v992 = vsel %vm555, %v991, %v974
        %v993 = vrot.slane %v974, 4
        %v994 = vsel %vm555, %v986, %v993
        %v995 = vpack.c.bf16 %v826, %v826
        %v996 = vpack.c.bf16 %v880, %v880
        %v997 = vpack.c.bf16 %v934, %v934
        %v998 = vpack.c.bf16 %v988, %v988
        %v999 = vpack.c.bf16 %v828, %v828
        %v1000 = vpack.c.bf16 %v882, %v882
        %v1001 = vpack.c.bf16 %v936, %v936
        %v1002 = vpack.c.bf16 %v990, %v990
        %v1003 = vpack.c.bf16 %v830, %v830
        %v1004 = vpack.c.bf16 %v884, %v884
        %v1005 = vpack.c.bf16 %v938, %v938
        %v1006 = vpack.c.bf16 %v992, %v992
        %v1007 = vpack.c.bf16 %v832, %v832
        %v1008 = vpack.c.bf16 %v886, %v886
        %v1009 = vpack.c.bf16 %v940, %v940
        %v1010 = vpack.c.bf16 %v994, %v994
        %vm1011 = vcmask 60416
        %1012 = vst.msk [vmem:[%s324] sm:$0xf] %vm1011, %v995
        %1013 = vst.msk [vmem:[%s324 + $0x4] sm:$0xf] %vm1011, %v996
        %1014 = vst.msk [vmem:[%s324 + $0x8] sm:$0xf] %vm1011, %v997
        %1015 = vst.msk [vmem:[%s324 + $0xc] sm:$0xf] %vm1011, %v998
        %1016 = vst.msk [vmem:[%s324 + $0x10] sm:$0xf] %vm1011, %v999
        %1017 = vst.msk [vmem:[%s324 + $0x14] sm:$0xf] %vm1011, %v1000
        %1018 = vst.msk [vmem:[%s324 + $0x18] sm:$0xf] %vm1011, %v1001
        %1019 = vst.msk [vmem:[%s324 + $0x1c] sm:$0xf] %vm1011, %v1002
        %1020 = vst.msk [vmem:[%s324 + $0x20] sm:$0xf] %vm1011, %v1003
        %1021 = vst.msk [vmem:[%s324 + $0x24] sm:$0xf] %vm1011, %v1004
        %1022 = vst.msk [vmem:[%s324 + $0x28] sm:$0xf] %vm1011, %v1005
        %1023 = vst.msk [vmem:[%s324 + $0x2c] sm:$0xf] %vm1011, %v1006
        %1024 = vst.msk [vmem:[%s324 + $0x30] sm:$0xf] %vm1011, %v1007
        %1025 = vst.msk [vmem:[%s324 + $0x34] sm:$0xf] %vm1011, %v1008
        %1026 = vst.msk [vmem:[%s324 + $0x38] sm:$0xf] %vm1011, %v1009
        %1027 = vst.msk [vmem:[%s324 + $0x3c] sm:$0xf] %vm1011, %v1010
        %v1028 = vld [vmem:[%s4] sm:$0xf]
        %v1029 = vld [vmem:[%s4 + $0x4] sm:$0xf]
        %v1030 = vld [vmem:[%s4 + $0x8] sm:$0xf]
        %v1031 = vld [vmem:[%s4 + $0xc] sm:$0xf]
        %v1036 = vunpack.c.l.b16 %v1028
        %v1037 = vunpack.c.l.b16 %v1029
        %v1038 = vunpack.c.l.b16 %v1030
        %v1039 = vunpack.c.l.b16 %v1031
        %v1040 = vpack.c.b16 %v1037, %v1036
        %v1041 = vpack.c.b16 %v1039, %v1038
        %1044 = vmatpush.bf16.msra.mxu0 0
        %1045 = vmatpush.bf16.msra.mxu0 0
        %1046 = vmatpush.bf16.msra.mxu0 0
        %1047 = vmatpush.bf16.msra.mxu0 0
        %1048 = vmatpush.bf16.msra.mxu0 0
        %1049 = vmatpush.bf16.msra.mxu0 0
        %1050 = vmatpush.bf16.msra.mxu0 %v1041
        %1051 = vmatpush.bf16.msra.mxu0 %v1040
        %1052 = vmatmul.bf16.gmra.mxu0 %v486
        %v1053 = vpop.f32.mrf.mxu0
        %v1054 = vadd.f32 0.0, %v1053
        %v1055 = vpop.f32.mrf.mxu0
        %v1056 = vadd.f32 0.0, %v1055
        %1057 = vmatmul.bf16.gmra.mxu0 %v489
        %v1058 = vpop.f32.mrf.mxu0
        %v1059 = vadd.f32 0.0, %v1058
        %v1060 = vpop.f32.mrf.mxu0
        %v1061 = vadd.f32 0.0, %v1060
        %1062 = vdwg.mxu0
        %1067 = vrot.lane.b32.xlu0 %v1054, 120
        %v1068 = vpop.permute.xlu0 %1067
        %1069 = vrot.lane.b32.xlu0 %v1056, 120
        %v1070 = vpop.permute.xlu0 %1069
        %1071 = vrot.lane.b32.xlu0 %v1059, 120
        %v1072 = vpop.permute.xlu0 %1071
        %1073 = vrot.lane.b32.xlu0 %v1061, 120
        %v1074 = vpop.permute.xlu0 %1073
        %1079 = vrot.lane.b32.xlu0 %v1054, 112
        %v1080 = vpop.permute.xlu0 %1079
        %1081 = vrot.lane.b32.xlu0 %v1056, 112
        %v1082 = vpop.permute.xlu0 %1081
        %1083 = vrot.lane.b32.xlu0 %v1059, 112
        %v1084 = vpop.permute.xlu0 %1083
        %1085 = vrot.lane.b32.xlu0 %v1061, 112
        %v1086 = vpop.permute.xlu0 %1085
        %1091 = vrot.lane.b32.xlu0 %v1054, 104
        %v1092 = vpop.permute.xlu0 %1091
        %1093 = vrot.lane.b32.xlu0 %v1056, 104
        %v1094 = vpop.permute.xlu0 %1093
        %1095 = vrot.lane.b32.xlu0 %v1059, 104
        %v1096 = vpop.permute.xlu0 %1095
        %1097 = vrot.lane.b32.xlu0 %v1061, 104
        %v1098 = vpop.permute.xlu0 %1097
        %v1103 = vrot.slane %v1080, 4
        %v1104 = vsel %vm555, %v1103, %v1054
        %v1105 = vrot.slane %v1054, 4
        %v1106 = vsel %vm555, %v1080, %v1105
        %v1108 = vunpack.c.l.s4 1983009808
        %v1109 = vunpack.c.0.s8 %v1108
        %v1110 = vperm.slane %v1104, %v1109
        %v1112 = vunpack.c.l.s4 1983009808
        %v1113 = vunpack.c.0.s8 %v1112
        %v1114 = vperm.slane %v1106, %v1113
        %v1115 = vrot.slane %v1092, 4
        %v1116 = vsel %vm555, %v1115, %v1068
        %v1117 = vrot.slane %v1068, 4
        %v1118 = vsel %vm555, %v1092, %v1117
        %v1120 = vunpack.c.l.s4 1983009808
        %v1121 = vunpack.c.0.s8 %v1120
        %v1122 = vperm.slane %v1116, %v1121
        %v1124 = vunpack.c.l.s4 1983009808
        %v1125 = vunpack.c.0.s8 %v1124
        %v1126 = vperm.slane %v1118, %v1125
        %v1127 = vrot.slane %v1122, 4
        %v1128 = vsel %vm555, %v1127, %v1110
        %v1129 = vrot.slane %v1110, 4
        %v1130 = vsel %vm555, %v1122, %v1129
        %v1132 = vunpack.c.l.s4 1934713408
        %v1133 = vunpack.c.0.s8 %v1132
        %v1134 = vperm.slane %v1128, %v1133
        %v1136 = vunpack.c.l.s4 1934713408
        %v1137 = vunpack.c.0.s8 %v1136
        %v1138 = vperm.slane %v1130, %v1137
        %v1139 = vrot.slane %v1126, 4
        %v1140 = vsel %vm555, %v1139, %v1114
        %v1141 = vrot.slane %v1114, 4
        %v1142 = vsel %vm555, %v1126, %v1141
        %v1144 = vunpack.c.l.s4 1934713408
        %v1145 = vunpack.c.0.s8 %v1144
        %v1146 = vperm.slane %v1140, %v1145
        %v1148 = vunpack.c.l.s4 1934713408
        %v1149 = vunpack.c.0.s8 %v1148
        %v1150 = vperm.slane %v1142, %v1149
        %v1151 = vrot.slane %v1134, 4
        %v1152 = vsel %vm555, 0.0, %v1151
        %v1153 = vrot.slane %v1138, 4
        %v1154 = vsel %vm555, 0.0, %v1153
        %v1155 = vrot.slane %v1146, 4
        %v1156 = vsel %vm555, 0.0, %v1155
        %v1157 = vrot.slane %v1150, 4
        %v1158 = vsel %vm555, 0.0, %v1157
        %v1159 = vrot.slane %v1082, 4
        %v1160 = vsel %vm555, %v1159, %v1056
        %v1161 = vrot.slane %v1056, 4
        %v1162 = vsel %vm555, %v1082, %v1161
        %v1164 = vunpack.c.l.s4 1983009808
        %v1165 = vunpack.c.0.s8 %v1164
        %v1166 = vperm.slane %v1160, %v1165
        %v1168 = vunpack.c.l.s4 1983009808
        %v1169 = vunpack.c.0.s8 %v1168
        %v1170 = vperm.slane %v1162, %v1169
        %v1171 = vrot.slane %v1094, 4
        %v1172 = vsel %vm555, %v1171, %v1070
        %v1173 = vrot.slane %v1070, 4
        %v1174 = vsel %vm555, %v1094, %v1173
        %v1176 = vunpack.c.l.s4 1983009808
        %v1177 = vunpack.c.0.s8 %v1176
        %v1178 = vperm.slane %v1172, %v1177
        %v1180 = vunpack.c.l.s4 1983009808
        %v1181 = vunpack.c.0.s8 %v1180
        %v1182 = vperm.slane %v1174, %v1181
        %v1183 = vrot.slane %v1178, 4
        %v1184 = vsel %vm555, %v1183, %v1166
        %v1185 = vrot.slane %v1166, 4
        %v1186 = vsel %vm555, %v1178, %v1185
        %v1188 = vunpack.c.l.s4 1934713408
        %v1189 = vunpack.c.0.s8 %v1188
        %v1190 = vperm.slane %v1184, %v1189
        %v1192 = vunpack.c.l.s4 1934713408
        %v1193 = vunpack.c.0.s8 %v1192
        %v1194 = vperm.slane %v1186, %v1193
        %v1195 = vrot.slane %v1182, 4
        %v1196 = vsel %vm555, %v1195, %v1170
        %v1197 = vrot.slane %v1170, 4
        %v1198 = vsel %vm555, %v1182, %v1197
        %v1200 = vunpack.c.l.s4 1934713408
        %v1201 = vunpack.c.0.s8 %v1200
        %v1202 = vperm.slane %v1196, %v1201
        %v1204 = vunpack.c.l.s4 1934713408
        %v1205 = vunpack.c.0.s8 %v1204
        %v1206 = vperm.slane %v1198, %v1205
        %v1207 = vrot.slane %v1190, 4
        %v1208 = vsel %vm555, 0.0, %v1207
        %v1209 = vrot.slane %v1194, 4
        %v1210 = vsel %vm555, 0.0, %v1209
        %v1211 = vrot.slane %v1202, 4
        %v1212 = vsel %vm555, 0.0, %v1211
        %v1213 = vrot.slane %v1206, 4
        %v1214 = vsel %vm555, 0.0, %v1213
        %v1215 = vrot.slane %v1084, 4
        %v1216 = vsel %vm555, %v1215, %v1059
        %v1217 = vrot.slane %v1059, 4
        %v1218 = vsel %vm555, %v1084, %v1217
        %v1220 = vunpack.c.l.s4 1983009808
        %v1221 = vunpack.c.0.s8 %v1220
        %v1222 = vperm.slane %v1216, %v1221
        %v1224 = vunpack.c.l.s4 1983009808
        %v1225 = vunpack.c.0.s8 %v1224
        %v1226 = vperm.slane %v1218, %v1225
        %v1227 = vrot.slane %v1096, 4
        %v1228 = vsel %vm555, %v1227, %v1072
        %v1229 = vrot.slane %v1072, 4
        %v1230 = vsel %vm555, %v1096, %v1229
        %v1232 = vunpack.c.l.s4 1983009808
        %v1233 = vunpack.c.0.s8 %v1232
        %v1234 = vperm.slane %v1228, %v1233
        %v1236 = vunpack.c.l.s4 1983009808
        %v1237 = vunpack.c.0.s8 %v1236
        %v1238 = vperm.slane %v1230, %v1237
        %v1239 = vrot.slane %v1234, 4
        %v1240 = vsel %vm555, %v1239, %v1222
        %v1241 = vrot.slane %v1222, 4
        %v1242 = vsel %vm555, %v1234, %v1241
        %v1244 = vunpack.c.l.s4 1934713408
        %v1245 = vunpack.c.0.s8 %v1244
        %v1246 = vperm.slane %v1240, %v1245
        %v1248 = vunpack.c.l.s4 1934713408
        %v1249 = vunpack.c.0.s8 %v1248
        %v1250 = vperm.slane %v1242, %v1249
        %v1251 = vrot.slane %v1238, 4
        %v1252 = vsel %vm555, %v1251, %v1226
        %v1253 = vrot.slane %v1226, 4
        %v1254 = vsel %vm555, %v1238, %v1253
        %v1256 = vunpack.c.l.s4 1934713408
        %v1257 = vunpack.c.0.s8 %v1256
        %v1258 = vperm.slane %v1252, %v1257
        %v1260 = vunpack.c.l.s4 1934713408
        %v1261 = vunpack.c.0.s8 %v1260
        %v1262 = vperm.slane %v1254, %v1261
        %v1263 = vrot.slane %v1246, 4
        %v1264 = vsel %vm555, 0.0, %v1263
        %v1265 = vrot.slane %v1250, 4
        %v1266 = vsel %vm555, 0.0, %v1265
        %v1267 = vrot.slane %v1258, 4
        %v1268 = vsel %vm555, 0.0, %v1267
        %v1269 = vrot.slane %v1262, 4
        %v1270 = vsel %vm555, 0.0, %v1269
        %v1271 = vrot.slane %v1086, 4
        %v1272 = vsel %vm555, %v1271, %v1061
        %v1273 = vrot.slane %v1061, 4
        %v1274 = vsel %vm555, %v1086, %v1273
        %v1276 = vunpack.c.l.s4 1983009808
        %v1277 = vunpack.c.0.s8 %v1276
        %v1278 = vperm.slane %v1272, %v1277
        %v1280 = vunpack.c.l.s4 1983009808
        %v1281 = vunpack.c.0.s8 %v1280
        %v1282 = vperm.slane %v1274, %v1281
        %v1283 = vrot.slane %v1098, 4
        %v1284 = vsel %vm555, %v1283, %v1074
        %v1285 = vrot.slane %v1074, 4
        %v1286 = vsel %vm555, %v1098, %v1285
        %v1288 = vunpack.c.l.s4 1983009808
        %v1289 = vunpack.c.0.s8 %v1288
        %v1290 = vperm.slane %v1284, %v1289
        %v1292 = vunpack.c.l.s4 1983009808
        %v1293 = vunpack.c.0.s8 %v1292
        %v1294 = vperm.slane %v1286, %v1293
        %v1295 = vrot.slane %v1290, 4
        %v1296 = vsel %vm555, %v1295, %v1278
        %v1297 = vrot.slane %v1278, 4
        %v1298 = vsel %vm555, %v1290, %v1297
        %v1300 = vunpack.c.l.s4 1934713408
        %v1301 = vunpack.c.0.s8 %v1300
        %v1302 = vperm.slane %v1296, %v1301
        %v1304 = vunpack.c.l.s4 1934713408
        %v1305 = vunpack.c.0.s8 %v1304
        %v1306 = vperm.slane %v1298, %v1305
        %v1307 = vrot.slane %v1294, 4
        %v1308 = vsel %vm555, %v1307, %v1282
        %v1309 = vrot.slane %v1282, 4
        %v1310 = vsel %vm555, %v1294, %v1309
        %v1312 = vunpack.c.l.s4 1934713408
        %v1313 = vunpack.c.0.s8 %v1312
        %v1314 = vperm.slane %v1308, %v1313
        %v1316 = vunpack.c.l.s4 1934713408
        %v1317 = vunpack.c.0.s8 %v1316
        %v1318 = vperm.slane %v1310, %v1317
        %v1319 = vrot.slane %v1302, 4
        %v1320 = vsel %vm555, 0.0, %v1319
        %v1321 = vrot.slane %v1306, 4
        %v1322 = vsel %vm555, 0.0, %v1321
        %v1323 = vrot.slane %v1314, 4
        %v1324 = vsel %vm555, 0.0, %v1323
        %v1325 = vrot.slane %v1318, 4
        %v1326 = vsel %vm555, 0.0, %v1325
        %v1327 = vsel %vm555, %v1153, %v1134
        %v1329 = vunpack.c.l.s4 1983009808
        %v1330 = vunpack.c.0.s8 %v1329
        %v1331 = vperm.slane %v1327, %v1330
        %v1332 = vrot.slane %v1154, 4
        %v1333 = vsel %vm555, %v1332, %v1152
        %v1335 = vunpack.c.l.s4 1983009808
        %v1336 = vunpack.c.0.s8 %v1335
        %v1337 = vperm.slane %v1333, %v1336
        %v1338 = vsel %vm555, %v1157, %v1146
        %v1340 = vunpack.c.l.s4 1983009808
        %v1341 = vunpack.c.0.s8 %v1340
        %v1342 = vperm.slane %v1338, %v1341
        %v1343 = vrot.slane %v1158, 4
        %v1344 = vsel %vm555, %v1343, %v1156
        %v1346 = vunpack.c.l.s4 1983009808
        %v1347 = vunpack.c.0.s8 %v1346
        %v1348 = vperm.slane %v1344, %v1347
        %v1349 = vrot.slane %v1337, 4
        %v1350 = vsel %vm555, %v1349, %v1331
        %v1351 = vrot.slane %v1331, 4
        %v1352 = vsel %vm555, %v1337, %v1351
        %v1354 = vunpack.c.l.s4 1934713408
        %v1355 = vunpack.c.0.s8 %v1354
        %v1356 = vperm.slane %v1350, %v1355
        %v1358 = vunpack.c.l.s4 1934713408
        %v1359 = vunpack.c.0.s8 %v1358
        %v1360 = vperm.slane %v1352, %v1359
        %v1361 = vrot.slane %v1348, 4
        %v1362 = vsel %vm555, %v1361, %v1342
        %v1363 = vrot.slane %v1342, 4
        %v1364 = vsel %vm555, %v1348, %v1363
        %v1366 = vunpack.c.l.s4 1934713408
        %v1367 = vunpack.c.0.s8 %v1366
        %v1368 = vperm.slane %v1362, %v1367
        %v1370 = vunpack.c.l.s4 1934713408
        %v1371 = vunpack.c.0.s8 %v1370
        %v1372 = vperm.slane %v1364, %v1371
        %v1373 = vrot.slane %v1368, 4
        %v1374 = vsel %vm555, %v1373, %v1356
        %v1375 = vrot.slane %v1356, 4
        %v1376 = vsel %vm555, %v1368, %v1375
        %v1377 = vrot.slane %v1372, 4
        %v1378 = vsel %vm555, %v1377, %v1360
        %v1379 = vrot.slane %v1360, 4
        %v1380 = vsel %vm555, %v1372, %v1379
        %v1381 = vsel %vm555, %v1209, %v1190
        %v1383 = vunpack.c.l.s4 1983009808
        %v1384 = vunpack.c.0.s8 %v1383
        %v1385 = vperm.slane %v1381, %v1384
        %v1386 = vrot.slane %v1210, 4
        %v1387 = vsel %vm555, %v1386, %v1208
        %v1389 = vunpack.c.l.s4 1983009808
        %v1390 = vunpack.c.0.s8 %v1389
        %v1391 = vperm.slane %v1387, %v1390
        %v1392 = vsel %vm555, %v1213, %v1202
        %v1394 = vunpack.c.l.s4 1983009808
        %v1395 = vunpack.c.0.s8 %v1394
        %v1396 = vperm.slane %v1392, %v1395
        %v1397 = vrot.slane %v1214, 4
        %v1398 = vsel %vm555, %v1397, %v1212
        %v1400 = vunpack.c.l.s4 1983009808
        %v1401 = vunpack.c.0.s8 %v1400
        %v1402 = vperm.slane %v1398, %v1401
        %v1403 = vrot.slane %v1391, 4
        %v1404 = vsel %vm555, %v1403, %v1385
        %v1405 = vrot.slane %v1385, 4
        %v1406 = vsel %vm555, %v1391, %v1405
        %v1408 = vunpack.c.l.s4 1934713408
        %v1409 = vunpack.c.0.s8 %v1408
        %v1410 = vperm.slane %v1404, %v1409
        %v1412 = vunpack.c.l.s4 1934713408
        %v1413 = vunpack.c.0.s8 %v1412
        %v1414 = vperm.slane %v1406, %v1413
        %v1415 = vrot.slane %v1402, 4
        %v1416 = vsel %vm555, %v1415, %v1396
        %v1417 = vrot.slane %v1396, 4
        %v1418 = vsel %vm555, %v1402, %v1417
        %v1420 = vunpack.c.l.s4 1934713408
        %v1421 = vunpack.c.0.s8 %v1420
        %v1422 = vperm.slane %v1416, %v1421
        %v1424 = vunpack.c.l.s4 1934713408
        %v1425 = vunpack.c.0.s8 %v1424
        %v1426 = vperm.slane %v1418, %v1425
        %v1427 = vrot.slane %v1422, 4
        %v1428 = vsel %vm555, %v1427, %v1410
        %v1429 = vrot.slane %v1410, 4
        %v1430 = vsel %vm555, %v1422, %v1429
        %v1431 = vrot.slane %v1426, 4
        %v1432 = vsel %vm555, %v1431, %v1414
        %v1433 = vrot.slane %v1414, 4
        %v1434 = vsel %vm555, %v1426, %v1433
        %v1435 = vsel %vm555, %v1265, %v1246
        %v1437 = vunpack.c.l.s4 1983009808
        %v1438 = vunpack.c.0.s8 %v1437
        %v1439 = vperm.slane %v1435, %v1438
        %v1440 = vrot.slane %v1266, 4
        %v1441 = vsel %vm555, %v1440, %v1264
        %v1443 = vunpack.c.l.s4 1983009808
        %v1444 = vunpack.c.0.s8 %v1443
        %v1445 = vperm.slane %v1441, %v1444
        %v1446 = vsel %vm555, %v1269, %v1258
        %v1448 = vunpack.c.l.s4 1983009808
        %v1449 = vunpack.c.0.s8 %v1448
        %v1450 = vperm.slane %v1446, %v1449
        %v1451 = vrot.slane %v1270, 4
        %v1452 = vsel %vm555, %v1451, %v1268
        %v1454 = vunpack.c.l.s4 1983009808
        %v1455 = vunpack.c.0.s8 %v1454
        %v1456 = vperm.slane %v1452, %v1455
        %v1457 = vrot.slane %v1445, 4
        %v1458 = vsel %vm555, %v1457, %v1439
        %v1459 = vrot.slane %v1439, 4
        %v1460 = vsel %vm555, %v1445, %v1459
        %v1462 = vunpack.c.l.s4 1934713408
        %v1463 = vunpack.c.0.s8 %v1462
        %v1464 = vperm.slane %v1458, %v1463
        %v1466 = vunpack.c.l.s4 1934713408
        %v1467 = vunpack.c.0.s8 %v1466
        %v1468 = vperm.slane %v1460, %v1467
        %v1469 = vrot.slane %v1456, 4
        %v1470 = vsel %vm555, %v1469, %v1450
        %v1471 = vrot.slane %v1450, 4
        %v1472 = vsel %vm555, %v1456, %v1471
        %v1474 = vunpack.c.l.s4 1934713408
        %v1475 = vunpack.c.0.s8 %v1474
        %v1476 = vperm.slane %v1470, %v1475
        %v1478 = vunpack.c.l.s4 1934713408
        %v1479 = vunpack.c.0.s8 %v1478
        %v1480 = vperm.slane %v1472, %v1479
        %v1481 = vrot.slane %v1476, 4
        %v1482 = vsel %vm555, %v1481, %v1464
        %v1483 = vrot.slane %v1464, 4
        %v1484 = vsel %vm555, %v1476, %v1483
        %v1485 = vrot.slane %v1480, 4
        %v1486 = vsel %vm555, %v1485, %v1468
        %v1487 = vrot.slane %v1468, 4
        %v1488 = vsel %vm555, %v1480, %v1487
        %v1489 = vsel %vm555, %v1321, %v1302
        %v1491 = vunpack.c.l.s4 1983009808
        %v1492 = vunpack.c.0.s8 %v1491
        %v1493 = vperm.slane %v1489, %v1492
        %v1494 = vrot.slane %v1322, 4
        %v1495 = vsel %vm555, %v1494, %v1320
        %v1497 = vunpack.c.l.s4 1983009808
        %v1498 = vunpack.c.0.s8 %v1497
        %v1499 = vperm.slane %v1495, %v1498
        %v1500 = vsel %vm555, %v1325, %v1314
        %v1502 = vunpack.c.l.s4 1983009808
        %v1503 = vunpack.c.0.s8 %v1502
        %v1504 = vperm.slane %v1500, %v1503
        %v1505 = vrot.slane %v1326, 4
        %v1506 = vsel %vm555, %v1505, %v1324
        %v1508 = vunpack.c.l.s4 1983009808
        %v1509 = vunpack.c.0.s8 %v1508
        %v1510 = vperm.slane %v1506, %v1509
        %v1511 = vrot.slane %v1499, 4
        %v1512 = vsel %vm555, %v1511, %v1493
        %v1513 = vrot.slane %v1493, 4
        %v1514 = vsel %vm555, %v1499, %v1513
        %v1516 = vunpack.c.l.s4 1934713408
        %v1517 = vunpack.c.0.s8 %v1516
        %v1518 = vperm.slane %v1512, %v1517
        %v1520 = vunpack.c.l.s4 1934713408
        %v1521 = vunpack.c.0.s8 %v1520
        %v1522 = vperm.slane %v1514, %v1521
        %v1523 = vrot.slane %v1510, 4
        %v1524 = vsel %vm555, %v1523, %v1504
        %v1525 = vrot.slane %v1504, 4
        %v1526 = vsel %vm555, %v1510, %v1525
        %v1528 = vunpack.c.l.s4 1934713408
        %v1529 = vunpack.c.0.s8 %v1528
        %v1530 = vperm.slane %v1524, %v1529
        %v1532 = vunpack.c.l.s4 1934713408
        %v1533 = vunpack.c.0.s8 %v1532
        %v1534 = vperm.slane %v1526, %v1533
        %v1535 = vrot.slane %v1530, 4
        %v1536 = vsel %vm555, %v1535, %v1518
        %v1537 = vrot.slane %v1518, 4
        %v1538 = vsel %vm555, %v1530, %v1537
        %v1539 = vrot.slane %v1534, 4
        %v1540 = vsel %vm555, %v1539, %v1522
        %v1541 = vrot.slane %v1522, 4
        %v1542 = vsel %vm555, %v1534, %v1541
        %v1543 = vpack.c.bf16 %v1374, %v1374
        %v1544 = vpack.c.bf16 %v1428, %v1428
        %v1545 = vpack.c.bf16 %v1482, %v1482
        %v1546 = vpack.c.bf16 %v1536, %v1536
        %v1547 = vpack.c.bf16 %v1376, %v1376
        %v1548 = vpack.c.bf16 %v1430, %v1430
        %v1549 = vpack.c.bf16 %v1484, %v1484
        %v1550 = vpack.c.bf16 %v1538, %v1538
        %v1551 = vpack.c.bf16 %v1378, %v1378
        %v1552 = vpack.c.bf16 %v1432, %v1432
        %v1553 = vpack.c.bf16 %v1486, %v1486
        %v1554 = vpack.c.bf16 %v1540, %v1540
        %v1555 = vpack.c.bf16 %v1380, %v1380
        %v1556 = vpack.c.bf16 %v1434, %v1434
        %v1557 = vpack.c.bf16 %v1488, %v1488
        %v1558 = vpack.c.bf16 %v1542, %v1542
        %1559 = vst.msk [vmem:[%s330] sm:$0xf] %vm1011, %v1543
        %1560 = vst.msk [vmem:[%s330 + $0x4] sm:$0xf] %vm1011, %v1544
        %1561 = vst.msk [vmem:[%s330 + $0x8] sm:$0xf] %vm1011, %v1545
        %1562 = vst.msk [vmem:[%s330 + $0xc] sm:$0xf] %vm1011, %v1546
        %1563 = vst.msk [vmem:[%s330 + $0x10] sm:$0xf] %vm1011, %v1547
        %1564 = vst.msk [vmem:[%s330 + $0x14] sm:$0xf] %vm1011, %v1548
        %1565 = vst.msk [vmem:[%s330 + $0x18] sm:$0xf] %vm1011, %v1549
        %1566 = vst.msk [vmem:[%s330 + $0x1c] sm:$0xf] %vm1011, %v1550
        %1567 = vst.msk [vmem:[%s330 + $0x20] sm:$0xf] %vm1011, %v1551
        %1568 = vst.msk [vmem:[%s330 + $0x24] sm:$0xf] %vm1011, %v1552
        %1569 = vst.msk [vmem:[%s330 + $0x28] sm:$0xf] %vm1011, %v1553
        %1570 = vst.msk [vmem:[%s330 + $0x2c] sm:$0xf] %vm1011, %v1554
        %1571 = vst.msk [vmem:[%s330 + $0x30] sm:$0xf] %vm1011, %v1555
        %1572 = vst.msk [vmem:[%s330 + $0x34] sm:$0xf] %vm1011, %v1556
        %1573 = vst.msk [vmem:[%s330 + $0x38] sm:$0xf] %vm1011, %v1557
        %1574 = vst.msk [vmem:[%s330 + $0x3c] sm:$0xf] %vm1011, %v1558
        %v1575 = vld [vmem:[%s5] sm:$0xf]
        %v1576 = vld [vmem:[%s5 + $0x4] sm:$0xf]
        %v1577 = vld [vmem:[%s5 + $0x8] sm:$0xf]
        %v1578 = vld [vmem:[%s5 + $0xc] sm:$0xf]
        %v1583 = vunpack.c.l.b16 %v1575
        %v1584 = vunpack.c.l.b16 %v1576
        %v1585 = vunpack.c.l.b16 %v1577
        %v1586 = vunpack.c.l.b16 %v1578
        %v1587 = vpack.c.b16 %v1584, %v1583
        %v1588 = vpack.c.b16 %v1586, %v1585
        %1591 = vmatpush.bf16.msra.mxu0 0
        %1592 = vmatpush.bf16.msra.mxu0 0
        %1593 = vmatpush.bf16.msra.mxu0 0
        %1594 = vmatpush.bf16.msra.mxu0 0
        %1595 = vmatpush.bf16.msra.mxu0 0
        %1596 = vmatpush.bf16.msra.mxu0 0
        %1597 = vmatpush.bf16.msra.mxu0 %v1588
        %1598 = vmatpush.bf16.msra.mxu0 %v1587
        %1599 = vmatmul.bf16.gmra.mxu0 %v486
        %v1600 = vpop.f32.mrf.mxu0
        %v1601 = vadd.f32 0.0, %v1600
        %v1602 = vpop.f32.mrf.mxu0
        %v1603 = vadd.f32 0.0, %v1602
        %1604 = vmatmul.bf16.gmra.mxu0 %v489
        %v1605 = vpop.f32.mrf.mxu0
        %v1606 = vadd.f32 0.0, %v1605
        %v1607 = vpop.f32.mrf.mxu0
        %v1608 = vadd.f32 0.0, %v1607
        %1609 = vdwg.mxu0
        %1614 = vrot.lane.b32.xlu0 %v1601, 120
        %v1615 = vpop.permute.xlu0 %1614
        %1616 = vrot.lane.b32.xlu0 %v1603, 120
        %v1617 = vpop.permute.xlu0 %1616
        %1618 = vrot.lane.b32.xlu0 %v1606, 120
        %v1619 = vpop.permute.xlu0 %1618
        %1620 = vrot.lane.b32.xlu0 %v1608, 120
        %v1621 = vpop.permute.xlu0 %1620
        %1626 = vrot.lane.b32.xlu0 %v1601, 112
        %v1627 = vpop.permute.xlu0 %1626
        %1628 = vrot.lane.b32.xlu0 %v1603, 112
        %v1629 = vpop.permute.xlu0 %1628
        %1630 = vrot.lane.b32.xlu0 %v1606, 112
        %v1631 = vpop.permute.xlu0 %1630
        %1632 = vrot.lane.b32.xlu0 %v1608, 112
        %v1633 = vpop.permute.xlu0 %1632
        %1638 = vrot.lane.b32.xlu0 %v1601, 104
        %v1639 = vpop.permute.xlu0 %1638
        %1640 = vrot.lane.b32.xlu0 %v1603, 104
        %v1641 = vpop.permute.xlu0 %1640
        %1642 = vrot.lane.b32.xlu0 %v1606, 104
        %v1643 = vpop.permute.xlu0 %1642
        %1644 = vrot.lane.b32.xlu0 %v1608, 104
        %v1645 = vpop.permute.xlu0 %1644
        %v1650 = vrot.slane %v1627, 4
        %v1651 = vsel %vm555, %v1650, %v1601
        %v1652 = vrot.slane %v1601, 4
        %v1653 = vsel %vm555, %v1627, %v1652
        %v1655 = vunpack.c.l.s4 1983009808
        %v1656 = vunpack.c.0.s8 %v1655
        %v1657 = vperm.slane %v1651, %v1656
        %v1659 = vunpack.c.l.s4 1983009808
        %v1660 = vunpack.c.0.s8 %v1659
        %v1661 = vperm.slane %v1653, %v1660
        %v1662 = vrot.slane %v1639, 4
        %v1663 = vsel %vm555, %v1662, %v1615
        %v1664 = vrot.slane %v1615, 4
        %v1665 = vsel %vm555, %v1639, %v1664
        %v1667 = vunpack.c.l.s4 1983009808
        %v1668 = vunpack.c.0.s8 %v1667
        %v1669 = vperm.slane %v1663, %v1668
        %v1671 = vunpack.c.l.s4 1983009808
        %v1672 = vunpack.c.0.s8 %v1671
        %v1673 = vperm.slane %v1665, %v1672
        %v1674 = vrot.slane %v1669, 4
        %v1675 = vsel %vm555, %v1674, %v1657
        %v1676 = vrot.slane %v1657, 4
        %v1677 = vsel %vm555, %v1669, %v1676
        %v1679 = vunpack.c.l.s4 1934713408
        %v1680 = vunpack.c.0.s8 %v1679
        %v1681 = vperm.slane %v1675, %v1680
        %v1683 = vunpack.c.l.s4 1934713408
        %v1684 = vunpack.c.0.s8 %v1683
        %v1685 = vperm.slane %v1677, %v1684
        %v1686 = vrot.slane %v1673, 4
        %v1687 = vsel %vm555, %v1686, %v1661
        %v1688 = vrot.slane %v1661, 4
        %v1689 = vsel %vm555, %v1673, %v1688
        %v1691 = vunpack.c.l.s4 1934713408
        %v1692 = vunpack.c.0.s8 %v1691
        %v1693 = vperm.slane %v1687, %v1692
        %v1695 = vunpack.c.l.s4 1934713408
        %v1696 = vunpack.c.0.s8 %v1695
        %v1697 = vperm.slane %v1689, %v1696
        %v1698 = vrot.slane %v1681, 4
        %v1699 = vsel %vm555, 0.0, %v1698
        %v1700 = vrot.slane %v1685, 4
        %v1701 = vsel %vm555, 0.0, %v1700
        %v1702 = vrot.slane %v1693, 4
        %v1703 = vsel %vm555, 0.0, %v1702
        %v1704 = vrot.slane %v1697, 4
        %v1705 = vsel %vm555, 0.0, %v1704
        %v1706 = vrot.slane %v1629, 4
        %v1707 = vsel %vm555, %v1706, %v1603
        %v1708 = vrot.slane %v1603, 4
        %v1709 = vsel %vm555, %v1629, %v1708
        %v1711 = vunpack.c.l.s4 1983009808
        %v1712 = vunpack.c.0.s8 %v1711
        %v1713 = vperm.slane %v1707, %v1712
        %v1715 = vunpack.c.l.s4 1983009808
        %v1716 = vunpack.c.0.s8 %v1715
        %v1717 = vperm.slane %v1709, %v1716
        %v1718 = vrot.slane %v1641, 4
        %v1719 = vsel %vm555, %v1718, %v1617
        %v1720 = vrot.slane %v1617, 4
        %v1721 = vsel %vm555, %v1641, %v1720
        %v1723 = vunpack.c.l.s4 1983009808
        %v1724 = vunpack.c.0.s8 %v1723
        %v1725 = vperm.slane %v1719, %v1724
        %v1727 = vunpack.c.l.s4 1983009808
        %v1728 = vunpack.c.0.s8 %v1727
        %v1729 = vperm.slane %v1721, %v1728
        %v1730 = vrot.slane %v1725, 4
        %v1731 = vsel %vm555, %v1730, %v1713
        %v1732 = vrot.slane %v1713, 4
        %v1733 = vsel %vm555, %v1725, %v1732
        %v1735 = vunpack.c.l.s4 1934713408
        %v1736 = vunpack.c.0.s8 %v1735
        %v1737 = vperm.slane %v1731, %v1736
        %v1739 = vunpack.c.l.s4 1934713408
        %v1740 = vunpack.c.0.s8 %v1739
        %v1741 = vperm.slane %v1733, %v1740
        %v1742 = vrot.slane %v1729, 4
        %v1743 = vsel %vm555, %v1742, %v1717
        %v1744 = vrot.slane %v1717, 4
        %v1745 = vsel %vm555, %v1729, %v1744
        %v1747 = vunpack.c.l.s4 1934713408
        %v1748 = vunpack.c.0.s8 %v1747
        %v1749 = vperm.slane %v1743, %v1748
        %v1751 = vunpack.c.l.s4 1934713408
        %v1752 = vunpack.c.0.s8 %v1751
        %v1753 = vperm.slane %v1745, %v1752
        %v1754 = vrot.slane %v1737, 4
        %v1755 = vsel %vm555, 0.0, %v1754
        %v1756 = vrot.slane %v1741, 4
        %v1757 = vsel %vm555, 0.0, %v1756
        %v1758 = vrot.slane %v1749, 4
        %v1759 = vsel %vm555, 0.0, %v1758
        %v1760 = vrot.slane %v1753, 4
        %v1761 = vsel %vm555, 0.0, %v1760
        %v1762 = vrot.slane %v1631, 4
        %v1763 = vsel %vm555, %v1762, %v1606
        %v1764 = vrot.slane %v1606, 4
        %v1765 = vsel %vm555, %v1631, %v1764
        %v1767 = vunpack.c.l.s4 1983009808
        %v1768 = vunpack.c.0.s8 %v1767
        %v1769 = vperm.slane %v1763, %v1768
        %v1771 = vunpack.c.l.s4 1983009808
        %v1772 = vunpack.c.0.s8 %v1771
        %v1773 = vperm.slane %v1765, %v1772
        %v1774 = vrot.slane %v1643, 4
        %v1775 = vsel %vm555, %v1774, %v1619
        %v1776 = vrot.slane %v1619, 4
        %v1777 = vsel %vm555, %v1643, %v1776
        %v1779 = vunpack.c.l.s4 1983009808
        %v1780 = vunpack.c.0.s8 %v1779
        %v1781 = vperm.slane %v1775, %v1780
        %v1783 = vunpack.c.l.s4 1983009808
        %v1784 = vunpack.c.0.s8 %v1783
        %v1785 = vperm.slane %v1777, %v1784
        %v1786 = vrot.slane %v1781, 4
        %v1787 = vsel %vm555, %v1786, %v1769
        %v1788 = vrot.slane %v1769, 4
        %v1789 = vsel %vm555, %v1781, %v1788
        %v1791 = vunpack.c.l.s4 1934713408
        %v1792 = vunpack.c.0.s8 %v1791
        %v1793 = vperm.slane %v1787, %v1792
        %v1795 = vunpack.c.l.s4 1934713408
        %v1796 = vunpack.c.0.s8 %v1795
        %v1797 = vperm.slane %v1789, %v1796
        %v1798 = vrot.slane %v1785, 4
        %v1799 = vsel %vm555, %v1798, %v1773
        %v1800 = vrot.slane %v1773, 4
        %v1801 = vsel %vm555, %v1785, %v1800
        %v1803 = vunpack.c.l.s4 1934713408
        %v1804 = vunpack.c.0.s8 %v1803
        %v1805 = vperm.slane %v1799, %v1804
        %v1807 = vunpack.c.l.s4 1934713408
        %v1808 = vunpack.c.0.s8 %v1807
        %v1809 = vperm.slane %v1801, %v1808
        %v1810 = vrot.slane %v1793, 4
        %v1811 = vsel %vm555, 0.0, %v1810
        %v1812 = vrot.slane %v1797, 4
        %v1813 = vsel %vm555, 0.0, %v1812
        %v1814 = vrot.slane %v1805, 4
        %v1815 = vsel %vm555, 0.0, %v1814
        %v1816 = vrot.slane %v1809, 4
        %v1817 = vsel %vm555, 0.0, %v1816
        %v1818 = vrot.slane %v1633, 4
        %v1819 = vsel %vm555, %v1818, %v1608
        %v1820 = vrot.slane %v1608, 4
        %v1821 = vsel %vm555, %v1633, %v1820
        %v1823 = vunpack.c.l.s4 1983009808
        %v1824 = vunpack.c.0.s8 %v1823
        %v1825 = vperm.slane %v1819, %v1824
        %v1827 = vunpack.c.l.s4 1983009808
        %v1828 = vunpack.c.0.s8 %v1827
        %v1829 = vperm.slane %v1821, %v1828
        %v1830 = vrot.slane %v1645, 4
        %v1831 = vsel %vm555, %v1830, %v1621
        %v1832 = vrot.slane %v1621, 4
        %v1833 = vsel %vm555, %v1645, %v1832
        %v1835 = vunpack.c.l.s4 1983009808
        %v1836 = vunpack.c.0.s8 %v1835
        %v1837 = vperm.slane %v1831, %v1836
        %v1839 = vunpack.c.l.s4 1983009808
        %v1840 = vunpack.c.0.s8 %v1839
        %v1841 = vperm.slane %v1833, %v1840
        %v1842 = vrot.slane %v1837, 4
        %v1843 = vsel %vm555, %v1842, %v1825
        %v1844 = vrot.slane %v1825, 4
        %v1845 = vsel %vm555, %v1837, %v1844
        %v1847 = vunpack.c.l.s4 1934713408
        %v1848 = vunpack.c.0.s8 %v1847
        %v1849 = vperm.slane %v1843, %v1848
        %v1851 = vunpack.c.l.s4 1934713408
        %v1852 = vunpack.c.0.s8 %v1851
        %v1853 = vperm.slane %v1845, %v1852
        %v1854 = vrot.slane %v1841, 4
        %v1855 = vsel %vm555, %v1854, %v1829
        %v1856 = vrot.slane %v1829, 4
        %v1857 = vsel %vm555, %v1841, %v1856
        %v1859 = vunpack.c.l.s4 1934713408
        %v1860 = vunpack.c.0.s8 %v1859
        %v1861 = vperm.slane %v1855, %v1860
        %v1863 = vunpack.c.l.s4 1934713408
        %v1864 = vunpack.c.0.s8 %v1863
        %v1865 = vperm.slane %v1857, %v1864
        %v1866 = vrot.slane %v1849, 4
        %v1867 = vsel %vm555, 0.0, %v1866
        %v1868 = vrot.slane %v1853, 4
        %v1869 = vsel %vm555, 0.0, %v1868
        %v1870 = vrot.slane %v1861, 4
        %v1871 = vsel %vm555, 0.0, %v1870
        %v1872 = vrot.slane %v1865, 4
        %v1873 = vsel %vm555, 0.0, %v1872
        %v1874 = vsel %vm555, %v1700, %v1681
        %v1876 = vunpack.c.l.s4 1983009808
        %v1877 = vunpack.c.0.s8 %v1876
        %v1878 = vperm.slane %v1874, %v1877
        %v1879 = vrot.slane %v1701, 4
        %v1880 = vsel %vm555, %v1879, %v1699
        %v1882 = vunpack.c.l.s4 1983009808
        %v1883 = vunpack.c.0.s8 %v1882
        %v1884 = vperm.slane %v1880, %v1883
        %v1885 = vsel %vm555, %v1704, %v1693
        %v1887 = vunpack.c.l.s4 1983009808
        %v1888 = vunpack.c.0.s8 %v1887
        %v1889 = vperm.slane %v1885, %v1888
        %v1890 = vrot.slane %v1705, 4
        %v1891 = vsel %vm555, %v1890, %v1703
        %v1893 = vunpack.c.l.s4 1983009808
        %v1894 = vunpack.c.0.s8 %v1893
        %v1895 = vperm.slane %v1891, %v1894
        %v1896 = vrot.slane %v1884, 4
        %v1897 = vsel %vm555, %v1896, %v1878
        %v1898 = vrot.slane %v1878, 4
        %v1899 = vsel %vm555, %v1884, %v1898
        %v1901 = vunpack.c.l.s4 1934713408
        %v1902 = vunpack.c.0.s8 %v1901
        %v1903 = vperm.slane %v1897, %v1902
        %v1905 = vunpack.c.l.s4 1934713408
        %v1906 = vunpack.c.0.s8 %v1905
        %v1907 = vperm.slane %v1899, %v1906
        %v1908 = vrot.slane %v1895, 4
        %v1909 = vsel %vm555, %v1908, %v1889
        %v1910 = vrot.slane %v1889, 4
        %v1911 = vsel %vm555, %v1895, %v1910
        %v1913 = vunpack.c.l.s4 1934713408
        %v1914 = vunpack.c.0.s8 %v1913
        %v1915 = vperm.slane %v1909, %v1914
        %v1917 = vunpack.c.l.s4 1934713408
        %v1918 = vunpack.c.0.s8 %v1917
        %v1919 = vperm.slane %v1911, %v1918
        %v1920 = vrot.slane %v1915, 4
        %v1921 = vsel %vm555, %v1920, %v1903
        %v1922 = vrot.slane %v1903, 4
        %v1923 = vsel %vm555, %v1915, %v1922
        %v1924 = vrot.slane %v1919, 4
        %v1925 = vsel %vm555, %v1924, %v1907
        %v1926 = vrot.slane %v1907, 4
        %v1927 = vsel %vm555, %v1919, %v1926
        %v1928 = vsel %vm555, %v1756, %v1737
        %v1930 = vunpack.c.l.s4 1983009808
        %v1931 = vunpack.c.0.s8 %v1930
        %v1932 = vperm.slane %v1928, %v1931
        %v1933 = vrot.slane %v1757, 4
        %v1934 = vsel %vm555, %v1933, %v1755
        %v1936 = vunpack.c.l.s4 1983009808
        %v1937 = vunpack.c.0.s8 %v1936
        %v1938 = vperm.slane %v1934, %v1937
        %v1939 = vsel %vm555, %v1760, %v1749
        %v1941 = vunpack.c.l.s4 1983009808
        %v1942 = vunpack.c.0.s8 %v1941
        %v1943 = vperm.slane %v1939, %v1942
        %v1944 = vrot.slane %v1761, 4
        %v1945 = vsel %vm555, %v1944, %v1759
        %v1947 = vunpack.c.l.s4 1983009808
        %v1948 = vunpack.c.0.s8 %v1947
        %v1949 = vperm.slane %v1945, %v1948
        %v1950 = vrot.slane %v1938, 4
        %v1951 = vsel %vm555, %v1950, %v1932
        %v1952 = vrot.slane %v1932, 4
        %v1953 = vsel %vm555, %v1938, %v1952
        %v1955 = vunpack.c.l.s4 1934713408
        %v1956 = vunpack.c.0.s8 %v1955
        %v1957 = vperm.slane %v1951, %v1956
        %v1959 = vunpack.c.l.s4 1934713408
        %v1960 = vunpack.c.0.s8 %v1959
        %v1961 = vperm.slane %v1953, %v1960
        %v1962 = vrot.slane %v1949, 4
        %v1963 = vsel %vm555, %v1962, %v1943
        %v1964 = vrot.slane %v1943, 4
        %v1965 = vsel %vm555, %v1949, %v1964
        %v1967 = vunpack.c.l.s4 1934713408
        %v1968 = vunpack.c.0.s8 %v1967
        %v1969 = vperm.slane %v1963, %v1968
        %v1971 = vunpack.c.l.s4 1934713408
        %v1972 = vunpack.c.0.s8 %v1971
        %v1973 = vperm.slane %v1965, %v1972
        %v1974 = vrot.slane %v1969, 4
        %v1975 = vsel %vm555, %v1974, %v1957
        %v1976 = vrot.slane %v1957, 4
        %v1977 = vsel %vm555, %v1969, %v1976
        %v1978 = vrot.slane %v1973, 4
        %v1979 = vsel %vm555, %v1978, %v1961
        %v1980 = vrot.slane %v1961, 4
        %v1981 = vsel %vm555, %v1973, %v1980
        %v1982 = vsel %vm555, %v1812, %v1793
        %v1984 = vunpack.c.l.s4 1983009808
        %v1985 = vunpack.c.0.s8 %v1984
        %v1986 = vperm.slane %v1982, %v1985
        %v1987 = vrot.slane %v1813, 4
        %v1988 = vsel %vm555, %v1987, %v1811
        %v1990 = vunpack.c.l.s4 1983009808
        %v1991 = vunpack.c.0.s8 %v1990
        %v1992 = vperm.slane %v1988, %v1991
        %v1993 = vsel %vm555, %v1816, %v1805
        %v1995 = vunpack.c.l.s4 1983009808
        %v1996 = vunpack.c.0.s8 %v1995
        %v1997 = vperm.slane %v1993, %v1996
        %v1998 = vrot.slane %v1817, 4
        %v1999 = vsel %vm555, %v1998, %v1815
        %v2001 = vunpack.c.l.s4 1983009808
        %v2002 = vunpack.c.0.s8 %v2001
        %v2003 = vperm.slane %v1999, %v2002
        %v2004 = vrot.slane %v1992, 4
        %v2005 = vsel %vm555, %v2004, %v1986
        %v2006 = vrot.slane %v1986, 4
        %v2007 = vsel %vm555, %v1992, %v2006
        %v2009 = vunpack.c.l.s4 1934713408
        %v2010 = vunpack.c.0.s8 %v2009
        %v2011 = vperm.slane %v2005, %v2010
        %v2013 = vunpack.c.l.s4 1934713408
        %v2014 = vunpack.c.0.s8 %v2013
        %v2015 = vperm.slane %v2007, %v2014
        %v2016 = vrot.slane %v2003, 4
        %v2017 = vsel %vm555, %v2016, %v1997
        %v2018 = vrot.slane %v1997, 4
        %v2019 = vsel %vm555, %v2003, %v2018
        %v2021 = vunpack.c.l.s4 1934713408
        %v2022 = vunpack.c.0.s8 %v2021
        %v2023 = vperm.slane %v2017, %v2022
        %v2025 = vunpack.c.l.s4 1934713408
        %v2026 = vunpack.c.0.s8 %v2025
        %v2027 = vperm.slane %v2019, %v2026
        %v2028 = vrot.slane %v2023, 4
        %v2029 = vsel %vm555, %v2028, %v2011
        %v2030 = vrot.slane %v2011, 4
        %v2031 = vsel %vm555, %v2023, %v2030
        %v2032 = vrot.slane %v2027, 4
        %v2033 = vsel %vm555, %v2032, %v2015
        %v2034 = vrot.slane %v2015, 4
        %v2035 = vsel %vm555, %v2027, %v2034
        %v2036 = vsel %vm555, %v1868, %v1849
        %v2038 = vunpack.c.l.s4 1983009808
        %v2039 = vunpack.c.0.s8 %v2038
        %v2040 = vperm.slane %v2036, %v2039
        %v2041 = vrot.slane %v1869, 4
        %v2042 = vsel %vm555, %v2041, %v1867
        %v2044 = vunpack.c.l.s4 1983009808
        %v2045 = vunpack.c.0.s8 %v2044
        %v2046 = vperm.slane %v2042, %v2045
        %v2047 = vsel %vm555, %v1872, %v1861
        %v2049 = vunpack.c.l.s4 1983009808
        %v2050 = vunpack.c.0.s8 %v2049
        %v2051 = vperm.slane %v2047, %v2050
        %v2052 = vrot.slane %v1873, 4
        %v2053 = vsel %vm555, %v2052, %v1871
        %v2055 = vunpack.c.l.s4 1983009808
        %v2056 = vunpack.c.0.s8 %v2055
        %v2057 = vperm.slane %v2053, %v2056
        %v2058 = vrot.slane %v2046, 4
        %v2059 = vsel %vm555, %v2058, %v2040
        %v2060 = vrot.slane %v2040, 4
        %v2061 = vsel %vm555, %v2046, %v2060
        %v2063 = vunpack.c.l.s4 1934713408
        %v2064 = vunpack.c.0.s8 %v2063
        %v2065 = vperm.slane %v2059, %v2064
        %v2067 = vunpack.c.l.s4 1934713408
        %v2068 = vunpack.c.0.s8 %v2067
        %v2069 = vperm.slane %v2061, %v2068
        %v2070 = vrot.slane %v2057, 4
        %v2071 = vsel %vm555, %v2070, %v2051
        %v2072 = vrot.slane %v2051, 4
        %v2073 = vsel %vm555, %v2057, %v2072
        %v2075 = vunpack.c.l.s4 1934713408
        %v2076 = vunpack.c.0.s8 %v2075
        %v2077 = vperm.slane %v2071, %v2076
        %v2079 = vunpack.c.l.s4 1934713408
        %v2080 = vunpack.c.0.s8 %v2079
        %v2081 = vperm.slane %v2073, %v2080
        %v2082 = vrot.slane %v2077, 4
        %v2083 = vsel %vm555, %v2082, %v2065
        %v2084 = vrot.slane %v2065, 4
        %v2085 = vsel %vm555, %v2077, %v2084
        %v2086 = vrot.slane %v2081, 4
        %v2087 = vsel %vm555, %v2086, %v2069
        %v2088 = vrot.slane %v2069, 4
        %v2089 = vsel %vm555, %v2081, %v2088
        %v2090 = vpack.c.bf16 %v1921, %v1921
        %v2091 = vpack.c.bf16 %v1975, %v1975
        %v2092 = vpack.c.bf16 %v2029, %v2029
        %v2093 = vpack.c.bf16 %v2083, %v2083
        %v2094 = vpack.c.bf16 %v1923, %v1923
        %v2095 = vpack.c.bf16 %v1977, %v1977
        %v2096 = vpack.c.bf16 %v2031, %v2031
        %v2097 = vpack.c.bf16 %v2085, %v2085
        %v2098 = vpack.c.bf16 %v1925, %v1925
        %v2099 = vpack.c.bf16 %v1979, %v1979
        %v2100 = vpack.c.bf16 %v2033, %v2033
        %v2101 = vpack.c.bf16 %v2087, %v2087
        %v2102 = vpack.c.bf16 %v1927, %v1927
        %v2103 = vpack.c.bf16 %v1981, %v1981
        %v2104 = vpack.c.bf16 %v2035, %v2035
        %v2105 = vpack.c.bf16 %v2089, %v2089
        %2106 = vst.msk [vmem:[%s336] sm:$0xf] %vm1011, %v2090
        %2107 = vst.msk [vmem:[%s336 + $0x4] sm:$0xf] %vm1011, %v2091
        %2108 = vst.msk [vmem:[%s336 + $0x8] sm:$0xf] %vm1011, %v2092
        %2109 = vst.msk [vmem:[%s336 + $0xc] sm:$0xf] %vm1011, %v2093
        %2110 = vst.msk [vmem:[%s336 + $0x10] sm:$0xf] %vm1011, %v2094
        %2111 = vst.msk [vmem:[%s336 + $0x14] sm:$0xf] %vm1011, %v2095
        %2112 = vst.msk [vmem:[%s336 + $0x18] sm:$0xf] %vm1011, %v2096
        %2113 = vst.msk [vmem:[%s336 + $0x1c] sm:$0xf] %vm1011, %v2097
        %2114 = vst.msk [vmem:[%s336 + $0x20] sm:$0xf] %vm1011, %v2098
        %2115 = vst.msk [vmem:[%s336 + $0x24] sm:$0xf] %vm1011, %v2099
        %2116 = vst.msk [vmem:[%s336 + $0x28] sm:$0xf] %vm1011, %v2100
        %2117 = vst.msk [vmem:[%s336 + $0x2c] sm:$0xf] %vm1011, %v2101
        %2118 = vst.msk [vmem:[%s336 + $0x30] sm:$0xf] %vm1011, %v2102
        %2119 = vst.msk [vmem:[%s336 + $0x34] sm:$0xf] %vm1011, %v2103
        %2120 = vst.msk [vmem:[%s336 + $0x38] sm:$0xf] %vm1011, %v2104
        %2121 = vst.msk [vmem:[%s336 + $0x3c] sm:$0xf] %vm1011, %v2105
        %s2122 = sand.u32 %s175, 1
        %s2123 = sand.u32 %s175, 1
        %s2124 = smul.addr %s2123, 64
        %s2125 = scalar_lea.vmem [#allocation2], %s2124
        %s2126 = sand.u32 %s203, 1
        %s2127 = sand.u32 %s203, 1
        %s2128 = smul.addr %s2127, 64
        %s2129 = scalar_lea.vmem [#allocation3], %s2128
        %s2130 = sand.u32 %s231, 1
        %s2131 = sand.u32 %s231, 1
        %s2132 = smul.addr %s2131, 64
        %s2133 = scalar_lea.vmem [#allocation4], %s2132
        // Predicated region
        $region45: #{tpu_custom_call.1} parent=43 // pred_check
          %p2134 = pneg %p185
        $region46: #{tpu_custom_call.1} parent=43 // pred_check_branch
          %2136 = sbr.rel (%p2134) target = $region48
        $region47: #{tpu_custom_call.1} parent=43 // pred_region
          %s2137 = smul.u32 4, %s25
          %s2138 = smul.addr %s24, 32
          %s2139 = sadd.s32 %s2137, %s2138
          %s2140 = smul.addr %s2139, 4
          %s2141 = scalar_lea.vmem %s6, %s2140
          // Predicated region
          $region49: #{tpu_custom_call.1} parent=47 // pred_check
            _
          $region50: #{tpu_custom_call.1} parent=47 // pred_check_branch
            %2143 = sbr.rel (0) target = $region52
          $region51: #{tpu_custom_call.1} parent=47 // pred_region
            // Predicated region
            $region53: #{tpu_custom_call.1} parent=51 // pred_check
              _
            $region54: #{tpu_custom_call.1} parent=51 // pred_check_branch
              %2145 = sbr.rel target = $region56
            $region55: #{tpu_custom_call.1} parent=51 // pred_region
              // Predicated region
              $region68: #{tpu_custom_call.1} parent=55 // pred_check
                _
              $region69: #{tpu_custom_call.1} parent=55 // pred_check_branch
                %2191 = sbr.rel (0) target = $region71
              $region70: #{tpu_custom_call.1} parent=55 // pred_region
                loop: start=0, step=1, limit=1
                $region72: #{tpu_custom_call.1} parent=70 // loop_pre_header
                  _
                $region73: #{tpu_custom_call.1} parent=70 // loop_header
                  %s2193 = sphi 0, %s2197
                  %p2194 = scmp.ge.s32.totalorder %s2193, 1
                  %s2198 = sphi %s2125, %s2125
                  %s2199 = sphi %s2141, %s2141
                $region74: #{tpu_custom_call.1} parent=70 // loop_header_branch
                  %2196 = sbr.rel (%p2194) target = $region78
                $region75: #{tpu_custom_call.1} parent=70 // loop_body
                  _
                $region76: #{tpu_custom_call.1} parent=70 // loop_footer
                  %s2197 = sadd.s32 1, %s2193
                $region77: #{tpu_custom_call.1} parent=70 // loop_footer_branch
                  %2192 = sbr.rel target = $region73
                $region78: #{tpu_custom_call.1} parent=70 // loop_exit
                  _
                %s2201 = ssub.s32 16, 1
                loop: start=0, step=1, limit=1
                $region79: #{tpu_custom_call.1} parent=70 // loop_pre_header
                  _
                $region80: #{tpu_custom_call.1} parent=70 // loop_header
                  %s2203 = sphi 0, %s2207
                  %p2204 = scmp.ge.s32.totalorder %s2203, 1
                  %s2208 = sphi %s2125, %s2125
                  %s2209 = sphi %s2141, %s2141
                $region81: #{tpu_custom_call.1} parent=70 // loop_header_branch
                  %2206 = sbr.rel (%p2204) target = $region85
                $region82: #{tpu_custom_call.1} parent=70 // loop_body
                  %v2210 = vld [vmem:[%s2208] sm:%s2201]
                  %2211 = vst [vmem:[%s2209] sm:%s2201] %v2210
                  %v2212 = vld [vmem:[%s2208 + $0x4] sm:%s2201]
                  %2213 = vst [vmem:[%s2209 + $0x4] sm:%s2201] %v2212
                  %v2214 = vld [vmem:[%s2208 + $0x8] sm:%s2201]
                  %2215 = vst [vmem:[%s2209 + $0x8] sm:%s2201] %v2214
                  %v2216 = vld [vmem:[%s2208 + $0xc] sm:%s2201]
                  %2217 = vst [vmem:[%s2209 + $0xc] sm:%s2201] %v2216
                  %v2218 = vld [vmem:[%s2208 + $0x10] sm:%s2201]
                  %2219 = vst [vmem:[%s2209 + $0x20] sm:%s2201] %v2218
                  %v2220 = vld [vmem:[%s2208 + $0x14] sm:%s2201]
                  %2221 = vst [vmem:[%s2209 + $0x24] sm:%s2201] %v2220
                  %v2222 = vld [vmem:[%s2208 + $0x18] sm:%s2201]
                  %2223 = vst [vmem:[%s2209 + $0x28] sm:%s2201] %v2222
                  %v2224 = vld [vmem:[%s2208 + $0x1c] sm:%s2201]
                  %2225 = vst [vmem:[%s2209 + $0x2c] sm:%s2201] %v2224
                  %v2226 = vld [vmem:[%s2208 + $0x20] sm:%s2201]
                  %2227 = vst [vmem:[%s2209 + $0x40] sm:%s2201] %v2226
                  %v2228 = vld [vmem:[%s2208 + $0x24] sm:%s2201]
                  %2229 = vst [vmem:[%s2209 + $0x44] sm:%s2201] %v2228
                  %v2230 = vld [vmem:[%s2208 + $0x28] sm:%s2201]
                  %2231 = vst [vmem:[%s2209 + $0x48] sm:%s2201] %v2230
                  %v2232 = vld [vmem:[%s2208 + $0x2c] sm:%s2201]
                  %2233 = vst [vmem:[%s2209 + $0x4c] sm:%s2201] %v2232
                  %v2234 = vld [vmem:[%s2208 + $0x30] sm:%s2201]
                  %2235 = vst [vmem:[%s2209 + $0x60] sm:%s2201] %v2234
                  %v2236 = vld [vmem:[%s2208 + $0x34] sm:%s2201]
                  %2237 = vst [vmem:[%s2209 + $0x64] sm:%s2201] %v2236
                  %v2238 = vld [vmem:[%s2208 + $0x38] sm:%s2201]
                  %2239 = vst [vmem:[%s2209 + $0x68] sm:%s2201] %v2238
                  %v2240 = vld [vmem:[%s2208 + $0x3c] sm:%s2201]
                  %2241 = vst [vmem:[%s2209 + $0x6c] sm:%s2201] %v2240
                $region83: #{tpu_custom_call.1} parent=70 // loop_footer
                  %s2207 = sadd.s32 1, %s2203
                $region84: #{tpu_custom_call.1} parent=70 // loop_footer_branch
                  %2202 = sbr.rel target = $region80
                $region85: #{tpu_custom_call.1} parent=70 // loop_exit
                  _
              $region71: #{tpu_custom_call.1} parent=55 // pred_fallthru
                _
            $region56: #{tpu_custom_call.1} parent=51 // pred_fallthru
              _
            // Predicated region
            $region57: #{tpu_custom_call.1} parent=51 // pred_check
              _
            $region58: #{tpu_custom_call.1} parent=51 // pred_check_branch
              %2147 = sbr.rel (0) target = $region60
            $region59: #{tpu_custom_call.1} parent=51 // pred_region
              %s2149 = ssub.s32 16, 1
              loop: start=0, step=1, limit=1
              $region61: #{tpu_custom_call.1} parent=59 // loop_pre_header
                _
              $region62: #{tpu_custom_call.1} parent=59 // loop_header
                %s2151 = sphi 0, %s2155
                %p2152 = scmp.ge.s32.totalorder %s2151, 1
                %s2156 = sphi %s2125, %s2125
                %s2157 = sphi %s2141, %s2141
              $region63: #{tpu_custom_call.1} parent=59 // loop_header_branch
                %2154 = sbr.rel (%p2152) target = $region67
              $region64: #{tpu_custom_call.1} parent=59 // loop_body
                %v2158 = vld [vmem:[%s2156] sm:%s2149]
                %2159 = vst [vmem:[%s2157] sm:%s2149] %v2158
                %v2160 = vld [vmem:[%s2156 + $0x4] sm:%s2149]
                %2161 = vst [vmem:[%s2157 + $0x4] sm:%s2149] %v2160
                %v2162 = vld [vmem:[%s2156 + $0x8] sm:%s2149]
                %2163 = vst [vmem:[%s2157 + $0x8] sm:%s2149] %v2162
                %v2164 = vld [vmem:[%s2156 + $0xc] sm:%s2149]
                %2165 = vst [vmem:[%s2157 + $0xc] sm:%s2149] %v2164
                %v2166 = vld [vmem:[%s2156 + $0x10] sm:%s2149]
                %2167 = vst [vmem:[%s2157 + $0x20] sm:%s2149] %v2166
                %v2168 = vld [vmem:[%s2156 + $0x14] sm:%s2149]
                %2169 = vst [vmem:[%s2157 + $0x24] sm:%s2149] %v2168
                %v2170 = vld [vmem:[%s2156 + $0x18] sm:%s2149]
                %2171 = vst [vmem:[%s2157 + $0x28] sm:%s2149] %v2170
                %v2172 = vld [vmem:[%s2156 + $0x1c] sm:%s2149]
                %2173 = vst [vmem:[%s2157 + $0x2c] sm:%s2149] %v2172
                %v2174 = vld [vmem:[%s2156 + $0x20] sm:%s2149]
                %2175 = vst [vmem:[%s2157 + $0x40] sm:%s2149] %v2174
                %v2176 = vld [vmem:[%s2156 + $0x24] sm:%s2149]
                %2177 = vst [vmem:[%s2157 + $0x44] sm:%s2149] %v2176
                %v2178 = vld [vmem:[%s2156 + $0x28] sm:%s2149]
                %2179 = vst [vmem:[%s2157 + $0x48] sm:%s2149] %v2178
                %v2180 = vld [vmem:[%s2156 + $0x2c] sm:%s2149]
                %2181 = vst [vmem:[%s2157 + $0x4c] sm:%s2149] %v2180
                %v2182 = vld [vmem:[%s2156 + $0x30] sm:%s2149]
                %2183 = vst [vmem:[%s2157 + $0x60] sm:%s2149] %v2182
                %v2184 = vld [vmem:[%s2156 + $0x34] sm:%s2149]
                %2185 = vst [vmem:[%s2157 + $0x64] sm:%s2149] %v2184
                %v2186 = vld [vmem:[%s2156 + $0x38] sm:%s2149]
                %2187 = vst [vmem:[%s2157 + $0x68] sm:%s2149] %v2186
                %v2188 = vld [vmem:[%s2156 + $0x3c] sm:%s2149]
                %2189 = vst [vmem:[%s2157 + $0x6c] sm:%s2149] %v2188
              $region65: #{tpu_custom_call.1} parent=59 // loop_footer
                %s2155 = sadd.s32 1, %s2151
              $region66: #{tpu_custom_call.1} parent=59 // loop_footer_branch
                %2150 = sbr.rel target = $region62
              $region67: #{tpu_custom_call.1} parent=59 // loop_exit
                _
            $region60: #{tpu_custom_call.1} parent=51 // pred_fallthru
              _
          $region52: #{tpu_custom_call.1} parent=47 // pred_fallthru
            _
          %2242 = vnop
        $region48: #{tpu_custom_call.1} parent=43 // pred_fallthru
          _
        // Predicated region
        $region86: #{tpu_custom_call.1} parent=43 // pred_check
          %p2243 = pneg %p213
        $region87: #{tpu_custom_call.1} parent=43 // pred_check_branch
          %2245 = sbr.rel (%p2243) target = $region89
        $region88: #{tpu_custom_call.1} parent=43 // pred_region
          %s2246 = smul.u32 4, %s25
          %s2247 = smul.addr %s24, 32
          %s2248 = sadd.s32 %s2246, %s2247
          %s2249 = smul.addr %s2248, 4
          %s2250 = scalar_lea.vmem %s7, %s2249
          // Predicated region
          $region90: #{tpu_custom_call.1} parent=88 // pred_check
            _
          $region91: #{tpu_custom_call.1} parent=88 // pred_check_branch
            %2252 = sbr.rel (0) target = $region93
          $region92: #{tpu_custom_call.1} parent=88 // pred_region
            // Predicated region
            $region94: #{tpu_custom_call.1} parent=92 // pred_check
              _
            $region95: #{tpu_custom_call.1} parent=92 // pred_check_branch
              %2254 = sbr.rel target = $region97
            $region96: #{tpu_custom_call.1} parent=92 // pred_region
              // Predicated region
              $region109: #{tpu_custom_call.1} parent=96 // pred_check
                _
              $region110: #{tpu_custom_call.1} parent=96 // pred_check_branch
                %2300 = sbr.rel (0) target = $region112
              $region111: #{tpu_custom_call.1} parent=96 // pred_region
                loop: start=0, step=1, limit=1
                $region113: #{tpu_custom_call.1} parent=111 // loop_pre_header
                  _
                $region114: #{tpu_custom_call.1} parent=111 // loop_header
                  %s2302 = sphi 0, %s2306
                  %p2303 = scmp.ge.s32.totalorder %s2302, 1
                  %s2307 = sphi %s2129, %s2129
                  %s2308 = sphi %s2250, %s2250
                $region115: #{tpu_custom_call.1} parent=111 // loop_header_branch
                  %2305 = sbr.rel (%p2303) target = $region119
                $region116: #{tpu_custom_call.1} parent=111 // loop_body
                  _
                $region117: #{tpu_custom_call.1} parent=111 // loop_footer
                  %s2306 = sadd.s32 1, %s2302
                $region118: #{tpu_custom_call.1} parent=111 // loop_footer_branch
                  %2301 = sbr.rel target = $region114
                $region119: #{tpu_custom_call.1} parent=111 // loop_exit
                  _
                %s2310 = ssub.s32 16, 1
                loop: start=0, step=1, limit=1
                $region120: #{tpu_custom_call.1} parent=111 // loop_pre_header
                  _
                $region121: #{tpu_custom_call.1} parent=111 // loop_header
                  %s2312 = sphi 0, %s2316
                  %p2313 = scmp.ge.s32.totalorder %s2312, 1
                  %s2317 = sphi %s2129, %s2129
                  %s2318 = sphi %s2250, %s2250
                $region122: #{tpu_custom_call.1} parent=111 // loop_header_branch
                  %2315 = sbr.rel (%p2313) target = $region126
                $region123: #{tpu_custom_call.1} parent=111 // loop_body
                  %v2319 = vld [vmem:[%s2317] sm:%s2310]
                  %2320 = vst [vmem:[%s2318] sm:%s2310] %v2319
                  %v2321 = vld [vmem:[%s2317 + $0x4] sm:%s2310]
                  %2322 = vst [vmem:[%s2318 + $0x4] sm:%s2310] %v2321
                  %v2323 = vld [vmem:[%s2317 + $0x8] sm:%s2310]
                  %2324 = vst [vmem:[%s2318 + $0x8] sm:%s2310] %v2323
                  %v2325 = vld [vmem:[%s2317 + $0xc] sm:%s2310]
                  %2326 = vst [vmem:[%s2318 + $0xc] sm:%s2310] %v2325
                  %v2327 = vld [vmem:[%s2317 + $0x10] sm:%s2310]
                  %2328 = vst [vmem:[%s2318 + $0x20] sm:%s2310] %v2327
                  %v2329 = vld [vmem:[%s2317 + $0x14] sm:%s2310]
                  %2330 = vst [vmem:[%s2318 + $0x24] sm:%s2310] %v2329
                  %v2331 = vld [vmem:[%s2317 + $0x18] sm:%s2310]
                  %2332 = vst [vmem:[%s2318 + $0x28] sm:%s2310] %v2331
                  %v2333 = vld [vmem:[%s2317 + $0x1c] sm:%s2310]
                  %2334 = vst [vmem:[%s2318 + $0x2c] sm:%s2310] %v2333
                  %v2335 = vld [vmem:[%s2317 + $0x20] sm:%s2310]
                  %2336 = vst [vmem:[%s2318 + $0x40] sm:%s2310] %v2335
                  %v2337 = vld [vmem:[%s2317 + $0x24] sm:%s2310]
                  %2338 = vst [vmem:[%s2318 + $0x44] sm:%s2310] %v2337
                  %v2339 = vld [vmem:[%s2317 + $0x28] sm:%s2310]
                  %2340 = vst [vmem:[%s2318 + $0x48] sm:%s2310] %v2339
                  %v2341 = vld [vmem:[%s2317 + $0x2c] sm:%s2310]
                  %2342 = vst [vmem:[%s2318 + $0x4c] sm:%s2310] %v2341
                  %v2343 = vld [vmem:[%s2317 + $0x30] sm:%s2310]
                  %2344 = vst [vmem:[%s2318 + $0x60] sm:%s2310] %v2343
                  %v2345 = vld [vmem:[%s2317 + $0x34] sm:%s2310]
                  %2346 = vst [vmem:[%s2318 + $0x64] sm:%s2310] %v2345
                  %v2347 = vld [vmem:[%s2317 + $0x38] sm:%s2310]
                  %2348 = vst [vmem:[%s2318 + $0x68] sm:%s2310] %v2347
                  %v2349 = vld [vmem:[%s2317 + $0x3c] sm:%s2310]
                  %2350 = vst [vmem:[%s2318 + $0x6c] sm:%s2310] %v2349
                $region124: #{tpu_custom_call.1} parent=111 // loop_footer
                  %s2316 = sadd.s32 1, %s2312
                $region125: #{tpu_custom_call.1} parent=111 // loop_footer_branch
                  %2311 = sbr.rel target = $region121
                $region126: #{tpu_custom_call.1} parent=111 // loop_exit
                  _
              $region112: #{tpu_custom_call.1} parent=96 // pred_fallthru
                _
            $region97: #{tpu_custom_call.1} parent=92 // pred_fallthru
              _
            // Predicated region
            $region98: #{tpu_custom_call.1} parent=92 // pred_check
              _
            $region99: #{tpu_custom_call.1} parent=92 // pred_check_branch
              %2256 = sbr.rel (0) target = $region101
            $region100: #{tpu_custom_call.1} parent=92 // pred_region
              %s2258 = ssub.s32 16, 1
              loop: start=0, step=1, limit=1
              $region102: #{tpu_custom_call.1} parent=100 // loop_pre_header
                _
              $region103: #{tpu_custom_call.1} parent=100 // loop_header
                %s2260 = sphi 0, %s2264
                %p2261 = scmp.ge.s32.totalorder %s2260, 1
                %s2265 = sphi %s2129, %s2129
                %s2266 = sphi %s2250, %s2250
              $region104: #{tpu_custom_call.1} parent=100 // loop_header_branch
                %2263 = sbr.rel (%p2261) target = $region108
              $region105: #{tpu_custom_call.1} parent=100 // loop_body
                %v2267 = vld [vmem:[%s2265] sm:%s2258]
                %2268 = vst [vmem:[%s2266] sm:%s2258] %v2267
                %v2269 = vld [vmem:[%s2265 + $0x4] sm:%s2258]
                %2270 = vst [vmem:[%s2266 + $0x4] sm:%s2258] %v2269
                %v2271 = vld [vmem:[%s2265 + $0x8] sm:%s2258]
                %2272 = vst [vmem:[%s2266 + $0x8] sm:%s2258] %v2271
                %v2273 = vld [vmem:[%s2265 + $0xc] sm:%s2258]
                %2274 = vst [vmem:[%s2266 + $0xc] sm:%s2258] %v2273
                %v2275 = vld [vmem:[%s2265 + $0x10] sm:%s2258]
                %2276 = vst [vmem:[%s2266 + $0x20] sm:%s2258] %v2275
                %v2277 = vld [vmem:[%s2265 + $0x14] sm:%s2258]
                %2278 = vst [vmem:[%s2266 + $0x24] sm:%s2258] %v2277
                %v2279 = vld [vmem:[%s2265 + $0x18] sm:%s2258]
                %2280 = vst [vmem:[%s2266 + $0x28] sm:%s2258] %v2279
                %v2281 = vld [vmem:[%s2265 + $0x1c] sm:%s2258]
                %2282 = vst [vmem:[%s2266 + $0x2c] sm:%s2258] %v2281
                %v2283 = vld [vmem:[%s2265 + $0x20] sm:%s2258]
                %2284 = vst [vmem:[%s2266 + $0x40] sm:%s2258] %v2283
                %v2285 = vld [vmem:[%s2265 + $0x24] sm:%s2258]
                %2286 = vst [vmem:[%s2266 + $0x44] sm:%s2258] %v2285
                %v2287 = vld [vmem:[%s2265 + $0x28] sm:%s2258]
                %2288 = vst [vmem:[%s2266 + $0x48] sm:%s2258] %v2287
                %v2289 = vld [vmem:[%s2265 + $0x2c] sm:%s2258]
                %2290 = vst [vmem:[%s2266 + $0x4c] sm:%s2258] %v2289
                %v2291 = vld [vmem:[%s2265 + $0x30] sm:%s2258]
                %2292 = vst [vmem:[%s2266 + $0x60] sm:%s2258] %v2291
                %v2293 = vld [vmem:[%s2265 + $0x34] sm:%s2258]
                %2294 = vst [vmem:[%s2266 + $0x64] sm:%s2258] %v2293
                %v2295 = vld [vmem:[%s2265 + $0x38] sm:%s2258]
                %2296 = vst [vmem:[%s2266 + $0x68] sm:%s2258] %v2295
                %v2297 = vld [vmem:[%s2265 + $0x3c] sm:%s2258]
                %2298 = vst [vmem:[%s2266 + $0x6c] sm:%s2258] %v2297
              $region106: #{tpu_custom_call.1} parent=100 // loop_footer
                %s2264 = sadd.s32 1, %s2260
              $region107: #{tpu_custom_call.1} parent=100 // loop_footer_branch
                %2259 = sbr.rel target = $region103
              $region108: #{tpu_custom_call.1} parent=100 // loop_exit
                _
            $region101: #{tpu_custom_call.1} parent=92 // pred_fallthru
              _
          $region93: #{tpu_custom_call.1} parent=88 // pred_fallthru
            _
          %2351 = vnop
        $region89: #{tpu_custom_call.1} parent=43 // pred_fallthru
          _
        // Predicated region
        $region127: #{tpu_custom_call.1} parent=43 // pred_check
          %p2352 = pneg %p241
        $region128: #{tpu_custom_call.1} parent=43 // pred_check_branch
          %2354 = sbr.rel (%p2352) target = $region130
        $region129: #{tpu_custom_call.1} parent=43 // pred_region
          %s2355 = smul.u32 4, %s25
          %s2356 = smul.addr %s24, 32
          %s2357 = sadd.s32 %s2355, %s2356
          %s2358 = smul.addr %s2357, 4
          %s2359 = scalar_lea.vmem %s8, %s2358
          // Predicated region
          $region131: #{tpu_custom_call.1} parent=129 // pred_check
            _
          $region132: #{tpu_custom_call.1} parent=129 // pred_check_branch
            %2361 = sbr.rel (0) target = $region134
          $region133: #{tpu_custom_call.1} parent=129 // pred_region
            // Predicated region
            $region135: #{tpu_custom_call.1} parent=133 // pred_check
              _
            $region136: #{tpu_custom_call.1} parent=133 // pred_check_branch
              %2363 = sbr.rel target = $region138
            $region137: #{tpu_custom_call.1} parent=133 // pred_region
              // Predicated region
              $region150: #{tpu_custom_call.1} parent=137 // pred_check
                _
              $region151: #{tpu_custom_call.1} parent=137 // pred_check_branch
                %2409 = sbr.rel (0) target = $region153
              $region152: #{tpu_custom_call.1} parent=137 // pred_region
                loop: start=0, step=1, limit=1
                $region154: #{tpu_custom_call.1} parent=152 // loop_pre_header
                  _
                $region155: #{tpu_custom_call.1} parent=152 // loop_header
                  %s2411 = sphi 0, %s2415
                  %p2412 = scmp.ge.s32.totalorder %s2411, 1
                  %s2416 = sphi %s2133, %s2133
                  %s2417 = sphi %s2359, %s2359
                $region156: #{tpu_custom_call.1} parent=152 // loop_header_branch
                  %2414 = sbr.rel (%p2412) target = $region160
                $region157: #{tpu_custom_call.1} parent=152 // loop_body
                  _
                $region158: #{tpu_custom_call.1} parent=152 // loop_footer
                  %s2415 = sadd.s32 1, %s2411
                $region159: #{tpu_custom_call.1} parent=152 // loop_footer_branch
                  %2410 = sbr.rel target = $region155
                $region160: #{tpu_custom_call.1} parent=152 // loop_exit
                  _
                %s2419 = ssub.s32 16, 1
                loop: start=0, step=1, limit=1
                $region161: #{tpu_custom_call.1} parent=152 // loop_pre_header
                  _
                $region162: #{tpu_custom_call.1} parent=152 // loop_header
                  %s2421 = sphi 0, %s2425
                  %p2422 = scmp.ge.s32.totalorder %s2421, 1
                  %s2426 = sphi %s2133, %s2133
                  %s2427 = sphi %s2359, %s2359
                $region163: #{tpu_custom_call.1} parent=152 // loop_header_branch
                  %2424 = sbr.rel (%p2422) target = $region167
                $region164: #{tpu_custom_call.1} parent=152 // loop_body
                  %v2428 = vld [vmem:[%s2426] sm:%s2419]
                  %2429 = vst [vmem:[%s2427] sm:%s2419] %v2428
                  %v2430 = vld [vmem:[%s2426 + $0x4] sm:%s2419]
                  %2431 = vst [vmem:[%s2427 + $0x4] sm:%s2419] %v2430
                  %v2432 = vld [vmem:[%s2426 + $0x8] sm:%s2419]
                  %2433 = vst [vmem:[%s2427 + $0x8] sm:%s2419] %v2432
                  %v2434 = vld [vmem:[%s2426 + $0xc] sm:%s2419]
                  %2435 = vst [vmem:[%s2427 + $0xc] sm:%s2419] %v2434
                  %v2436 = vld [vmem:[%s2426 + $0x10] sm:%s2419]
                  %2437 = vst [vmem:[%s2427 + $0x20] sm:%s2419] %v2436
                  %v2438 = vld [vmem:[%s2426 + $0x14] sm:%s2419]
                  %2439 = vst [vmem:[%s2427 + $0x24] sm:%s2419] %v2438
                  %v2440 = vld [vmem:[%s2426 + $0x18] sm:%s2419]
                  %2441 = vst [vmem:[%s2427 + $0x28] sm:%s2419] %v2440
                  %v2442 = vld [vmem:[%s2426 + $0x1c] sm:%s2419]
                  %2443 = vst [vmem:[%s2427 + $0x2c] sm:%s2419] %v2442
                  %v2444 = vld [vmem:[%s2426 + $0x20] sm:%s2419]
                  %2445 = vst [vmem:[%s2427 + $0x40] sm:%s2419] %v2444
                  %v2446 = vld [vmem:[%s2426 + $0x24] sm:%s2419]
                  %2447 = vst [vmem:[%s2427 + $0x44] sm:%s2419] %v2446
                  %v2448 = vld [vmem:[%s2426 + $0x28] sm:%s2419]
                  %2449 = vst [vmem:[%s2427 + $0x48] sm:%s2419] %v2448
                  %v2450 = vld [vmem:[%s2426 + $0x2c] sm:%s2419]
                  %2451 = vst [vmem:[%s2427 + $0x4c] sm:%s2419] %v2450
                  %v2452 = vld [vmem:[%s2426 + $0x30] sm:%s2419]
                  %2453 = vst [vmem:[%s2427 + $0x60] sm:%s2419] %v2452
                  %v2454 = vld [vmem:[%s2426 + $0x34] sm:%s2419]
                  %2455 = vst [vmem:[%s2427 + $0x64] sm:%s2419] %v2454
                  %v2456 = vld [vmem:[%s2426 + $0x38] sm:%s2419]
                  %2457 = vst [vmem:[%s2427 + $0x68] sm:%s2419] %v2456
                  %v2458 = vld [vmem:[%s2426 + $0x3c] sm:%s2419]
                  %2459 = vst [vmem:[%s2427 + $0x6c] sm:%s2419] %v2458
                $region165: #{tpu_custom_call.1} parent=152 // loop_footer
                  %s2425 = sadd.s32 1, %s2421
                $region166: #{tpu_custom_call.1} parent=152 // loop_footer_branch
                  %2420 = sbr.rel target = $region162
                $region167: #{tpu_custom_call.1} parent=152 // loop_exit
                  _
              $region153: #{tpu_custom_call.1} parent=137 // pred_fallthru
                _
            $region138: #{tpu_custom_call.1} parent=133 // pred_fallthru
              _
            // Predicated region
            $region139: #{tpu_custom_call.1} parent=133 // pred_check
              _
            $region140: #{tpu_custom_call.1} parent=133 // pred_check_branch
              %2365 = sbr.rel (0) target = $region142
            $region141: #{tpu_custom_call.1} parent=133 // pred_region
              %s2367 = ssub.s32 16, 1
              loop: start=0, step=1, limit=1
              $region143: #{tpu_custom_call.1} parent=141 // loop_pre_header
                _
              $region144: #{tpu_custom_call.1} parent=141 // loop_header
                %s2369 = sphi 0, %s2373
                %p2370 = scmp.ge.s32.totalorder %s2369, 1
                %s2374 = sphi %s2133, %s2133
                %s2375 = sphi %s2359, %s2359
              $region145: #{tpu_custom_call.1} parent=141 // loop_header_branch
                %2372 = sbr.rel (%p2370) target = $region149
              $region146: #{tpu_custom_call.1} parent=141 // loop_body
                %v2376 = vld [vmem:[%s2374] sm:%s2367]
                %2377 = vst [vmem:[%s2375] sm:%s2367] %v2376
                %v2378 = vld [vmem:[%s2374 + $0x4] sm:%s2367]
                %2379 = vst [vmem:[%s2375 + $0x4] sm:%s2367] %v2378
                %v2380 = vld [vmem:[%s2374 + $0x8] sm:%s2367]
                %2381 = vst [vmem:[%s2375 + $0x8] sm:%s2367] %v2380
                %v2382 = vld [vmem:[%s2374 + $0xc] sm:%s2367]
                %2383 = vst [vmem:[%s2375 + $0xc] sm:%s2367] %v2382
                %v2384 = vld [vmem:[%s2374 + $0x10] sm:%s2367]
                %2385 = vst [vmem:[%s2375 + $0x20] sm:%s2367] %v2384
                %v2386 = vld [vmem:[%s2374 + $0x14] sm:%s2367]
                %2387 = vst [vmem:[%s2375 + $0x24] sm:%s2367] %v2386
                %v2388 = vld [vmem:[%s2374 + $0x18] sm:%s2367]
                %2389 = vst [vmem:[%s2375 + $0x28] sm:%s2367] %v2388
                %v2390 = vld [vmem:[%s2374 + $0x1c] sm:%s2367]
                %2391 = vst [vmem:[%s2375 + $0x2c] sm:%s2367] %v2390
                %v2392 = vld [vmem:[%s2374 + $0x20] sm:%s2367]
                %2393 = vst [vmem:[%s2375 + $0x40] sm:%s2367] %v2392
                %v2394 = vld [vmem:[%s2374 + $0x24] sm:%s2367]
                %2395 = vst [vmem:[%s2375 + $0x44] sm:%s2367] %v2394
                %v2396 = vld [vmem:[%s2374 + $0x28] sm:%s2367]
                %2397 = vst [vmem:[%s2375 + $0x48] sm:%s2367] %v2396
                %v2398 = vld [vmem:[%s2374 + $0x2c] sm:%s2367]
                %2399 = vst [vmem:[%s2375 + $0x4c] sm:%s2367] %v2398
                %v2400 = vld [vmem:[%s2374 + $0x30] sm:%s2367]
                %2401 = vst [vmem:[%s2375 + $0x60] sm:%s2367] %v2400
                %v2402 = vld [vmem:[%s2374 + $0x34] sm:%s2367]
                %2403 = vst [vmem:[%s2375 + $0x64] sm:%s2367] %v2402
                %v2404 = vld [vmem:[%s2374 + $0x38] sm:%s2367]
                %2405 = vst [vmem:[%s2375 + $0x68] sm:%s2367] %v2404
                %v2406 = vld [vmem:[%s2374 + $0x3c] sm:%s2367]
                %2407 = vst [vmem:[%s2375 + $0x6c] sm:%s2367] %v2406
              $region147: #{tpu_custom_call.1} parent=141 // loop_footer
                %s2373 = sadd.s32 1, %s2369
              $region148: #{tpu_custom_call.1} parent=141 // loop_footer_branch
                %2368 = sbr.rel target = $region144
              $region149: #{tpu_custom_call.1} parent=141 // loop_exit
                _
            $region142: #{tpu_custom_call.1} parent=133 // pred_fallthru
              _
          $region134: #{tpu_custom_call.1} parent=129 // pred_fallthru
            _
          %2460 = vnop
        $region130: #{tpu_custom_call.1} parent=43 // pred_fallthru
          _
      $region44: #{tpu_custom_call.1} parent=5 // pred_fallthru
        _
      %p2461 = scmp.le.s32.totalorder 2, %s15
      // Predicated region
      $region168: #{tpu_custom_call.1} parent=5 // pred_check
        %p2462 = pneg %p2461
      $region169: #{tpu_custom_call.1} parent=5 // pred_check_branch
        %2464 = sbr.rel (%p2462) target = $region171
      $region170: #{tpu_custom_call.1} parent=5 // pred_region
        %s2465 = ssub.s32 %s15, 2
        // Predicated region
        $region172: #{tpu_custom_call.1} parent=170 // pred_check
          %p2466 = pneg %p191
        $region173: #{tpu_custom_call.1} parent=170 // pred_check_branch
          %2468 = sbr.rel (%p2466) target = $region175
        $region174: #{tpu_custom_call.1} parent=170 // pred_region
          %s2469 = sand.u32 %s176, 1
          %s2470 = sand.u32 %s176, 1
          %s2471 = smul.addr %s2470, 64
          %s2472 = scalar_lea.vmem [#allocation2], %s2471
        $region175: #{tpu_custom_call.1} parent=170 // pred_fallthru
          _
        // Predicated region
        $region176: #{tpu_custom_call.1} parent=170 // pred_check
          %p2473 = pneg %p219
        $region177: #{tpu_custom_call.1} parent=170 // pred_check_branch
          %2475 = sbr.rel (%p2473) target = $region179
        $region178: #{tpu_custom_call.1} parent=170 // pred_region
          %s2476 = sand.u32 %s204, 1
          %s2477 = sand.u32 %s204, 1
          %s2478 = smul.addr %s2477, 64
          %s2479 = scalar_lea.vmem [#allocation3], %s2478
        $region179: #{tpu_custom_call.1} parent=170 // pred_fallthru
          _
        // Predicated region
        $region180: #{tpu_custom_call.1} parent=170 // pred_check
          %p2480 = pneg %p247
        $region181: #{tpu_custom_call.1} parent=170 // pred_check_branch
          %2482 = sbr.rel (%p2480) target = $region183
        $region182: #{tpu_custom_call.1} parent=170 // pred_region
          %s2483 = sand.u32 %s232, 1
          %s2484 = sand.u32 %s232, 1
          %s2485 = smul.addr %s2484, 64
          %s2486 = scalar_lea.vmem [#allocation4], %s2485
        $region183: #{tpu_custom_call.1} parent=170 // pred_fallthru
          _
      $region171: #{tpu_custom_call.1} parent=5 // pred_fallthru
        _
    $region6: #{tpu_custom_call.1} parent=1 // loop_footer
      %s19 = sadd.s32 1, %s15
    $region7: #{tpu_custom_call.1} parent=1 // loop_footer_branch
      %14 = sbr.rel target = $region3
    $region8: #{tpu_custom_call.1} parent=1 // loop_exit
      _

</llo_original>
